<compile_context>
chip_gen: v7x
topology: tpu7x:2x2x1
jax: 0.10.0
libtpu: 0.0.40
codegen_flags: <defaults>
</compile_context>

<pallas_src>
import functools
import numpy as np
import jax
import jax.numpy as jnp
from jax.experimental import pallas as pl
from jax.experimental.pallas import tpu as pltpu


# ----------------------------- helpers (glue) ---------------------------------

def window_partition(x, ws):
    """(B, H, W, C) -> (num_windows*B, ws, ws, C)"""
    B, H, W, C = x.shape
    x = x.reshape(B, H // ws, ws, W // ws, ws, C)
    return x.transpose(0, 1, 3, 2, 4, 5).reshape(-1, ws, ws, C)


def window_reverse(windows, ws, H, W):
    """(num_windows*B, ws, ws, C) -> (B, H, W, C)"""
    B = windows.shape[0] // (H * W // ws // ws)
    x = windows.reshape(B, H // ws, W // ws, ws, ws, -1)
    return x.transpose(0, 1, 3, 2, 4, 5).reshape(B, H, W, -1)


def relative_position_bias(table, ws, num_heads):
    """table: ((2ws-1)^2, nh) -> bias (nh, N, N), same index construction as PyTorch."""
    coords = np.stack(np.meshgrid(np.arange(ws), np.arange(ws), indexing="ij"))
    cf = coords.reshape(2, -1)
    rc = cf[:, :, None] - cf[:, None, :]
    rc = rc.transpose(1, 2, 0).copy()
    rc[:, :, 0] += ws - 1
    rc[:, :, 1] += ws - 1
    rc[:, :, 0] *= 2 * ws - 1
    idx = rc.sum(-1)                                   # (N, N)
    N = ws * ws
    bias = jnp.asarray(table)[idx.reshape(-1)].reshape(N, N, num_heads)
    return jnp.transpose(bias, (2, 0, 1)).astype(jnp.float32)   # (nh, N, N)


def _layer_norm(x, w, b, eps=1e-5):
    mu = jnp.mean(x, axis=-1, keepdims=True)
    var = jnp.mean(jnp.square(x - mu), axis=-1, keepdims=True)
    return (x - mu) * jax.lax.rsqrt(var + eps) * w + b


def _erf_poly(x):
    """Abramowitz & Stegun 7.1.26, |error| <= 1.5e-7 (exp/VPU only -> safe Mosaic lowering)."""
    ax = jnp.abs(x)
    t = 1.0 / (1.0 + 0.3275911 * ax)
    poly = ((((1.061405429 * t - 1.453152027) * t + 1.421413741) * t
             - 0.284496736) * t + 0.254829592) * t
    y = 1.0 - poly * jnp.exp(-ax * ax)
    return jnp.where(x >= 0, y, -y)


def _gelu_exact(x):
    return 0.5 * x * (1.0 + _erf_poly(x * np.float32(1.0 / np.sqrt(2.0))))


def _choose_windows_per_step(B_, N, C, hidden, num_heads,
                             budget_bytes=40 * 2**20, max_rows=2048):
    """Largest TB s.t. (a) TB divides B_, (b) >= 2 grid steps remain whenever B_ >= 2
    (v7x megacore), (c) rows/step <= max_rows, (d) the double-buffered per-step VMEM
    footprint stays under budget_bytes."""
    weight_elems = (4 * C * C + C * hidden + hidden * C
                    + num_heads * N * N + 9 * C + hidden)

    def step_bytes(tb):
        M = tb * N
        io = 4 * M * C                       # x, k2, out, k3 tiles
        tmp = M * (4 * C + hidden)           # q/k/v, attn scratch, mlp hidden
        return 4 * (2 * (weight_elems + io) + tmp)

    divisors = [d for d in range(1, B_ + 1) if B_ % d == 0]
    multi = [d for d in divisors if B_ // d >= 2] or divisors
    fitting = [d for d in multi if d * N <= max_rows and step_bytes(d) <= budget_bytes]
    return max(fitting) if fitting else min(multi)


# ----------------------------- Pallas kernel ----------------------------------

def swin_block_kernel(TB, N, num_heads, head_dim,
                      x_ref, k2_ref, vec_ref, fc1_b_ref,
                      q_w_ref, k_w_ref, v_w_ref, proj_w_ref, bias_ref,
                      fc1_w_ref, fc2_w_ref,
                      out_ref, k3_ref,
                      attn_scratch):
    x = x_ref[...]                                   # (M, C) slab: TB windows * N tokens
    M, C = x.shape
    scale = np.float32(head_dim ** -0.5)

    vec = vec_ref[...]                               # (9, C) packed LN / bias vectors
    ln1_w, ln1_b = vec[0:1, :], vec[1:2, :]
    q_b, k_b, v_b = vec[2:3, :], vec[3:4, :], vec[4:5, :]
    proj_b = vec[5:6, :]
    ln2_w, ln2_b = vec[6:7, :], vec[7:8, :]
    fc2_b = vec[8:9, :]

    shortcut = x
    xn = _layer_norm(x, ln1_w, ln1_b)

    # Three clean (M, C) dots instead of one padded (M, 3C) + lane slicing.
    q = (jnp.dot(xn, q_w_ref[...], preferred_element_type=jnp.float32) + q_b) * scale
    k = jnp.dot(xn, k_w_ref[...], preferred_element_type=jnp.float32) + k_b
    v = jnp.dot(xn, v_w_ref[...], preferred_element_type=jnp.float32) + v_b
    k3_ref[...] = k                                  # unscaled keys -> straight lane-dense store

    # Per-head attention (N, hd tiny): single-batch-dim einsums; k2 & bias are head-major so
    # the per-head operand is a free leading-dim index; head outputs land in a VMEM scratch
    # slab at their lane offset (no list + lane concat).
    for h in range(num_heads):
        lo = h * head_dim
        q_h = q[:, lo:lo + head_dim].reshape(TB, N, head_dim)
        v_h = v[:, lo:lo + head_dim].reshape(TB, N, head_dim)
        k_h = k2_ref[h]                              # (TB, N, hd) external keys, head h
        s = jnp.einsum("bqd,bkd->bqk", q_h, k_h,
                       preferred_element_type=jnp.float32)          # (TB, N, N)
        s = s + bias_ref[h][None, :, :]
        s = s - jnp.max(s, axis=-1, keepdims=True)
        p = jnp.exp(s)
        p = p * pl.reciprocal(jnp.sum(p, axis=-1, keepdims=True))   # exact reciprocal
        o_h = jnp.einsum("bqk,bkd->bqd", p, v_h,
                         preferred_element_type=jnp.float32)         # (TB, N, hd)
        attn_scratch[:, lo:lo + head_dim] = o_h.reshape(M, head_dim)

    attn_out = jnp.dot(attn_scratch[...], proj_w_ref[...],
                       preferred_element_type=jnp.float32) + proj_b

    x1 = shortcut + attn_out
    x2 = _layer_norm(x1, ln2_w, ln2_b)
    hdn = jnp.dot(x2, fc1_w_ref[...], preferred_element_type=jnp.float32) + fc1_b_ref[...]
    hdn = _gelu_exact(hdn)
    mlp = jnp.dot(hdn, fc2_w_ref[...], preferred_element_type=jnp.float32) + fc2_b

    out_ref[...] = x1 + mlp


# ------------------------------ wrapper ----------------------------------------

@functools.partial(jax.jit,
                   static_argnames=("input_resolution", "window_size",
                                    "num_heads", "shift_size"))
def swin_transformer_block_three(x, k2, p, *, input_resolution, window_size,
                                 num_heads, shift_size=0):
    assert shift_size == 0, "only shift_size=0 (module default) is implemented"
    H, W = input_resolution
    B, C, Hx, Wx = x.shape
    assert (Hx, Wx) == (H, W)
    ws = window_size
    N = ws * ws
    hd = C // num_heads
    hidden = p["fc1_w"].shape[1]

    # NCHW -> NHWC -> windows -> flat 2-D token slab (B_*N, C)
    x_hwc = jnp.transpose(x, (0, 2, 3, 1))
    x_slab = window_partition(x_hwc, ws).reshape(-1, C)
    B_ = x_slab.shape[0] // N
    assert k2.shape == (B_, num_heads, N, hd)
    # Head-major external keys: (B_, nh, N, hd) -> (nh, B_, N, hd); the kernel indexes the
    # leading head dim for free (no in-kernel lane slicing of k2).
    k2_hm = jnp.transpose(k2, (1, 0, 2, 3))

    # Pre-split qkv weights / biases, pack the small per-channel vectors into one array.
    q_w = p["qkv_w"][:, :C]
    k_w = p["qkv_w"][:, C:2 * C]
    v_w = p["qkv_w"][:, 2 * C:]
    vec = jnp.concatenate(
        [p["ln1_w"], p["ln1_b"],
         p["qkv_b"][:, :C], p["qkv_b"][:, C:2 * C], p["qkv_b"][:, 2 * C:],
         p["proj_b"], p["ln2_w"], p["ln2_b"], p["fc2_b"]], axis=0)   # (9, C)

    TB = _choose_windows_per_step(B_, N, C, hidden, num_heads)    # windows per grid step
    G = B_ // TB
    M = TB * N

    weight_elems = (4 * C * C + C * hidden + hidden * C
                    + num_heads * N * N + 9 * C + hidden)
    est_bytes = 4 * (2 * (weight_elems + 4 * M * C) + M * (4 * C + hidden))
    vmem_limit = int(min(48 * 2**20, max(32 * 2**20, 2 * est_bytes)))

    in_specs = [
        pl.BlockSpec((M, C), lambda i: (i, 0)),                          # x slab
        pl.BlockSpec((num_heads, TB, N, hd), lambda i: (0, i, 0, 0)),    # k2 (head-major)
        pl.BlockSpec((9, C), lambda i: (0, 0)),                          # packed LN/bias vecs
        pl.BlockSpec((1, hidden), lambda i: (0, 0)),                     # fc1_b
        pl.BlockSpec((C, C), lambda i: (0, 0)),                          # q_w
        pl.BlockSpec((C, C), lambda i: (0, 0)),                          # k_w
        pl.BlockSpec((C, C), lambda i: (0, 0)),                          # v_w
        pl.BlockSpec((C, C), lambda i: (0, 0)),                          # proj_w
        pl.BlockSpec((num_heads, N, N), lambda i: (0, 0, 0)),            # rel pos bias
        pl.BlockSpec((C, hidden), lambda i: (0, 0)),                     # fc1_w
        pl.BlockSpec((hidden, C), lambda i: (0, 0)),                     # fc2_w
    ]
    out_specs = [
        pl.BlockSpec((M, C), lambda i: (i, 0)),                          # out slab
        pl.BlockSpec((M, C), lambda i: (i, 0)),                          # k3 slab (lane-dense)
    ]
    out_shape = [
        jax.ShapeDtypeStruct((B_ * N, C), jnp.float32),
        jax.ShapeDtypeStruct((B_ * N, C), jnp.float32),
    ]

    out_slab, k3_slab = pl.pallas_call(
        functools.partial(swin_block_kernel, TB, N, num_heads, hd),
        out_shape=out_shape,
        grid=(G,),
        in_specs=in_specs,
        out_specs=out_specs,
        scratch_shapes=[pltpu.VMEM((M, C), jnp.float32)],
        compiler_params=pltpu.CompilerParams(
            dimension_semantics=("parallel",),
            vmem_limit_bytes=vmem_limit),
    )(x_slab, k2_hm, vec, p["fc1_b"],
      q_w, k_w, v_w, p["proj_w"], p["rel_bias"],
      p["fc1_w"], p["fc2_w"])

    out_hwc = window_reverse(out_slab.reshape(-1, ws, ws, C), ws, H, W)
    out = jnp.transpose(out_hwc, (0, 3, 1, 2))                            # back to NCHW
    k3 = jnp.transpose(k3_slab.reshape(B_, N, num_heads, hd), (0, 2, 1, 3))
    return out, k3


# ------------------------ pure-JAX reference (PyTorch semantics) ----------------

def reference_forward(x, k2, p, *, input_resolution, window_size, num_heads):
    H, W = input_resolution
    B, C = x.shape[0], x.shape[1]
    ws, N, hd = window_size, window_size * window_size, C // num_heads

    xs = x.reshape(B, C, H * W).transpose(0, 2, 1)                 # (B, L, C)
    shortcut = xs
    xn = _layer_norm(xs, p["ln1_w"][0], p["ln1_b"][0])
    xw = window_partition(xn.reshape(B, H, W, C), ws).reshape(-1, N, C)
    qkv = xw @ p["qkv_w"] + p["qkv_b"][0]
    qkv = qkv.reshape(-1, N, 3, num_heads, hd).transpose(2, 0, 3, 1, 4)
    q, k3, v = qkv[0], qkv[1], qkv[2]
    q = q * (hd ** -0.5)
    attn = jnp.einsum("bhqd,bhkd->bhqk", q, k2) + p["rel_bias"][None]
    attn = jax.nn.softmax(attn, axis=-1)
    xo = jnp.einsum("bhqk,bhkd->bhqd", attn, v).transpose(0, 2, 1, 3).reshape(-1, N, C)
    xo = xo @ p["proj_w"] + p["proj_b"][0]
    xo = window_reverse(xo.reshape(-1, ws, ws, C), ws, H, W).reshape(B, H * W, C)
    x1 = shortcut + xo
    x2 = _layer_norm(x1, p["ln2_w"][0], p["ln2_b"][0])
    m = jax.nn.gelu(x2 @ p["fc1_w"] + p["fc1_b"][0], approximate=False)
    m = m @ p["fc2_w"] + p["fc2_b"][0]
    x1 = x1 + m
    out = x1.reshape(B, H, W, C).transpose(0, 3, 1, 2)
    return out, k3


# --------------------------------- main -----------------------------------------

if __name__ == "__main__":
    # small config consistent with the module's forward
    B, C, H, W = 2, 32, 8, 8
    num_heads, window_size, shift_size = 4, 4, 0
    mlp_ratio = 4.0
    ws, N, hd = window_size, window_size * window_size, C // num_heads
    nW = (H // ws) * (W // ws)
    B_ = B * nW
    hidden = int(C * mlp_ratio)

    key = jax.random.PRNGKey(0)
    keys = jax.random.split(key, 12)

    params = {
        "ln1_w": jnp.ones((1, C), jnp.float32),
        "ln1_b": jnp.zeros((1, C), jnp.float32),
        "qkv_w": 0.02 * jax.random.normal(keys[0], (C, 3 * C), jnp.float32),
        "qkv_b": 0.02 * jax.random.normal(keys[1], (1, 3 * C), jnp.float32),
        "proj_w": 0.02 * jax.random.normal(keys[2], (C, C), jnp.float32),
        "proj_b": 0.02 * jax.random.normal(keys[3], (1, C), jnp.float32),
        "ln2_w": jnp.ones((1, C), jnp.float32),
        "ln2_b": jnp.zeros((1, C), jnp.float32),
        "fc1_w": 0.02 * jax.random.normal(keys[4], (C, hidden), jnp.float32),
        "fc1_b": 0.02 * jax.random.normal(keys[5], (1, hidden), jnp.float32),
        "fc2_w": 0.02 * jax.random.normal(keys[6], (hidden, C), jnp.float32),
        "fc2_b": 0.02 * jax.random.normal(keys[7], (1, C), jnp.float32),
    }
    rel_table = 0.02 * jax.random.normal(keys[8], ((2 * ws - 1) * (2 * ws - 1), num_heads),
                                         jnp.float32)
    params["rel_bias"] = relative_position_bias(rel_table, ws, num_heads)   # (nh, N, N)

    x = jax.random.normal(keys[9], (B, C, H, W), jnp.float32)               # NCHW like PyTorch
    k2 = jax.random.normal(keys[10], (B_, num_heads, N, hd), jnp.float32)

    out, k3 = swin_transformer_block_three(
        x, k2, params,
        input_resolution=(H, W), window_size=ws, num_heads=num_heads, shift_size=shift_size)
    out, k3 = jax.block_until_ready(out), jax.block_until_ready(k3)

    ref_out, ref_k3 = reference_forward(
        x, k2, params, input_resolution=(H, W), window_size=ws, num_heads=num_heads)

    assert out.shape == (B, C, H, W) and k3.shape == (B_, num_heads, N, hd)
    np.testing.assert_allclose(np.asarray(out), np.asarray(ref_out), rtol=1e-4, atol=1e-4)
    np.testing.assert_allclose(np.asarray(k3), np.asarray(ref_k3), rtol=1e-4, atol=1e-4)

    print("KERNEL_OK")
</pallas_src>

<mosaic_0001>
module attributes {stable_mosaic.version = 11 : i64} {
  func.func @swin_block_kernel(%arg0: i32, %arg1: memref<64x32xf32, #tpu.memory_space<vmem>>, %arg2: memref<4x4x16x8xf32, #tpu.memory_space<vmem>>, %arg3: memref<9x32xf32, #tpu.memory_space<vmem>>, %arg4: memref<1x128xf32, #tpu.memory_space<vmem>>, %arg5: memref<32x32xf32, #tpu.memory_space<vmem>>, %arg6: memref<32x32xf32, #tpu.memory_space<vmem>>, %arg7: memref<32x32xf32, #tpu.memory_space<vmem>>, %arg8: memref<32x32xf32, #tpu.memory_space<vmem>>, %arg9: memref<4x16x16xf32, #tpu.memory_space<vmem>>, %arg10: memref<32x128xf32, #tpu.memory_space<vmem>>, %arg11: memref<128x32xf32, #tpu.memory_space<vmem>>, %arg12: memref<64x32xf32, #tpu.memory_space<vmem>>, %arg13: memref<64x32xf32, #tpu.memory_space<vmem>>, %arg14: memref<64x32xf32, #tpu.memory_space<vmem>>) attributes {dimension_semantics = [#tpu.dimension_semantics<parallel>], iteration_bounds = array<i64: 2>, scalar_prefetch = 0 : i64, scratch_operands = 1 : i64, tpu.core_type = #tpu.core_type<tc>, window_params = [{transform_indices = @transform_0, window_bounds = array<i64: 64, 32>}, {transform_indices = @transform_1, window_bounds = array<i64: 4, 4, 16, 8>}, {pipeline_mode = #tpu.pipeline_mode<synchronous>, transform_indices = @transform_2, window_bounds = array<i64: 9, 32>}, {pipeline_mode = #tpu.pipeline_mode<synchronous>, transform_indices = @transform_3, window_bounds = array<i64: 1, 128>}, {pipeline_mode = #tpu.pipeline_mode<synchronous>, transform_indices = @transform_4, window_bounds = array<i64: 32, 32>}, {pipeline_mode = #tpu.pipeline_mode<synchronous>, transform_indices = @transform_5, window_bounds = array<i64: 32, 32>}, {pipeline_mode = #tpu.pipeline_mode<synchronous>, transform_indices = @transform_6, window_bounds = array<i64: 32, 32>}, {pipeline_mode = #tpu.pipeline_mode<synchronous>, transform_indices = @transform_7, window_bounds = array<i64: 32, 32>}, {pipeline_mode = #tpu.pipeline_mode<synchronous>, transform_indices = @transform_8, window_bounds = array<i64: 4, 16, 16>}, {pipeline_mode = #tpu.pipeline_mode<synchronous>, transform_indices = @transform_9, window_bounds = array<i64: 32, 128>}, {pipeline_mode = #tpu.pipeline_mode<synchronous>, transform_indices = @transform_10, window_bounds = array<i64: 128, 32>}, {transform_indices = @transform_11, window_bounds = array<i64: 64, 32>}, {transform_indices = @transform_12, window_bounds = array<i64: 64, 32>}]} {
    %c0 = arith.constant 0 : index
    %c0_0 = arith.constant 0 : index
    %0 = vector.load %arg1[%c0, %c0_0] : memref<64x32xf32, #tpu.memory_space<vmem>>, vector<64x32xf32>
    %c0_1 = arith.constant 0 : index
    %c0_2 = arith.constant 0 : index
    %1 = vector.load %arg3[%c0_1, %c0_2] : memref<9x32xf32, #tpu.memory_space<vmem>>, vector<9x32xf32>
    %2 = vector.extract_strided_slice %1 {offsets = [0, 0], sizes = [1, 32], strides = [1, 1]} : vector<9x32xf32> to vector<1x32xf32>
    %3 = vector.extract_strided_slice %1 {offsets = [1, 0], sizes = [1, 32], strides = [1, 1]} : vector<9x32xf32> to vector<1x32xf32>
    %4 = vector.extract_strided_slice %1 {offsets = [2, 0], sizes = [1, 32], strides = [1, 1]} : vector<9x32xf32> to vector<1x32xf32>
    %5 = vector.extract_strided_slice %1 {offsets = [3, 0], sizes = [1, 32], strides = [1, 1]} : vector<9x32xf32> to vector<1x32xf32>
    %6 = vector.extract_strided_slice %1 {offsets = [4, 0], sizes = [1, 32], strides = [1, 1]} : vector<9x32xf32> to vector<1x32xf32>
    %7 = vector.extract_strided_slice %1 {offsets = [5, 0], sizes = [1, 32], strides = [1, 1]} : vector<9x32xf32> to vector<1x32xf32>
    %8 = vector.extract_strided_slice %1 {offsets = [6, 0], sizes = [1, 32], strides = [1, 1]} : vector<9x32xf32> to vector<1x32xf32>
    %9 = vector.extract_strided_slice %1 {offsets = [7, 0], sizes = [1, 32], strides = [1, 1]} : vector<9x32xf32> to vector<1x32xf32>
    %10 = vector.extract_strided_slice %1 {offsets = [8, 0], sizes = [1, 32], strides = [1, 1]} : vector<9x32xf32> to vector<1x32xf32>
    %cst = arith.constant dense<0.000000e+00> : vector<64xf32>
    %11 = vector.multi_reduction <add>, %0, %cst [1] : vector<64x32xf32> to vector<64xf32>
    %12 = vector.shape_cast %11 : vector<64xf32> to vector<64x1xf32>
    %cst_3 = arith.constant 3.200000e+01 : f32
    %13 = vector.broadcast %cst_3 : f32 to vector<64x1xf32>
    %14 = arith.divf %12, %13 : vector<64x1xf32>
    %15 = vector.broadcast %14 : vector<64x1xf32> to vector<64x32xf32>
    %16 = arith.subf %0, %15 : vector<64x32xf32>
    %17 = arith.mulf %16, %16 : vector<64x32xf32>
    %cst_4 = arith.constant dense<0.000000e+00> : vector<64xf32>
    %18 = vector.multi_reduction <add>, %17, %cst_4 [1] : vector<64x32xf32> to vector<64xf32>
    %19 = vector.shape_cast %18 : vector<64xf32> to vector<64x1xf32>
    %cst_5 = arith.constant 3.200000e+01 : f32
    %20 = vector.broadcast %cst_5 : f32 to vector<64x1xf32>
    %21 = arith.divf %19, %20 : vector<64x1xf32>
    %22 = vector.broadcast %14 : vector<64x1xf32> to vector<64x32xf32>
    %23 = arith.subf %0, %22 : vector<64x32xf32>
    %cst_6 = arith.constant 9.99999974E-6 : f32
    %24 = vector.broadcast %cst_6 : f32 to vector<64x1xf32>
    %25 = arith.addf %21, %24 : vector<64x1xf32>
    %26 = math.rsqrt %25 : vector<64x1xf32>
    %27 = vector.broadcast %26 : vector<64x1xf32> to vector<64x32xf32>
    %28 = arith.mulf %23, %27 : vector<64x32xf32>
    %29 = vector.broadcast %2 : vector<1x32xf32> to vector<64x32xf32>
    %30 = arith.mulf %28, %29 : vector<64x32xf32>
    %31 = vector.broadcast %3 : vector<1x32xf32> to vector<64x32xf32>
    %32 = arith.addf %30, %31 : vector<64x32xf32>
    %c0_7 = arith.constant 0 : index
    %c0_8 = arith.constant 0 : index
    %33 = vector.load %arg5[%c0_7, %c0_8] : memref<32x32xf32, #tpu.memory_space<vmem>>, vector<32x32xf32>
    %cst_9 = arith.constant dense<0.000000e+00> : vector<64x32xf32>
    %34 = tpu.matmul %32, %33, %cst_9 {dimension_numbers = #tpu.dot_dimension_numbers<[1], [0], [0], [1], [0, 0, 1, 1], [], []>} : vector<64x32xf32>, vector<32x32xf32>, vector<64x32xf32> -> vector<64x32xf32>
    %35 = vector.broadcast %4 : vector<1x32xf32> to vector<64x32xf32>
    %36 = arith.addf %34, %35 : vector<64x32xf32>
    %cst_10 = arith.constant 0.353553385 : f32
    %37 = vector.broadcast %cst_10 : f32 to vector<64x32xf32>
    %38 = arith.mulf %36, %37 : vector<64x32xf32>
    %c0_11 = arith.constant 0 : index
    %c0_12 = arith.constant 0 : index
    %39 = vector.load %arg6[%c0_11, %c0_12] : memref<32x32xf32, #tpu.memory_space<vmem>>, vector<32x32xf32>
    %cst_13 = arith.constant dense<0.000000e+00> : vector<64x32xf32>
    %40 = tpu.matmul %32, %39, %cst_13 {dimension_numbers = #tpu.dot_dimension_numbers<[1], [0], [0], [1], [0, 0, 1, 1], [], []>} : vector<64x32xf32>, vector<32x32xf32>, vector<64x32xf32> -> vector<64x32xf32>
    %41 = vector.broadcast %5 : vector<1x32xf32> to vector<64x32xf32>
    %42 = arith.addf %40, %41 : vector<64x32xf32>
    %c0_14 = arith.constant 0 : index
    %c0_15 = arith.constant 0 : index
    %43 = vector.load %arg7[%c0_14, %c0_15] : memref<32x32xf32, #tpu.memory_space<vmem>>, vector<32x32xf32>
    %cst_16 = arith.constant dense<0.000000e+00> : vector<64x32xf32>
    %44 = tpu.matmul %32, %43, %cst_16 {dimension_numbers = #tpu.dot_dimension_numbers<[1], [0], [0], [1], [0, 0, 1, 1], [], []>} : vector<64x32xf32>, vector<32x32xf32>, vector<64x32xf32> -> vector<64x32xf32>
    %45 = vector.broadcast %6 : vector<1x32xf32> to vector<64x32xf32>
    %46 = arith.addf %44, %45 : vector<64x32xf32>
    %c0_17 = arith.constant 0 : index
    %c0_18 = arith.constant 0 : index
    %47 = vector.load %arg13[%c0_17, %c0_18] : memref<64x32xf32, #tpu.memory_space<vmem>>, vector<64x32xf32>
    tpu.vector_store %arg13[%c0_17, %c0_18], %42 {strides = array<i32>} : memref<64x32xf32, #tpu.memory_space<vmem>>, vector<64x32xf32>,
    %48 = vector.extract_strided_slice %38 {offsets = [0, 0], sizes = [64, 8], strides = [1, 1]} : vector<64x32xf32> to vector<64x8xf32>
    %49 = vector.shape_cast %48 : vector<64x8xf32> to vector<4x16x8xf32>
    %50 = vector.extract_strided_slice %46 {offsets = [0, 0], sizes = [64, 8], strides = [1, 1]} : vector<64x32xf32> to vector<64x8xf32>
    %51 = vector.shape_cast %50 : vector<64x8xf32> to vector<4x16x8xf32>
    %c0_19 = arith.constant 0 : index
    %c0_20 = arith.constant 0 : index
    %c0_21 = arith.constant 0 : index
    %c0_22 = arith.constant 0 : index
    %52 = vector.load %arg2[%c0_19, %c0_20, %c0_21, %c0_22] : memref<4x4x16x8xf32, #tpu.memory_space<vmem>>, vector<1x4x16x8xf32>
    %53 = vector.shape_cast %52 : vector<1x4x16x8xf32> to vector<4x16x8xf32>
    "tpu.trace_start"() <{level = 10 : i32, message = "bqd,bkd->bqk"}> : () -> ()
    %cst_23 = arith.constant dense<0.000000e+00> : vector<4x16x16xf32>
    %54 = tpu.matmul %49, %53, %cst_23 {dimension_numbers = #tpu.dot_dimension_numbers<[2], [2], [1], [1], [0, 0, 0, 1, 1, 1], [0], [0]>} : vector<4x16x8xf32>, vector<4x16x8xf32>, vector<4x16x16xf32> -> vector<4x16x16xf32>
    "tpu.trace_stop"() : () -> ()
    %c0_24 = arith.constant 0 : index
    %c0_25 = arith.constant 0 : index
    %c0_26 = arith.constant 0 : index
    %55 = vector.load %arg9[%c0_24, %c0_25, %c0_26] : memref<4x16x16xf32, #tpu.memory_space<vmem>>, vector<1x16x16xf32>
    %56 = vector.shape_cast %55 : vector<1x16x16xf32> to vector<16x16xf32>
    %57 = vector.shape_cast %56 : vector<16x16xf32> to vector<1x16x16xf32>
    %58 = vector.broadcast %57 : vector<1x16x16xf32> to vector<4x16x16xf32>
    %59 = arith.addf %54, %58 : vector<4x16x16xf32>
    %cst_27 = arith.constant dense<0xFF800000> : vector<4x16xf32>
    %60 = vector.multi_reduction <maximumf>, %59, %cst_27 [2] : vector<4x16x16xf32> to vector<4x16xf32>
    %61 = vector.shape_cast %60 : vector<4x16xf32> to vector<4x16x1xf32>
    %62 = vector.broadcast %61 : vector<4x16x1xf32> to vector<4x16x16xf32>
    %63 = arith.subf %59, %62 : vector<4x16x16xf32>
    %64 = math.exp %63 : vector<4x16x16xf32>
    %cst_28 = arith.constant dense<0.000000e+00> : vector<4x16xf32>
    %65 = vector.multi_reduction <add>, %64, %cst_28 [2] : vector<4x16x16xf32> to vector<4x16xf32>
    %66 = vector.shape_cast %65 : vector<4x16xf32> to vector<4x16x1xf32>
    %67 = tpu.reciprocal %66 : vector<4x16x1xf32> -> vector<4x16x1xf32>
    %68 = vector.broadcast %67 : vector<4x16x1xf32> to vector<4x16x16xf32>
    %69 = arith.mulf %64, %68 : vector<4x16x16xf32>
    "tpu.trace_start"() <{level = 10 : i32, message = "bqk,bkd->bqd"}> : () -> ()
    %cst_29 = arith.constant dense<0.000000e+00> : vector<4x16x8xf32>
    %70 = tpu.matmul %69, %51, %cst_29 {dimension_numbers = #tpu.dot_dimension_numbers<[2], [1], [1], [2], [0, 0, 0, 1, 1, 2], [0], [0]>} : vector<4x16x16xf32>, vector<4x16x8xf32>, vector<4x16x8xf32> -> vector<4x16x8xf32>
    "tpu.trace_stop"() : () -> ()
    %71 = vector.shape_cast %70 : vector<4x16x8xf32> to vector<64x8xf32>
    %c0_30 = arith.constant 0 : index
    %c0_31 = arith.constant 0 : index
    %72 = vector.load %arg14[%c0_30, %c0_31] : memref<64x32xf32, #tpu.memory_space<vmem>>, vector<64x8xf32>
    tpu.vector_store %arg14[%c0_30, %c0_31], %71 {strides = array<i32>} : memref<64x32xf32, #tpu.memory_space<vmem>>, vector<64x8xf32>,
    %73 = vector.extract_strided_slice %38 {offsets = [0, 8], sizes = [64, 8], strides = [1, 1]} : vector<64x32xf32> to vector<64x8xf32>
    %74 = vector.shape_cast %73 : vector<64x8xf32> to vector<4x16x8xf32>
    %75 = vector.extract_strided_slice %46 {offsets = [0, 8], sizes = [64, 8], strides = [1, 1]} : vector<64x32xf32> to vector<64x8xf32>
    %76 = vector.shape_cast %75 : vector<64x8xf32> to vector<4x16x8xf32>
    %c1 = arith.constant 1 : index
    %c0_32 = arith.constant 0 : index
    %c0_33 = arith.constant 0 : index
    %c0_34 = arith.constant 0 : index
    %77 = vector.load %arg2[%c1, %c0_32, %c0_33, %c0_34] : memref<4x4x16x8xf32, #tpu.memory_space<vmem>>, vector<1x4x16x8xf32>
    %78 = vector.shape_cast %77 : vector<1x4x16x8xf32> to vector<4x16x8xf32>
    "tpu.trace_start"() <{level = 10 : i32, message = "bqd,bkd->bqk"}> : () -> ()
    %cst_35 = arith.constant dense<0.000000e+00> : vector<4x16x16xf32>
    %79 = tpu.matmul %74, %78, %cst_35 {dimension_numbers = #tpu.dot_dimension_numbers<[2], [2], [1], [1], [0, 0, 0, 1, 1, 1], [0], [0]>} : vector<4x16x8xf32>, vector<4x16x8xf32>, vector<4x16x16xf32> -> vector<4x16x16xf32>
    "tpu.trace_stop"() : () -> ()
    %c1_36 = arith.constant 1 : index
    %c0_37 = arith.constant 0 : index
    %c0_38 = arith.constant 0 : index
    %80 = vector.load %arg9[%c1_36, %c0_37, %c0_38] : memref<4x16x16xf32, #tpu.memory_space<vmem>>, vector<1x16x16xf32>
    %81 = vector.shape_cast %80 : vector<1x16x16xf32> to vector<16x16xf32>
    %82 = vector.shape_cast %81 : vector<16x16xf32> to vector<1x16x16xf32>
    %83 = vector.broadcast %82 : vector<1x16x16xf32> to vector<4x16x16xf32>
    %84 = arith.addf %79, %83 : vector<4x16x16xf32>
    %cst_39 = arith.constant dense<0xFF800000> : vector<4x16xf32>
    %85 = vector.multi_reduction <maximumf>, %84, %cst_39 [2] : vector<4x16x16xf32> to vector<4x16xf32>
    %86 = vector.shape_cast %85 : vector<4x16xf32> to vector<4x16x1xf32>
    %87 = vector.broadcast %86 : vector<4x16x1xf32> to vector<4x16x16xf32>
    %88 = arith.subf %84, %87 : vector<4x16x16xf32>
    %89 = math.exp %88 : vector<4x16x16xf32>
    %cst_40 = arith.constant dense<0.000000e+00> : vector<4x16xf32>
    %90 = vector.multi_reduction <add>, %89, %cst_40 [2] : vector<4x16x16xf32> to vector<4x16xf32>
    %91 = vector.shape_cast %90 : vector<4x16xf32> to vector<4x16x1xf32>
    %92 = tpu.reciprocal %91 : vector<4x16x1xf32> -> vector<4x16x1xf32>
    %93 = vector.broadcast %92 : vector<4x16x1xf32> to vector<4x16x16xf32>
    %94 = arith.mulf %89, %93 : vector<4x16x16xf32>
    "tpu.trace_start"() <{level = 10 : i32, message = "bqk,bkd->bqd"}> : () -> ()
    %cst_41 = arith.constant dense<0.000000e+00> : vector<4x16x8xf32>
    %95 = tpu.matmul %94, %76, %cst_41 {dimension_numbers = #tpu.dot_dimension_numbers<[2], [1], [1], [2], [0, 0, 0, 1, 1, 2], [0], [0]>} : vector<4x16x16xf32>, vector<4x16x8xf32>, vector<4x16x8xf32> -> vector<4x16x8xf32>
    "tpu.trace_stop"() : () -> ()
    %96 = vector.shape_cast %95 : vector<4x16x8xf32> to vector<64x8xf32>
    %c0_42 = arith.constant 0 : index
    %c8 = arith.constant 8 : index
    %97 = vector.load %arg14[%c0_42, %c8] : memref<64x32xf32, #tpu.memory_space<vmem>>, vector<64x8xf32>
    tpu.vector_store %arg14[%c0_42, %c8], %96 {strides = array<i32>} : memref<64x32xf32, #tpu.memory_space<vmem>>, vector<64x8xf32>,
    %98 = vector.extract_strided_slice %38 {offsets = [0, 16], sizes = [64, 8], strides = [1, 1]} : vector<64x32xf32> to vector<64x8xf32>
    %99 = vector.shape_cast %98 : vector<64x8xf32> to vector<4x16x8xf32>
    %100 = vector.extract_strided_slice %46 {offsets = [0, 16], sizes = [64, 8], strides = [1, 1]} : vector<64x32xf32> to vector<64x8xf32>
    %101 = vector.shape_cast %100 : vector<64x8xf32> to vector<4x16x8xf32>
    %c2 = arith.constant 2 : index
    %c0_43 = arith.constant 0 : index
    %c0_44 = arith.constant 0 : index
    %c0_45 = arith.constant 0 : index
    %102 = vector.load %arg2[%c2, %c0_43, %c0_44, %c0_45] : memref<4x4x16x8xf32, #tpu.memory_space<vmem>>, vector<1x4x16x8xf32>
    %103 = vector.shape_cast %102 : vector<1x4x16x8xf32> to vector<4x16x8xf32>
    "tpu.trace_start"() <{level = 10 : i32, message = "bqd,bkd->bqk"}> : () -> ()
    %cst_46 = arith.constant dense<0.000000e+00> : vector<4x16x16xf32>
    %104 = tpu.matmul %99, %103, %cst_46 {dimension_numbers = #tpu.dot_dimension_numbers<[2], [2], [1], [1], [0, 0, 0, 1, 1, 1], [0], [0]>} : vector<4x16x8xf32>, vector<4x16x8xf32>, vector<4x16x16xf32> -> vector<4x16x16xf32>
    "tpu.trace_stop"() : () -> ()
    %c2_47 = arith.constant 2 : index
    %c0_48 = arith.constant 0 : index
    %c0_49 = arith.constant 0 : index
    %105 = vector.load %arg9[%c2_47, %c0_48, %c0_49] : memref<4x16x16xf32, #tpu.memory_space<vmem>>, vector<1x16x16xf32>
    %106 = vector.shape_cast %105 : vector<1x16x16xf32> to vector<16x16xf32>
    %107 = vector.shape_cast %106 : vector<16x16xf32> to vector<1x16x16xf32>
    %108 = vector.broadcast %107 : vector<1x16x16xf32> to vector<4x16x16xf32>
    %109 = arith.addf %104, %108 : vector<4x16x16xf32>
    %cst_50 = arith.constant dense<0xFF800000> : vector<4x16xf32>
    %110 = vector.multi_reduction <maximumf>, %109, %cst_50 [2] : vector<4x16x16xf32> to vector<4x16xf32>
    %111 = vector.shape_cast %110 : vector<4x16xf32> to vector<4x16x1xf32>
    %112 = vector.broadcast %111 : vector<4x16x1xf32> to vector<4x16x16xf32>
    %113 = arith.subf %109, %112 : vector<4x16x16xf32>
    %114 = math.exp %113 : vector<4x16x16xf32>
    %cst_51 = arith.constant dense<0.000000e+00> : vector<4x16xf32>
    %115 = vector.multi_reduction <add>, %114, %cst_51 [2] : vector<4x16x16xf32> to vector<4x16xf32>
    %116 = vector.shape_cast %115 : vector<4x16xf32> to vector<4x16x1xf32>
    %117 = tpu.reciprocal %116 : vector<4x16x1xf32> -> vector<4x16x1xf32>
    %118 = vector.broadcast %117 : vector<4x16x1xf32> to vector<4x16x16xf32>
    %119 = arith.mulf %114, %118 : vector<4x16x16xf32>
    "tpu.trace_start"() <{level = 10 : i32, message = "bqk,bkd->bqd"}> : () -> ()
    %cst_52 = arith.constant dense<0.000000e+00> : vector<4x16x8xf32>
    %120 = tpu.matmul %119, %101, %cst_52 {dimension_numbers = #tpu.dot_dimension_numbers<[2], [1], [1], [2], [0, 0, 0, 1, 1, 2], [0], [0]>} : vector<4x16x16xf32>, vector<4x16x8xf32>, vector<4x16x8xf32> -> vector<4x16x8xf32>
    "tpu.trace_stop"() : () -> ()
    %121 = vector.shape_cast %120 : vector<4x16x8xf32> to vector<64x8xf32>
    %c0_53 = arith.constant 0 : index
    %c16 = arith.constant 16 : index
    %122 = vector.load %arg14[%c0_53, %c16] : memref<64x32xf32, #tpu.memory_space<vmem>>, vector<64x8xf32>
    tpu.vector_store %arg14[%c0_53, %c16], %121 {strides = array<i32>} : memref<64x32xf32, #tpu.memory_space<vmem>>, vector<64x8xf32>,
    %123 = vector.extract_strided_slice %38 {offsets = [0, 24], sizes = [64, 8], strides = [1, 1]} : vector<64x32xf32> to vector<64x8xf32>
    %124 = vector.shape_cast %123 : vector<64x8xf32> to vector<4x16x8xf32>
    %125 = vector.extract_strided_slice %46 {offsets = [0, 24], sizes = [64, 8], strides = [1, 1]} : vector<64x32xf32> to vector<64x8xf32>
    %126 = vector.shape_cast %125 : vector<64x8xf32> to vector<4x16x8xf32>
    %c3 = arith.constant 3 : index
    %c0_54 = arith.constant 0 : index
    %c0_55 = arith.constant 0 : index
    %c0_56 = arith.constant 0 : index
    %127 = vector.load %arg2[%c3, %c0_54, %c0_55, %c0_56] : memref<4x4x16x8xf32, #tpu.memory_space<vmem>>, vector<1x4x16x8xf32>
    %128 = vector.shape_cast %127 : vector<1x4x16x8xf32> to vector<4x16x8xf32>
    "tpu.trace_start"() <{level = 10 : i32, message = "bqd,bkd->bqk"}> : () -> ()
    %cst_57 = arith.constant dense<0.000000e+00> : vector<4x16x16xf32>
    %129 = tpu.matmul %124, %128, %cst_57 {dimension_numbers = #tpu.dot_dimension_numbers<[2], [2], [1], [1], [0, 0, 0, 1, 1, 1], [0], [0]>} : vector<4x16x8xf32>, vector<4x16x8xf32>, vector<4x16x16xf32> -> vector<4x16x16xf32>
    "tpu.trace_stop"() : () -> ()
    %c3_58 = arith.constant 3 : index
    %c0_59 = arith.constant 0 : index
    %c0_60 = arith.constant 0 : index
    %130 = vector.load %arg9[%c3_58, %c0_59, %c0_60] : memref<4x16x16xf32, #tpu.memory_space<vmem>>, vector<1x16x16xf32>
    %131 = vector.shape_cast %130 : vector<1x16x16xf32> to vector<16x16xf32>
    %132 = vector.shape_cast %131 : vector<16x16xf32> to vector<1x16x16xf32>
    %133 = vector.broadcast %132 : vector<1x16x16xf32> to vector<4x16x16xf32>
    %134 = arith.addf %129, %133 : vector<4x16x16xf32>
    %cst_61 = arith.constant dense<0xFF800000> : vector<4x16xf32>
    %135 = vector.multi_reduction <maximumf>, %134, %cst_61 [2] : vector<4x16x16xf32> to vector<4x16xf32>
    %136 = vector.shape_cast %135 : vector<4x16xf32> to vector<4x16x1xf32>
    %137 = vector.broadcast %136 : vector<4x16x1xf32> to vector<4x16x16xf32>
    %138 = arith.subf %134, %137 : vector<4x16x16xf32>
    %139 = math.exp %138 : vector<4x16x16xf32>
    %cst_62 = arith.constant dense<0.000000e+00> : vector<4x16xf32>
    %140 = vector.multi_reduction <add>, %139, %cst_62 [2] : vector<4x16x16xf32> to vector<4x16xf32>
    %141 = vector.shape_cast %140 : vector<4x16xf32> to vector<4x16x1xf32>
    %142 = tpu.reciprocal %141 : vector<4x16x1xf32> -> vector<4x16x1xf32>
    %143 = vector.broadcast %142 : vector<4x16x1xf32> to vector<4x16x16xf32>
    %144 = arith.mulf %139, %143 : vector<4x16x16xf32>
    "tpu.trace_start"() <{level = 10 : i32, message = "bqk,bkd->bqd"}> : () -> ()
    %cst_63 = arith.constant dense<0.000000e+00> : vector<4x16x8xf32>
    %145 = tpu.matmul %144, %126, %cst_63 {dimension_numbers = #tpu.dot_dimension_numbers<[2], [1], [1], [2], [0, 0, 0, 1, 1, 2], [0], [0]>} : vector<4x16x16xf32>, vector<4x16x8xf32>, vector<4x16x8xf32> -> vector<4x16x8xf32>
    "tpu.trace_stop"() : () -> ()
    %146 = vector.shape_cast %145 : vector<4x16x8xf32> to vector<64x8xf32>
    %c0_64 = arith.constant 0 : index
    %c24 = arith.constant 24 : index
    %147 = vector.load %arg14[%c0_64, %c24] : memref<64x32xf32, #tpu.memory_space<vmem>>, vector<64x8xf32>
    tpu.vector_store %arg14[%c0_64, %c24], %146 {strides = array<i32>} : memref<64x32xf32, #tpu.memory_space<vmem>>, vector<64x8xf32>,
    %c0_65 = arith.constant 0 : index
    %c0_66 = arith.constant 0 : index
    %148 = vector.load %arg14[%c0_65, %c0_66] : memref<64x32xf32, #tpu.memory_space<vmem>>, vector<64x32xf32>
    %c0_67 = arith.constant 0 : index
    %c0_68 = arith.constant 0 : index
    %149 = vector.load %arg8[%c0_67, %c0_68] : memref<32x32xf32, #tpu.memory_space<vmem>>, vector<32x32xf32>
    %cst_69 = arith.constant dense<0.000000e+00> : vector<64x32xf32>
    %150 = tpu.matmul %148, %149, %cst_69 {dimension_numbers = #tpu.dot_dimension_numbers<[1], [0], [0], [1], [0, 0, 1, 1], [], []>} : vector<64x32xf32>, vector<32x32xf32>, vector<64x32xf32> -> vector<64x32xf32>
    %151 = vector.broadcast %7 : vector<1x32xf32> to vector<64x32xf32>
    %152 = arith.addf %150, %151 : vector<64x32xf32>
    %153 = arith.addf %0, %152 : vector<64x32xf32>
    %cst_70 = arith.constant dense<0.000000e+00> : vector<64xf32>
    %154 = vector.multi_reduction <add>, %153, %cst_70 [1] : vector<64x32xf32> to vector<64xf32>
    %155 = vector.shape_cast %154 : vector<64xf32> to vector<64x1xf32>
    %cst_71 = arith.constant 3.200000e+01 : f32
    %156 = vector.broadcast %cst_71 : f32 to vector<64x1xf32>
    %157 = arith.divf %155, %156 : vector<64x1xf32>
    %158 = vector.broadcast %157 : vector<64x1xf32> to vector<64x32xf32>
    %159 = arith.subf %153, %158 : vector<64x32xf32>
    %160 = arith.mulf %159, %159 : vector<64x32xf32>
    %cst_72 = arith.constant dense<0.000000e+00> : vector<64xf32>
    %161 = vector.multi_reduction <add>, %160, %cst_72 [1] : vector<64x32xf32> to vector<64xf32>
    %162 = vector.shape_cast %161 : vector<64xf32> to vector<64x1xf32>
    %cst_73 = arith.constant 3.200000e+01 : f32
    %163 = vector.broadcast %cst_73 : f32 to vector<64x1xf32>
    %164 = arith.divf %162, %163 : vector<64x1xf32>
    %165 = vector.broadcast %157 : vector<64x1xf32> to vector<64x32xf32>
    %166 = arith.subf %153, %165 : vector<64x32xf32>
    %cst_74 = arith.constant 9.99999974E-6 : f32
    %167 = vector.broadcast %cst_74 : f32 to vector<64x1xf32>
    %168 = arith.addf %164, %167 : vector<64x1xf32>
    %169 = math.rsqrt %168 : vector<64x1xf32>
    %170 = vector.broadcast %169 : vector<64x1xf32> to vector<64x32xf32>
    %171 = arith.mulf %166, %170 : vector<64x32xf32>
    %172 = vector.broadcast %8 : vector<1x32xf32> to vector<64x32xf32>
    %173 = arith.mulf %171, %172 : vector<64x32xf32>
    %174 = vector.broadcast %9 : vector<1x32xf32> to vector<64x32xf32>
    %175 = arith.addf %173, %174 : vector<64x32xf32>
    %c0_75 = arith.constant 0 : index
    %c0_76 = arith.constant 0 : index
    %176 = vector.load %arg10[%c0_75, %c0_76] : memref<32x128xf32, #tpu.memory_space<vmem>>, vector<32x128xf32>
    %cst_77 = arith.constant dense<0.000000e+00> : vector<64x128xf32>
    %177 = tpu.matmul %175, %176, %cst_77 {dimension_numbers = #tpu.dot_dimension_numbers<[1], [0], [0], [1], [0, 0, 1, 1], [], []>} : vector<64x32xf32>, vector<32x128xf32>, vector<64x128xf32> -> vector<64x128xf32>
    %c0_78 = arith.constant 0 : index
    %c0_79 = arith.constant 0 : index
    %178 = vector.load %arg4[%c0_78, %c0_79] : memref<1x128xf32, #tpu.memory_space<vmem>>, vector<1x128xf32>
    %179 = vector.broadcast %178 : vector<1x128xf32> to vector<64x128xf32>
    %180 = arith.addf %177, %179 : vector<64x128xf32>
    %cst_80 = arith.constant 5.000000e-01 : f32
    %181 = vector.broadcast %cst_80 : f32 to vector<64x128xf32>
    %182 = arith.mulf %181, %180 : vector<64x128xf32>
    %cst_81 = arith.constant 0.707106769 : f32
    %183 = vector.broadcast %cst_81 : f32 to vector<64x128xf32>
    %184 = arith.mulf %180, %183 : vector<64x128xf32>
    %185 = math.absf %184 : vector<64x128xf32>
    %cst_82 = arith.constant 0.327591091 : f32
    %186 = vector.broadcast %cst_82 : f32 to vector<64x128xf32>
    %187 = arith.mulf %186, %185 : vector<64x128xf32>
    %cst_83 = arith.constant 1.000000e+00 : f32
    %188 = vector.broadcast %cst_83 : f32 to vector<64x128xf32>
    %189 = arith.addf %188, %187 : vector<64x128xf32>
    %cst_84 = arith.constant 1.000000e+00 : f32
    %190 = vector.broadcast %cst_84 : f32 to vector<64x128xf32>
    %191 = arith.divf %190, %189 : vector<64x128xf32>
    %cst_85 = arith.constant 1.06140542 : f32
    %192 = vector.broadcast %cst_85 : f32 to vector<64x128xf32>
    %193 = arith.mulf %192, %191 : vector<64x128xf32>
    %cst_86 = arith.constant 1.45315206 : f32
    %194 = vector.broadcast %cst_86 : f32 to vector<64x128xf32>
    %195 = arith.subf %193, %194 : vector<64x128xf32>
    %196 = arith.mulf %195, %191 : vector<64x128xf32>
    %cst_87 = arith.constant 1.42141378 : f32
    %197 = vector.broadcast %cst_87 : f32 to vector<64x128xf32>
    %198 = arith.addf %196, %197 : vector<64x128xf32>
    %199 = arith.mulf %198, %191 : vector<64x128xf32>
    %cst_88 = arith.constant 0.284496725 : f32
    %200 = vector.broadcast %cst_88 : f32 to vector<64x128xf32>
    %201 = arith.subf %199, %200 : vector<64x128xf32>
    %202 = arith.mulf %201, %191 : vector<64x128xf32>
    %cst_89 = arith.constant 0.254829586 : f32
    %203 = vector.broadcast %cst_89 : f32 to vector<64x128xf32>
    %204 = arith.addf %202, %203 : vector<64x128xf32>
    %205 = arith.mulf %204, %191 : vector<64x128xf32>
    %cst_90 = arith.constant 0.000000e+00 : f32
    %206 = vector.broadcast %cst_90 : f32 to vector<64x128xf32>
    %207 = arith.subf %206, %185 : vector<64x128xf32>
    %208 = arith.mulf %207, %185 : vector<64x128xf32>
    %209 = math.exp %208 : vector<64x128xf32>
    %210 = arith.mulf %205, %209 : vector<64x128xf32>
    %cst_91 = arith.constant 1.000000e+00 : f32
    %211 = vector.broadcast %cst_91 : f32 to vector<64x128xf32>
    %212 = arith.subf %211, %210 : vector<64x128xf32>
    %cst_92 = arith.constant 0.000000e+00 : f32
    %213 = vector.broadcast %cst_92 : f32 to vector<64x128xf32>
    %214 = arith.cmpf oge, %184, %213 : vector<64x128xf32>
    %cst_93 = arith.constant 0.000000e+00 : f32
    %215 = vector.broadcast %cst_93 : f32 to vector<64x128xf32>
    %216 = arith.subf %215, %212 : vector<64x128xf32>
    %217 = arith.select %214, %212, %216 : vector<64x128xi1>, vector<64x128xf32>
    %cst_94 = arith.constant 1.000000e+00 : f32
    %218 = vector.broadcast %cst_94 : f32 to vector<64x128xf32>
    %219 = arith.addf %218, %217 : vector<64x128xf32>
    %220 = arith.mulf %182, %219 : vector<64x128xf32>
    %c0_95 = arith.constant 0 : index
    %c0_96 = arith.constant 0 : index
    %221 = vector.load %arg11[%c0_95, %c0_96] : memref<128x32xf32, #tpu.memory_space<vmem>>, vector<128x32xf32>
    %cst_97 = arith.constant dense<0.000000e+00> : vector<64x32xf32>
    %222 = tpu.matmul %220, %221, %cst_97 {dimension_numbers = #tpu.dot_dimension_numbers<[1], [0], [0], [1], [0, 0, 1, 1], [], []>} : vector<64x128xf32>, vector<128x32xf32>, vector<64x32xf32> -> vector<64x32xf32>
    %223 = vector.broadcast %10 : vector<1x32xf32> to vector<64x32xf32>
    %224 = arith.addf %222, %223 : vector<64x32xf32>
    %225 = arith.addf %153, %224 : vector<64x32xf32>
    %c0_98 = arith.constant 0 : index
    %c0_99 = arith.constant 0 : index
    %226 = vector.load %arg12[%c0_98, %c0_99] : memref<64x32xf32, #tpu.memory_space<vmem>>, vector<64x32xf32>
    tpu.vector_store %arg12[%c0_98, %c0_99], %225 {strides = array<i32>} : memref<64x32xf32, #tpu.memory_space<vmem>>, vector<64x32xf32>,
    return
  }
  func.func @transform_0(%arg0: i32) -> (i32, i32) {
    %c0_i32 = arith.constant 0 : i32
    %c0_i32_0 = arith.constant 0 : i32
    return %arg0, %c0_i32 : i32, i32
  }
  func.func @transform_1(%arg0: i32) -> (i32, i32, i32, i32) {
    %c0_i32 = arith.constant 0 : i32
    %c0_i32_0 = arith.constant 0 : i32
    %c0_i32_1 = arith.constant 0 : i32
    %c0_i32_2 = arith.constant 0 : i32
    return %c0_i32, %arg0, %c0_i32_0, %c0_i32_1 : i32, i32, i32, i32
  }
  func.func @transform_2(%arg0: i32) -> (i32, i32) {
    %c0_i32 = arith.constant 0 : i32
    %c0_i32_0 = arith.constant 0 : i32
    %c0_i32_1 = arith.constant 0 : i32
    return %c0_i32, %c0_i32_0 : i32, i32
  }
  func.func @transform_3(%arg0: i32) -> (i32, i32) {
    %c0_i32 = arith.constant 0 : i32
    %c0_i32_0 = arith.constant 0 : i32
    %c0_i32_1 = arith.constant 0 : i32
    return %c0_i32, %c0_i32_0 : i32, i32
  }
  func.func @transform_4(%arg0: i32) -> (i32, i32) {
    %c0_i32 = arith.constant 0 : i32
    %c0_i32_0 = arith.constant 0 : i32
    %c0_i32_1 = arith.constant 0 : i32
    return %c0_i32, %c0_i32_0 : i32, i32
  }
  func.func @transform_5(%arg0: i32) -> (i32, i32) {
    %c0_i32 = arith.constant 0 : i32
    %c0_i32_0 = arith.constant 0 : i32
    %c0_i32_1 = arith.constant 0 : i32
    return %c0_i32, %c0_i32_0 : i32, i32
  }
  func.func @transform_6(%arg0: i32) -> (i32, i32) {
    %c0_i32 = arith.constant 0 : i32
    %c0_i32_0 = arith.constant 0 : i32
    %c0_i32_1 = arith.constant 0 : i32
    return %c0_i32, %c0_i32_0 : i32, i32
  }
  func.func @transform_7(%arg0: i32) -> (i32, i32) {
    %c0_i32 = arith.constant 0 : i32
    %c0_i32_0 = arith.constant 0 : i32
    %c0_i32_1 = arith.constant 0 : i32
    return %c0_i32, %c0_i32_0 : i32, i32
  }
  func.func @transform_8(%arg0: i32) -> (i32, i32, i32) {
    %c0_i32 = arith.constant 0 : i32
    %c0_i32_0 = arith.constant 0 : i32
    %c0_i32_1 = arith.constant 0 : i32
    %c0_i32_2 = arith.constant 0 : i32
    return %c0_i32, %c0_i32_0, %c0_i32_1 : i32, i32, i32
  }
  func.func @transform_9(%arg0: i32) -> (i32, i32) {
    %c0_i32 = arith.constant 0 : i32
    %c0_i32_0 = arith.constant 0 : i32
    %c0_i32_1 = arith.constant 0 : i32
    return %c0_i32, %c0_i32_0 : i32, i32
  }
  func.func @transform_10(%arg0: i32) -> (i32, i32) {
    %c0_i32 = arith.constant 0 : i32
    %c0_i32_0 = arith.constant 0 : i32
    %c0_i32_1 = arith.constant 0 : i32
    return %c0_i32, %c0_i32_0 : i32, i32
  }
  func.func @transform_11(%arg0: i32) -> (i32, i32) {
    %c0_i32 = arith.constant 0 : i32
    %c0_i32_0 = arith.constant 0 : i32
    return %arg0, %c0_i32 : i32, i32
  }
  func.func @transform_12(%arg0: i32) -> (i32, i32) {
    %c0_i32 = arith.constant 0 : i32
    %c0_i32_0 = arith.constant 0 : i32
    return %arg0, %c0_i32 : i32, i32
  }
}

</mosaic_0001>

<llo_original>
// kernel: swin_transformer_block_three.1
$region0: #{swin_transformer_block_three.1}
  #allocation0 [shape = 'u32[]', space=smem, size = 0x4, offset = 0x4, fixed_abs, tag = 'smem constant byte address 0x4 - core index']
  #allocation1 [shape = 'u32[144,128]{1,0:T(1,128)}', space=vmem, size = 0x12000, scoped, tag = 'internal scratch']
  #allocation2 [shape = 'f32[64,32]{1,0:T(8,128)}', space=vmem, size = 0x8000, scoped, tag = 'scratch operand']
  %s0 = inlined_call_operand.vmem [shape: f32[128,32], index: 0, kind: input, shape index: {}]
  %s1 = inlined_call_operand.vmem [shape: f32[4,8,16,8], index: 1, kind: input, shape index: {}]
  %s2 = inlined_call_operand.vmem [shape: f32[9,32], index: 2, kind: input, shape index: {}]
  %s3 = inlined_call_operand.vmem [shape: f32[1,128], index: 3, kind: input, shape index: {}]
  %s4 = inlined_call_operand.vmem [shape: f32[32,32], index: 4, kind: input, shape index: {}]
  %s5 = inlined_call_operand.vmem [shape: f32[32,32], index: 5, kind: input, shape index: {}]
  %s6 = inlined_call_operand.vmem [shape: f32[32,32], index: 6, kind: input, shape index: {}]
  %s7 = inlined_call_operand.vmem [shape: f32[32,32], index: 7, kind: input, shape index: {}]
  %s8 = inlined_call_operand.vmem [shape: f32[4,16,16], index: 8, kind: input, shape index: {}]
  %s9 = inlined_call_operand.vmem [shape: f32[32,128], index: 9, kind: input, shape index: {}]
  %s10 = inlined_call_operand.vmem [shape: f32[128,32], index: 10, kind: input, shape index: {}]
  %s11 = inlined_call_operand.vmem [shape: f32[128,32], index: 11, kind: output, shape index: {0}]
  %s12 = inlined_call_operand.vmem [shape: f32[128,32], index: 12, kind: output, shape index: {1}]
  %13 = xla_tuple %s11, %s12
  %s14 = sld [smem:[#allocation0]]
  $region123: #{swin_transformer_block_three.1} parent=0
    _
  %s16 = ssub.s32 1, %s14
  %s17 = scalar_select 0, %s16, %s14
  $region1: #{swin_transformer_block_three.1} parent=0
    #allocation3 [shape = 'u8[262144]{0}', space=vmem, size = 0x40000, scoped, tag = 'input window, operand 1']
    loop: start=0, step=1, limit=4
    $region2: #{swin_transformer_block_three.1} parent=1 // loop_pre_header
      _
    $region3: #{swin_transformer_block_three.1} parent=1 // loop_header
      %s19 = sphi 0, %s23
      %p20 = scmp.ge.s32.totalorder %s19, 4
      %s29 = sphi 0, %s31
      %s32 = sphi 0, %s29
      %s33 = sphi 0, %s32
      %s49 = sphi 0, %s33
      %s55 = sphi 0, %s57
      %s58 = sphi 0, %s55
      %s59 = sphi 0, %s58
      %s75 = sphi 0, %s59
      %s79 = sphi 0, %s79
      %s81 = sphi 0, %s79
      %s82 = sphi 0, %s81
      %s96 = sphi 0, %s82
      %s100 = sphi 0, %s100
      %s102 = sphi 0, %s100
      %s103 = sphi 0, %s102
      %s117 = sphi 0, %s103
      %s121 = sphi 0, %s121
      %s123 = sphi 0, %s121
      %s124 = sphi 0, %s123
      %s138 = sphi 0, %s124
      %s142 = sphi 0, %s142
      %s144 = sphi 0, %s142
      %s145 = sphi 0, %s144
      %s159 = sphi 0, %s145
      %s163 = sphi 0, %s163
      %s165 = sphi 0, %s163
      %s166 = sphi 0, %s165
      %s180 = sphi 0, %s166
      %s184 = sphi 0, %s184
      %s186 = sphi 0, %s184
      %s187 = sphi 0, %s186
      %s201 = sphi 0, %s187
      %s205 = sphi 0, %s205
      %s207 = sphi 0, %s205
      %s208 = sphi 0, %s207
      %s222 = sphi 0, %s208
      %s226 = sphi 0, %s226
      %s228 = sphi 0, %s226
      %s229 = sphi 0, %s228
      %s243 = sphi 0, %s229
      %s247 = sphi 0, %s247
      %s249 = sphi 0, %s247
      %s250 = sphi 0, %s249
      %s264 = sphi 0, %s250
      %s270 = sphi 0, %s272
      %s273 = sphi 0, %s270
      %s274 = sphi 0, %s273
      %s290 = sphi 0, %s274
      %s296 = sphi 0, %s298
      %s299 = sphi 0, %s296
      %s300 = sphi 0, %s299
      %s316 = sphi 0, %s300
    $region4: #{swin_transformer_block_three.1} parent=1 // loop_header_branch
      %22 = sbr.rel (%p20) target = $region8
    $region5: #{swin_transformer_block_three.1} parent=1 // loop_body
      %s24 = ssub.s32 %s19, 1
      %s25 = ssub.s32 %s19, 2
      %s26 = sadd.s32 %s19, 1
      %s27 = ssub.s32 %s19, %s26
      %p28 = scmp.eq.s32.totalorder %s27, 0
      %s30 = sadd.s32 %s29, 1
      %s31 = scalar_select %p28, %s29, %s30
      %p34 = pneg %p28
      %p35 = scmp.eq.s32.totalorder %s19, 1
      %p36 = por %p34, %p35
      %p37 = scmp.ne.s32.totalorder %s29, %s32
      %p38 = scmp.eq.s32.totalorder %s19, 0
      %p39 = por %p37, %p38
      %p40 = scmp.ne.s32.totalorder %s29, %s32
      %p41 = scmp.eq.s32.totalorder %s24, 1
      %p42 = por %p40, %p41
      %p43 = scmp.ne.s32.totalorder %s32, %s33
      %p44 = scmp.eq.s32.totalorder %s24, 0
      %p45 = por %p43, %p44
      %p46 = scmp.ne.s32.totalorder %s32, %s33
      %p47 = scmp.eq.s32.totalorder %s25, 1
      %p48 = por %p46, %p47
      %p50 = scmp.ne.s32.totalorder %s33, %s49
      %p51 = scmp.eq.s32.totalorder %s25, 0
      %p52 = por %p50, %p51
      %s53 = ssub.s32 %s19, %s26
      %p54 = scmp.eq.s32.totalorder %s53, 0
      %s56 = sadd.s32 %s55, 1
      %s57 = scalar_select %p54, %s55, %s56
      %p60 = pneg %p54
      %p61 = scmp.eq.s32.totalorder %s19, 1
      %p62 = por %p60, %p61
      %p63 = scmp.ne.s32.totalorder %s55, %s58
      %p64 = scmp.eq.s32.totalorder %s19, 0
      %p65 = por %p63, %p64
      %p66 = scmp.ne.s32.totalorder %s55, %s58
      %p67 = scmp.eq.s32.totalorder %s24, 1
      %p68 = por %p66, %p67
      %p69 = scmp.ne.s32.totalorder %s58, %s59
      %p70 = scmp.eq.s32.totalorder %s24, 0
      %p71 = por %p69, %p70
      %p72 = scmp.ne.s32.totalorder %s58, %s59
      %p73 = scmp.eq.s32.totalorder %s25, 1
      %p74 = por %p72, %p73
      %p76 = scmp.ne.s32.totalorder %s59, %s75
      %p77 = scmp.eq.s32.totalorder %s25, 0
      %p78 = por %p76, %p77
      %s80 = sadd.s32 %s79, 1
      %p83 = scmp.eq.s32.totalorder %s19, 1
      %p84 = scmp.ne.s32.totalorder %s79, %s81
      %p85 = scmp.eq.s32.totalorder %s19, 0
      %p86 = por %p84, %p85
      %p87 = scmp.ne.s32.totalorder %s79, %s81
      %p88 = scmp.eq.s32.totalorder %s24, 1
      %p89 = por %p87, %p88
      %p90 = scmp.ne.s32.totalorder %s81, %s82
      %p91 = scmp.eq.s32.totalorder %s24, 0
      %p92 = por %p90, %p91
      %p93 = scmp.ne.s32.totalorder %s81, %s82
      %p94 = scmp.eq.s32.totalorder %s25, 1
      %p95 = por %p93, %p94
      %p97 = scmp.ne.s32.totalorder %s82, %s96
      %p98 = scmp.eq.s32.totalorder %s25, 0
      %p99 = por %p97, %p98
      %s101 = sadd.s32 %s100, 1
      %p104 = scmp.eq.s32.totalorder %s19, 1
      %p105 = scmp.ne.s32.totalorder %s100, %s102
      %p106 = scmp.eq.s32.totalorder %s19, 0
      %p107 = por %p105, %p106
      %p108 = scmp.ne.s32.totalorder %s100, %s102
      %p109 = scmp.eq.s32.totalorder %s24, 1
      %p110 = por %p108, %p109
      %p111 = scmp.ne.s32.totalorder %s102, %s103
      %p112 = scmp.eq.s32.totalorder %s24, 0
      %p113 = por %p111, %p112
      %p114 = scmp.ne.s32.totalorder %s102, %s103
      %p115 = scmp.eq.s32.totalorder %s25, 1
      %p116 = por %p114, %p115
      %p118 = scmp.ne.s32.totalorder %s103, %s117
      %p119 = scmp.eq.s32.totalorder %s25, 0
      %p120 = por %p118, %p119
      %s122 = sadd.s32 %s121, 1
      %p125 = scmp.eq.s32.totalorder %s19, 1
      %p126 = scmp.ne.s32.totalorder %s121, %s123
      %p127 = scmp.eq.s32.totalorder %s19, 0
      %p128 = por %p126, %p127
      %p129 = scmp.ne.s32.totalorder %s121, %s123
      %p130 = scmp.eq.s32.totalorder %s24, 1
      %p131 = por %p129, %p130
      %p132 = scmp.ne.s32.totalorder %s123, %s124
      %p133 = scmp.eq.s32.totalorder %s24, 0
      %p134 = por %p132, %p133
      %p135 = scmp.ne.s32.totalorder %s123, %s124
      %p136 = scmp.eq.s32.totalorder %s25, 1
      %p137 = por %p135, %p136
      %p139 = scmp.ne.s32.totalorder %s124, %s138
      %p140 = scmp.eq.s32.totalorder %s25, 0
      %p141 = por %p139, %p140
      %s143 = sadd.s32 %s142, 1
      %p146 = scmp.eq.s32.totalorder %s19, 1
      %p147 = scmp.ne.s32.totalorder %s142, %s144
      %p148 = scmp.eq.s32.totalorder %s19, 0
      %p149 = por %p147, %p148
      %p150 = scmp.ne.s32.totalorder %s142, %s144
      %p151 = scmp.eq.s32.totalorder %s24, 1
      %p152 = por %p150, %p151
      %p153 = scmp.ne.s32.totalorder %s144, %s145
      %p154 = scmp.eq.s32.totalorder %s24, 0
      %p155 = por %p153, %p154
      %p156 = scmp.ne.s32.totalorder %s144, %s145
      %p157 = scmp.eq.s32.totalorder %s25, 1
      %p158 = por %p156, %p157
      %p160 = scmp.ne.s32.totalorder %s145, %s159
      %p161 = scmp.eq.s32.totalorder %s25, 0
      %p162 = por %p160, %p161
      %s164 = sadd.s32 %s163, 1
      %p167 = scmp.eq.s32.totalorder %s19, 1
      %p168 = scmp.ne.s32.totalorder %s163, %s165
      %p169 = scmp.eq.s32.totalorder %s19, 0
      %p170 = por %p168, %p169
      %p171 = scmp.ne.s32.totalorder %s163, %s165
      %p172 = scmp.eq.s32.totalorder %s24, 1
      %p173 = por %p171, %p172
      %p174 = scmp.ne.s32.totalorder %s165, %s166
      %p175 = scmp.eq.s32.totalorder %s24, 0
      %p176 = por %p174, %p175
      %p177 = scmp.ne.s32.totalorder %s165, %s166
      %p178 = scmp.eq.s32.totalorder %s25, 1
      %p179 = por %p177, %p178
      %p181 = scmp.ne.s32.totalorder %s166, %s180
      %p182 = scmp.eq.s32.totalorder %s25, 0
      %p183 = por %p181, %p182
      %s185 = sadd.s32 %s184, 1
      %p188 = scmp.eq.s32.totalorder %s19, 1
      %p189 = scmp.ne.s32.totalorder %s184, %s186
      %p190 = scmp.eq.s32.totalorder %s19, 0
      %p191 = por %p189, %p190
      %p192 = scmp.ne.s32.totalorder %s184, %s186
      %p193 = scmp.eq.s32.totalorder %s24, 1
      %p194 = por %p192, %p193
      %p195 = scmp.ne.s32.totalorder %s186, %s187
      %p196 = scmp.eq.s32.totalorder %s24, 0
      %p197 = por %p195, %p196
      %p198 = scmp.ne.s32.totalorder %s186, %s187
      %p199 = scmp.eq.s32.totalorder %s25, 1
      %p200 = por %p198, %p199
      %p202 = scmp.ne.s32.totalorder %s187, %s201
      %p203 = scmp.eq.s32.totalorder %s25, 0
      %p204 = por %p202, %p203
      %s206 = sadd.s32 %s205, 1
      %p209 = scmp.eq.s32.totalorder %s19, 1
      %p210 = scmp.ne.s32.totalorder %s205, %s207
      %p211 = scmp.eq.s32.totalorder %s19, 0
      %p212 = por %p210, %p211
      %p213 = scmp.ne.s32.totalorder %s205, %s207
      %p214 = scmp.eq.s32.totalorder %s24, 1
      %p215 = por %p213, %p214
      %p216 = scmp.ne.s32.totalorder %s207, %s208
      %p217 = scmp.eq.s32.totalorder %s24, 0
      %p218 = por %p216, %p217
      %p219 = scmp.ne.s32.totalorder %s207, %s208
      %p220 = scmp.eq.s32.totalorder %s25, 1
      %p221 = por %p219, %p220
      %p223 = scmp.ne.s32.totalorder %s208, %s222
      %p224 = scmp.eq.s32.totalorder %s25, 0
      %p225 = por %p223, %p224
      %s227 = sadd.s32 %s226, 1
      %p230 = scmp.eq.s32.totalorder %s19, 1
      %p231 = scmp.ne.s32.totalorder %s226, %s228
      %p232 = scmp.eq.s32.totalorder %s19, 0
      %p233 = por %p231, %p232
      %p234 = scmp.ne.s32.totalorder %s226, %s228
      %p235 = scmp.eq.s32.totalorder %s24, 1
      %p236 = por %p234, %p235
      %p237 = scmp.ne.s32.totalorder %s228, %s229
      %p238 = scmp.eq.s32.totalorder %s24, 0
      %p239 = por %p237, %p238
      %p240 = scmp.ne.s32.totalorder %s228, %s229
      %p241 = scmp.eq.s32.totalorder %s25, 1
      %p242 = por %p240, %p241
      %p244 = scmp.ne.s32.totalorder %s229, %s243
      %p245 = scmp.eq.s32.totalorder %s25, 0
      %p246 = por %p244, %p245
      %s248 = sadd.s32 %s247, 1
      %p251 = scmp.eq.s32.totalorder %s19, 1
      %p252 = scmp.ne.s32.totalorder %s247, %s249
      %p253 = scmp.eq.s32.totalorder %s19, 0
      %p254 = por %p252, %p253
      %p255 = scmp.ne.s32.totalorder %s247, %s249
      %p256 = scmp.eq.s32.totalorder %s24, 1
      %p257 = por %p255, %p256
      %p258 = scmp.ne.s32.totalorder %s249, %s250
      %p259 = scmp.eq.s32.totalorder %s24, 0
      %p260 = por %p258, %p259
      %p261 = scmp.ne.s32.totalorder %s249, %s250
      %p262 = scmp.eq.s32.totalorder %s25, 1
      %p263 = por %p261, %p262
      %p265 = scmp.ne.s32.totalorder %s250, %s264
      %p266 = scmp.eq.s32.totalorder %s25, 0
      %p267 = por %p265, %p266
      %s268 = ssub.s32 %s19, %s26
      %p269 = scmp.eq.s32.totalorder %s268, 0
      %s271 = sadd.s32 %s270, 1
      %s272 = scalar_select %p269, %s270, %s271
      %p275 = pneg %p269
      %p276 = scmp.eq.s32.totalorder %s19, 1
      %p277 = por %p275, %p276
      %p278 = scmp.ne.s32.totalorder %s270, %s273
      %p279 = scmp.eq.s32.totalorder %s19, 0
      %p280 = por %p278, %p279
      %p281 = scmp.ne.s32.totalorder %s270, %s273
      %p282 = scmp.eq.s32.totalorder %s24, 1
      %p283 = por %p281, %p282
      %p284 = scmp.ne.s32.totalorder %s273, %s274
      %p285 = scmp.eq.s32.totalorder %s24, 0
      %p286 = por %p284, %p285
      %p287 = scmp.ne.s32.totalorder %s273, %s274
      %p288 = scmp.eq.s32.totalorder %s25, 1
      %p289 = por %p287, %p288
      %p291 = scmp.ne.s32.totalorder %s274, %s290
      %p292 = scmp.eq.s32.totalorder %s25, 0
      %p293 = por %p291, %p292
      %s294 = ssub.s32 %s19, %s26
      %p295 = scmp.eq.s32.totalorder %s294, 0
      %s297 = sadd.s32 %s296, 1
      %s298 = scalar_select %p295, %s296, %s297
      %p301 = pneg %p295
      %p302 = scmp.eq.s32.totalorder %s19, 1
      %p303 = por %p301, %p302
      %p304 = scmp.ne.s32.totalorder %s296, %s299
      %p305 = scmp.eq.s32.totalorder %s19, 0
      %p306 = por %p304, %p305
      %p307 = scmp.ne.s32.totalorder %s296, %s299
      %p308 = scmp.eq.s32.totalorder %s24, 1
      %p309 = por %p307, %p308
      %p310 = scmp.ne.s32.totalorder %s299, %s300
      %p311 = scmp.eq.s32.totalorder %s24, 0
      %p312 = por %p310, %p311
      %p313 = scmp.ne.s32.totalorder %s299, %s300
      %p314 = scmp.eq.s32.totalorder %s25, 1
      %p315 = por %p313, %p314
      %p317 = scmp.ne.s32.totalorder %s300, %s316
      %p318 = scmp.eq.s32.totalorder %s25, 0
      %p319 = por %p317, %p318
      %p320 = scmp.le.s32.totalorder 1, %s19
      %p321 = scmp.lt.s32.totalorder %s19, 3
      %p322 = pnand %p320, %p321
      %p323 = pneg %p322
      // Predicated region
      $region9: #{swin_transformer_block_three.1} parent=5 // pred_check
        _
      $region10: #{swin_transformer_block_three.1} parent=5 // pred_check_branch
        %325 = sbr.rel (%p322) target = $region12
      $region11: #{swin_transformer_block_three.1} parent=5 // pred_region
        %s326 = ssub.s32 %s19, 1
        // Predicated region
        $region13: #{swin_transformer_block_three.1} parent=11 // pred_check
          %p327 = pneg %p92
        $region14: #{swin_transformer_block_three.1} parent=11 // pred_check_branch
          %329 = sbr.rel (%p327) target = $region16
        $region15: #{swin_transformer_block_three.1} parent=11 // pred_region
          _
        $region16: #{swin_transformer_block_three.1} parent=11 // pred_fallthru
          _
        // Predicated region
        $region17: #{swin_transformer_block_three.1} parent=11 // pred_check
          %p330 = pneg %p113
        $region18: #{swin_transformer_block_three.1} parent=11 // pred_check_branch
          %332 = sbr.rel (%p330) target = $region20
        $region19: #{swin_transformer_block_three.1} parent=11 // pred_region
          _
        $region20: #{swin_transformer_block_three.1} parent=11 // pred_fallthru
          _
        // Predicated region
        $region21: #{swin_transformer_block_three.1} parent=11 // pred_check
          %p333 = pneg %p134
        $region22: #{swin_transformer_block_three.1} parent=11 // pred_check_branch
          %335 = sbr.rel (%p333) target = $region24
        $region23: #{swin_transformer_block_three.1} parent=11 // pred_region
          _
        $region24: #{swin_transformer_block_three.1} parent=11 // pred_fallthru
          _
        // Predicated region
        $region25: #{swin_transformer_block_three.1} parent=11 // pred_check
          %p336 = pneg %p155
        $region26: #{swin_transformer_block_three.1} parent=11 // pred_check_branch
          %338 = sbr.rel (%p336) target = $region28
        $region27: #{swin_transformer_block_three.1} parent=11 // pred_region
          _
        $region28: #{swin_transformer_block_three.1} parent=11 // pred_fallthru
          _
        // Predicated region
        $region29: #{swin_transformer_block_three.1} parent=11 // pred_check
          %p339 = pneg %p176
        $region30: #{swin_transformer_block_three.1} parent=11 // pred_check_branch
          %341 = sbr.rel (%p339) target = $region32
        $region31: #{swin_transformer_block_three.1} parent=11 // pred_region
          _
        $region32: #{swin_transformer_block_three.1} parent=11 // pred_fallthru
          _
        // Predicated region
        $region33: #{swin_transformer_block_three.1} parent=11 // pred_check
          %p342 = pneg %p197
        $region34: #{swin_transformer_block_three.1} parent=11 // pred_check_branch
          %344 = sbr.rel (%p342) target = $region36
        $region35: #{swin_transformer_block_three.1} parent=11 // pred_region
          _
        $region36: #{swin_transformer_block_three.1} parent=11 // pred_fallthru
          _
        // Predicated region
        $region37: #{swin_transformer_block_three.1} parent=11 // pred_check
          %p345 = pneg %p218
        $region38: #{swin_transformer_block_three.1} parent=11 // pred_check_branch
          %347 = sbr.rel (%p345) target = $region40
        $region39: #{swin_transformer_block_three.1} parent=11 // pred_region
          _
        $region40: #{swin_transformer_block_three.1} parent=11 // pred_fallthru
          _
        // Predicated region
        $region41: #{swin_transformer_block_three.1} parent=11 // pred_check
          %p348 = pneg %p239
        $region42: #{swin_transformer_block_three.1} parent=11 // pred_check_branch
          %350 = sbr.rel (%p348) target = $region44
        $region43: #{swin_transformer_block_three.1} parent=11 // pred_region
          _
        $region44: #{swin_transformer_block_three.1} parent=11 // pred_fallthru
          _
        // Predicated region
        $region45: #{swin_transformer_block_three.1} parent=11 // pred_check
          %p351 = pneg %p260
        $region46: #{swin_transformer_block_three.1} parent=11 // pred_check_branch
          %353 = sbr.rel (%p351) target = $region48
        $region47: #{swin_transformer_block_three.1} parent=11 // pred_region
          _
        $region48: #{swin_transformer_block_three.1} parent=11 // pred_fallthru
          _
      $region12: #{swin_transformer_block_three.1} parent=5 // pred_fallthru
        _
      %p354 = scmp.lt.s32.totalorder %s19, 2
      // Predicated region
      $region49: #{swin_transformer_block_three.1} parent=5 // pred_check
        %p355 = pneg %p354
      $region50: #{swin_transformer_block_three.1} parent=5 // pred_check_branch
        %357 = sbr.rel (%p355) target = $region52
      $region51: #{swin_transformer_block_three.1} parent=5 // pred_region
        // Predicated region
        $region53: #{swin_transformer_block_three.1} parent=51 // pred_check
          %p358 = pneg %p39
        $region54: #{swin_transformer_block_three.1} parent=51 // pred_check_branch
          %360 = sbr.rel (%p358) target = $region56
        $region55: #{swin_transformer_block_three.1} parent=51 // pred_region
          %s361 = smul.u32 8, %s19
          %p362 = scmp.lt.s32.totalorder %s361, 15
          %s363 = scalar_select %p362, %s361, 15
          %s364 = smul.addr %s363, 8
          %s365 = scalar_lea.vmem %s0, %s364
          %s366 = smul.u32 8, %s19
        $region56: #{swin_transformer_block_three.1} parent=51 // pred_fallthru
          _
        // Predicated region
        $region57: #{swin_transformer_block_three.1} parent=51 // pred_check
          %p367 = pneg %p65
        $region58: #{swin_transformer_block_three.1} parent=51 // pred_check_branch
          %369 = sbr.rel (%p367) target = $region60
        $region59: #{swin_transformer_block_three.1} parent=51 // pred_region
          %s370 = sand.u32 %s55, 1
          %s371 = sand.u32 %s55, 1
          %s372 = smul.addr %s371, 256
          %s373 = scalar_lea.vmem [#allocation3], %s372
          %s374 = smul.u32 4, %s19
          %s375 = smul.addr %s374, 2
          %s376 = smul.addr %s375, 8
          %s377 = scalar_lea.vmem %s1, %s376
          // Predicated region
          $region61: #{swin_transformer_block_three.1} parent=59 // pred_check
            _
          $region62: #{swin_transformer_block_three.1} parent=59 // pred_check_branch
            %379 = sbr.rel (0) target = $region64
          $region63: #{swin_transformer_block_three.1} parent=59 // pred_region
            // Predicated region
            $region65: #{swin_transformer_block_three.1} parent=63 // pred_check
              _
            $region66: #{swin_transformer_block_three.1} parent=63 // pred_check_branch
              %381 = sbr.rel (0) target = $region68
            $region67: #{swin_transformer_block_three.1} parent=63 // pred_region
              // Predicated region
              $region80: #{swin_transformer_block_three.1} parent=67 // pred_check
                _
              $region81: #{swin_transformer_block_three.1} parent=67 // pred_check_branch
                %458 = sbr.rel (0) target = $region83
              $region82: #{swin_transformer_block_three.1} parent=67 // pred_region
                loop: start=0, step=1, limit=1
                $region84: #{swin_transformer_block_three.1} parent=82 // loop_pre_header
                  _
                $region85: #{swin_transformer_block_three.1} parent=82 // loop_header
                  %s460 = sphi 0, %s464
                  %p461 = scmp.ge.s32.totalorder %s460, 1
                  %s465 = sphi %s377, %s377
                  %s466 = sphi %s373, %s373
                $region86: #{swin_transformer_block_three.1} parent=82 // loop_header_branch
                  %463 = sbr.rel (%p461) target = $region90
                $region87: #{swin_transformer_block_three.1} parent=82 // loop_body
                  %v467 = vld [vmem:[%s465] sm:$0xff]
                  %468 = vst [vmem:[%s466] sm:$0xff] %v467
                  %v469 = vld [vmem:[%s465 + $0x8] sm:$0xff]
                  %470 = vst [vmem:[%s466 + $0x8] sm:$0xff] %v469
                  %v471 = vld [vmem:[%s465 + $0x10] sm:$0xff]
                  %472 = vst [vmem:[%s466 + $0x10] sm:$0xff] %v471
                  %v473 = vld [vmem:[%s465 + $0x18] sm:$0xff]
                  %474 = vst [vmem:[%s466 + $0x18] sm:$0xff] %v473
                  %v475 = vld [vmem:[%s465 + $0x20] sm:$0xff]
                  %476 = vst [vmem:[%s466 + $0x20] sm:$0xff] %v475
                  %v477 = vld [vmem:[%s465 + $0x28] sm:$0xff]
                  %478 = vst [vmem:[%s466 + $0x28] sm:$0xff] %v477
                  %v479 = vld [vmem:[%s465 + $0x30] sm:$0xff]
                  %480 = vst [vmem:[%s466 + $0x30] sm:$0xff] %v479
                  %v481 = vld [vmem:[%s465 + $0x38] sm:$0xff]
                  %482 = vst [vmem:[%s466 + $0x38] sm:$0xff] %v481
                  %v483 = vld [vmem:[%s465 + $0x80] sm:$0xff]
                  %484 = vst [vmem:[%s466 + $0x40] sm:$0xff] %v483
                  %v485 = vld [vmem:[%s465 + $0x88] sm:$0xff]
                  %486 = vst [vmem:[%s466 + $0x48] sm:$0xff] %v485
                  %v487 = vld [vmem:[%s465 + $0x90] sm:$0xff]
                  %488 = vst [vmem:[%s466 + $0x50] sm:$0xff] %v487
                  %v489 = vld [vmem:[%s465 + $0x98] sm:$0xff]
                  %490 = vst [vmem:[%s466 + $0x58] sm:$0xff] %v489
                  %v491 = vld [vmem:[%s465 + $0xa0] sm:$0xff]
                  %492 = vst [vmem:[%s466 + $0x60] sm:$0xff] %v491
                  %v493 = vld [vmem:[%s465 + $0xa8] sm:$0xff]
                  %494 = vst [vmem:[%s466 + $0x68] sm:$0xff] %v493
                  %v495 = vld [vmem:[%s465 + $0xb0] sm:$0xff]
                  %496 = vst [vmem:[%s466 + $0x70] sm:$0xff] %v495
                  %v497 = vld [vmem:[%s465 + $0xb8] sm:$0xff]
                  %498 = vst [vmem:[%s466 + $0x78] sm:$0xff] %v497
                  %v499 = vld [vmem:[%s465 + $0x100] sm:$0xff]
                  %500 = vst [vmem:[%s466 + $0x80] sm:$0xff] %v499
                  %v501 = vld [vmem:[%s465 + $0x108] sm:$0xff]
                  %502 = vst [vmem:[%s466 + $0x88] sm:$0xff] %v501
                  %v503 = vld [vmem:[%s465 + $0x110] sm:$0xff]
                  %504 = vst [vmem:[%s466 + $0x90] sm:$0xff] %v503
                  %v505 = vld [vmem:[%s465 + $0x118] sm:$0xff]
                  %506 = vst [vmem:[%s466 + $0x98] sm:$0xff] %v505
                  %v507 = vld [vmem:[%s465 + $0x120] sm:$0xff]
                  %508 = vst [vmem:[%s466 + $0xa0] sm:$0xff] %v507
                  %v509 = vld [vmem:[%s465 + $0x128] sm:$0xff]
                  %510 = vst [vmem:[%s466 + $0xa8] sm:$0xff] %v509
                  %v511 = vld [vmem:[%s465 + $0x130] sm:$0xff]
                  %512 = vst [vmem:[%s466 + $0xb0] sm:$0xff] %v511
                  %v513 = vld [vmem:[%s465 + $0x138] sm:$0xff]
                  %514 = vst [vmem:[%s466 + $0xb8] sm:$0xff] %v513
                  %v515 = vld [vmem:[%s465 + $0x180] sm:$0xff]
                  %516 = vst [vmem:[%s466 + $0xc0] sm:$0xff] %v515
                  %v517 = vld [vmem:[%s465 + $0x188] sm:$0xff]
                  %518 = vst [vmem:[%s466 + $0xc8] sm:$0xff] %v517
                  %v519 = vld [vmem:[%s465 + $0x190] sm:$0xff]
                  %520 = vst [vmem:[%s466 + $0xd0] sm:$0xff] %v519
                  %v521 = vld [vmem:[%s465 + $0x198] sm:$0xff]
                  %522 = vst [vmem:[%s466 + $0xd8] sm:$0xff] %v521
                  %v523 = vld [vmem:[%s465 + $0x1a0] sm:$0xff]
                  %524 = vst [vmem:[%s466 + $0xe0] sm:$0xff] %v523
                  %v525 = vld [vmem:[%s465 + $0x1a8] sm:$0xff]
                  %526 = vst [vmem:[%s466 + $0xe8] sm:$0xff] %v525
                  %v527 = vld [vmem:[%s465 + $0x1b0] sm:$0xff]
                  %528 = vst [vmem:[%s466 + $0xf0] sm:$0xff] %v527
                  %v529 = vld [vmem:[%s465 + $0x1b8] sm:$0xff]
                  %530 = vst [vmem:[%s466 + $0xf8] sm:$0xff] %v529
                $region88: #{swin_transformer_block_three.1} parent=82 // loop_footer
                  %s464 = sadd.s32 1, %s460
                $region89: #{swin_transformer_block_three.1} parent=82 // loop_footer_branch
                  %459 = sbr.rel target = $region85
                $region90: #{swin_transformer_block_three.1} parent=82 // loop_exit
                  _
              $region83: #{swin_transformer_block_three.1} parent=67 // pred_fallthru
                _
              // Predicated region
              $region91: #{swin_transformer_block_three.1} parent=67 // pred_check
                _
              $region92: #{swin_transformer_block_three.1} parent=67 // pred_check_branch
                %532 = sbr.rel target = $region94
              $region93: #{swin_transformer_block_three.1} parent=67 // pred_region
                _
              $region94: #{swin_transformer_block_three.1} parent=67 // pred_fallthru
                _
            $region68: #{swin_transformer_block_three.1} parent=63 // pred_fallthru
              _
            // Predicated region
            $region69: #{swin_transformer_block_three.1} parent=63 // pred_check
              _
            $region70: #{swin_transformer_block_three.1} parent=63 // pred_check_branch
              %383 = sbr.rel target = $region72
            $region71: #{swin_transformer_block_three.1} parent=63 // pred_region
              loop: start=0, step=1, limit=1
              $region73: #{swin_transformer_block_three.1} parent=71 // loop_pre_header
                _
              $region74: #{swin_transformer_block_three.1} parent=71 // loop_header
                %s386 = sphi 0, %s390
                %p387 = scmp.ge.s32.totalorder %s386, 1
                %s391 = sphi %s377, %s377
                %s392 = sphi %s373, %s373
              $region75: #{swin_transformer_block_three.1} parent=71 // loop_header_branch
                %389 = sbr.rel (%p387) target = $region79
              $region76: #{swin_transformer_block_three.1} parent=71 // loop_body
                %v393 = vld [vmem:[%s391] sm:$0xff]
                %394 = vst [vmem:[%s392] sm:$0xff] %v393
                %v395 = vld [vmem:[%s391 + $0x8] sm:$0xff]
                %396 = vst [vmem:[%s392 + $0x8] sm:$0xff] %v395
                %v397 = vld [vmem:[%s391 + $0x10] sm:$0xff]
                %398 = vst [vmem:[%s392 + $0x10] sm:$0xff] %v397
                %v399 = vld [vmem:[%s391 + $0x18] sm:$0xff]
                %400 = vst [vmem:[%s392 + $0x18] sm:$0xff] %v399
                %v401 = vld [vmem:[%s391 + $0x20] sm:$0xff]
                %402 = vst [vmem:[%s392 + $0x20] sm:$0xff] %v401
                %v403 = vld [vmem:[%s391 + $0x28] sm:$0xff]
                %404 = vst [vmem:[%s392 + $0x28] sm:$0xff] %v403
                %v405 = vld [vmem:[%s391 + $0x30] sm:$0xff]
                %406 = vst [vmem:[%s392 + $0x30] sm:$0xff] %v405
                %v407 = vld [vmem:[%s391 + $0x38] sm:$0xff]
                %408 = vst [vmem:[%s392 + $0x38] sm:$0xff] %v407
                %v409 = vld [vmem:[%s391 + $0x80] sm:$0xff]
                %410 = vst [vmem:[%s392 + $0x40] sm:$0xff] %v409
                %v411 = vld [vmem:[%s391 + $0x88] sm:$0xff]
                %412 = vst [vmem:[%s392 + $0x48] sm:$0xff] %v411
                %v413 = vld [vmem:[%s391 + $0x90] sm:$0xff]
                %414 = vst [vmem:[%s392 + $0x50] sm:$0xff] %v413
                %v415 = vld [vmem:[%s391 + $0x98] sm:$0xff]
                %416 = vst [vmem:[%s392 + $0x58] sm:$0xff] %v415
                %v417 = vld [vmem:[%s391 + $0xa0] sm:$0xff]
                %418 = vst [vmem:[%s392 + $0x60] sm:$0xff] %v417
                %v419 = vld [vmem:[%s391 + $0xa8] sm:$0xff]
                %420 = vst [vmem:[%s392 + $0x68] sm:$0xff] %v419
                %v421 = vld [vmem:[%s391 + $0xb0] sm:$0xff]
                %422 = vst [vmem:[%s392 + $0x70] sm:$0xff] %v421
                %v423 = vld [vmem:[%s391 + $0xb8] sm:$0xff]
                %424 = vst [vmem:[%s392 + $0x78] sm:$0xff] %v423
                %v425 = vld [vmem:[%s391 + $0x100] sm:$0xff]
                %426 = vst [vmem:[%s392 + $0x80] sm:$0xff] %v425
                %v427 = vld [vmem:[%s391 + $0x108] sm:$0xff]
                %428 = vst [vmem:[%s392 + $0x88] sm:$0xff] %v427
                %v429 = vld [vmem:[%s391 + $0x110] sm:$0xff]
                %430 = vst [vmem:[%s392 + $0x90] sm:$0xff] %v429
                %v431 = vld [vmem:[%s391 + $0x118] sm:$0xff]
                %432 = vst [vmem:[%s392 + $0x98] sm:$0xff] %v431
                %v433 = vld [vmem:[%s391 + $0x120] sm:$0xff]
                %434 = vst [vmem:[%s392 + $0xa0] sm:$0xff] %v433
                %v435 = vld [vmem:[%s391 + $0x128] sm:$0xff]
                %436 = vst [vmem:[%s392 + $0xa8] sm:$0xff] %v435
                %v437 = vld [vmem:[%s391 + $0x130] sm:$0xff]
                %438 = vst [vmem:[%s392 + $0xb0] sm:$0xff] %v437
                %v439 = vld [vmem:[%s391 + $0x138] sm:$0xff]
                %440 = vst [vmem:[%s392 + $0xb8] sm:$0xff] %v439
                %v441 = vld [vmem:[%s391 + $0x180] sm:$0xff]
                %442 = vst [vmem:[%s392 + $0xc0] sm:$0xff] %v441
                %v443 = vld [vmem:[%s391 + $0x188] sm:$0xff]
                %444 = vst [vmem:[%s392 + $0xc8] sm:$0xff] %v443
                %v445 = vld [vmem:[%s391 + $0x190] sm:$0xff]
                %446 = vst [vmem:[%s392 + $0xd0] sm:$0xff] %v445
                %v447 = vld [vmem:[%s391 + $0x198] sm:$0xff]
                %448 = vst [vmem:[%s392 + $0xd8] sm:$0xff] %v447
                %v449 = vld [vmem:[%s391 + $0x1a0] sm:$0xff]
                %450 = vst [vmem:[%s392 + $0xe0] sm:$0xff] %v449
                %v451 = vld [vmem:[%s391 + $0x1a8] sm:$0xff]
                %452 = vst [vmem:[%s392 + $0xe8] sm:$0xff] %v451
                %v453 = vld [vmem:[%s391 + $0x1b0] sm:$0xff]
                %454 = vst [vmem:[%s392 + $0xf0] sm:$0xff] %v453
                %v455 = vld [vmem:[%s391 + $0x1b8] sm:$0xff]
                %456 = vst [vmem:[%s392 + $0xf8] sm:$0xff] %v455
              $region77: #{swin_transformer_block_three.1} parent=71 // loop_footer
                %s390 = sadd.s32 1, %s386
              $region78: #{swin_transformer_block_three.1} parent=71 // loop_footer_branch
                %385 = sbr.rel target = $region74
              $region79: #{swin_transformer_block_three.1} parent=71 // loop_exit
                _
            $region72: #{swin_transformer_block_three.1} parent=63 // pred_fallthru
              _
          $region64: #{swin_transformer_block_three.1} parent=59 // pred_fallthru
            _
          %533 = vnop
        $region60: #{swin_transformer_block_three.1} parent=51 // pred_fallthru
          _
      $region52: #{swin_transformer_block_three.1} parent=5 // pred_fallthru
        _
      %p534 = scmp.le.s32.totalorder 1, %s19
      %p535 = scmp.lt.s32.totalorder %s19, 3
      %p536 = pnand %p534, %p535
      %p537 = pneg %p536
      // Predicated region
      $region95: #{swin_transformer_block_three.1} parent=5 // pred_check
        _
      $region96: #{swin_transformer_block_three.1} parent=5 // pred_check_branch
        %539 = sbr.rel (%p536) target = $region98
      $region97: #{swin_transformer_block_three.1} parent=5 // pred_region
        %s540 = ssub.s32 %s19, 1
        %s541 = sand.u32 %s58, 1
        %s542 = sand.u32 %s58, 1
        %s543 = smul.addr %s542, 256
        %s544 = scalar_lea.vmem [#allocation3], %s543
        // Predicated region
        $region99: #{swin_transformer_block_three.1} parent=97 // pred_check
          %p545 = pneg %p71
        $region100: #{swin_transformer_block_three.1} parent=97 // pred_check_branch
          %547 = sbr.rel (%p545) target = $region102
        $region101: #{swin_transformer_block_three.1} parent=97 // pred_region
          _
        $region102: #{swin_transformer_block_three.1} parent=97 // pred_fallthru
          _
        %s548 = smul.u32 8, %s24
        %p549 = scmp.lt.s32.totalorder %s548, 15
        %s550 = scalar_select %p549, %s548, 15
        %s551 = smul.addr %s550, 8
        %s552 = scalar_lea.vmem %s0, %s551
        %p553 = pneg %p45
        %p554 = pneg %p42
        %s555 = sand.u32 %s58, 1
        %s556 = sand.u32 %s58, 1
        %s557 = smul.addr %s556, 256
        %s558 = scalar_lea.vmem [#allocation3], %s557
        %p559 = pneg %p71
        %p560 = pneg %p68
        %p561 = pneg %p92
        %p562 = pneg %p89
        %p563 = pneg %p113
        %p564 = pneg %p110
        %p565 = pneg %p134
        %p566 = pneg %p131
        %p567 = pneg %p155
        %p568 = pneg %p152
        %p569 = pneg %p176
        %p570 = pneg %p173
        %p571 = pneg %p197
        %p572 = pneg %p194
        %p573 = pneg %p218
        %p574 = pneg %p215
        %p575 = pneg %p239
        %p576 = pneg %p236
        %p577 = pneg %p260
        %p578 = pneg %p257
        %p579 = pneg %p286
        %p580 = pneg %p283
        %s581 = smul.u32 8, %s24
        %p582 = scmp.lt.s32.totalorder %s581, 15
        %s583 = scalar_select %p582, %s581, 15
        %s584 = smul.addr %s583, 8
        %s585 = scalar_lea.vmem %s11, %s584
        %p586 = pneg %p312
        %p587 = pneg %p309
        %s588 = smul.u32 8, %s24
        %p589 = scmp.lt.s32.totalorder %s588, 15
        %s590 = scalar_select %p589, %s588, 15
        %s591 = smul.addr %s590, 8
        %s592 = scalar_lea.vmem %s12, %s591
        %s593 = smul.u32 8, %s24
        %p594 = scmp.lt.s32.totalorder %s593, 15
        %s595 = scalar_select %p594, %s593, 15
        %s596 = smul.addr %s595, 8
        %s597 = scalar_lea.vmem %s0, %s596
        %s598 = smul.u32 8, %s24
        %s599 = smul.u32 4, %s24
        %s600 = smul.u32 8, %s24
        %p601 = scmp.lt.s32.totalorder %s600, 15
        %s602 = scalar_select %p601, %s600, 15
        %s603 = smul.addr %s602, 8
        %s604 = scalar_lea.vmem %s11, %s603
        %s605 = smul.u32 8, %s24
        %s606 = smul.u32 8, %s24
        %p607 = scmp.lt.s32.totalorder %s606, 15
        %s608 = scalar_select %p607, %s606, 15
        %s609 = smul.addr %s608, 8
        %s610 = scalar_lea.vmem %s12, %s609
        %s611 = smul.u32 8, %s24
        %v612 = vld [vmem:[%s597] sm:$0xff]
        %v613 = vld [vmem:[%s597 + $0x8] sm:$0xff]
        %v614 = vld [vmem:[%s597 + $0x10] sm:$0xff]
        %v615 = vld [vmem:[%s597 + $0x18] sm:$0xff]
        %v616 = vld [vmem:[%s597 + $0x20] sm:$0xff]
        %v617 = vld [vmem:[%s597 + $0x28] sm:$0xff]
        %v618 = vld [vmem:[%s597 + $0x30] sm:$0xff]
        %v619 = vld [vmem:[%s597 + $0x38] sm:$0xff]
        %v620 = vld [vmem:[%s2] sm:$0xff]
        %v621 = vld [vmem:[%s2 + $0x8] sm:$0x1]
        %vm622 = vcmask 261120
        %v623 = vsel %vm622, %v612, 0.0
        %624 = vadd.xlane.f32.xlu0 %v623
        %v625 = vpop.xlane.xlu0 %624
        %v626 = vsel %vm622, %v613, 0.0
        %627 = vadd.xlane.f32.xlu0 %v626
        %v628 = vpop.xlane.xlu0 %627
        %v629 = vsel %vm622, %v614, 0.0
        %630 = vadd.xlane.f32.xlu0 %v629
        %v631 = vpop.xlane.xlu0 %630
        %v632 = vsel %vm622, %v615, 0.0
        %633 = vadd.xlane.f32.xlu0 %v632
        %v634 = vpop.xlane.xlu0 %633
        %v635 = vsel %vm622, %v616, 0.0
        %636 = vadd.xlane.f32.xlu0 %v635
        %v637 = vpop.xlane.xlu0 %636
        %v638 = vsel %vm622, %v617, 0.0
        %639 = vadd.xlane.f32.xlu0 %v638
        %v640 = vpop.xlane.xlu0 %639
        %v641 = vsel %vm622, %v618, 0.0
        %642 = vadd.xlane.f32.xlu0 %v641
        %v643 = vpop.xlane.xlu0 %642
        %v644 = vsel %vm622, %v619, 0.0
        %645 = vadd.xlane.f32.xlu0 %v644
        %v646 = vpop.xlane.xlu0 %645
        %v647 = vrcp.pop 32.0
        %v648 = vmul.f32 %v625, %v647
        %v649 = vmul.f32 %v628, %v647
        %v650 = vmul.f32 %v631, %v647
        %v651 = vmul.f32 %v634, %v647
        %v652 = vmul.f32 %v637, %v647
        %v653 = vmul.f32 %v640, %v647
        %v654 = vmul.f32 %v643, %v647
        %v655 = vmul.f32 %v646, %v647
        %v656 = vsub.f32 %v612, %v648
        %v657 = vsub.f32 %v613, %v649
        %v658 = vsub.f32 %v614, %v650
        %v659 = vsub.f32 %v615, %v651
        %v660 = vsub.f32 %v616, %v652
        %v661 = vsub.f32 %v617, %v653
        %v662 = vsub.f32 %v618, %v654
        %v663 = vsub.f32 %v619, %v655
        %v664 = vmul.f32 %v656, %v656
        %v665 = vmul.f32 %v657, %v657
        %v666 = vmul.f32 %v658, %v658
        %v667 = vmul.f32 %v659, %v659
        %v668 = vmul.f32 %v660, %v660
        %v669 = vmul.f32 %v661, %v661
        %v670 = vmul.f32 %v662, %v662
        %v671 = vmul.f32 %v663, %v663
        %v672 = vsel %vm622, %v664, 0.0
        %673 = vadd.xlane.f32.xlu0 %v672
        %v674 = vpop.xlane.xlu0 %673
        %v675 = vsel %vm622, %v665, 0.0
        %676 = vadd.xlane.f32.xlu0 %v675
        %v677 = vpop.xlane.xlu0 %676
        %v678 = vsel %vm622, %v666, 0.0
        %679 = vadd.xlane.f32.xlu0 %v678
        %v680 = vpop.xlane.xlu0 %679
        %v681 = vsel %vm622, %v667, 0.0
        %682 = vadd.xlane.f32.xlu0 %v681
        %v683 = vpop.xlane.xlu0 %682
        %v684 = vsel %vm622, %v668, 0.0
        %685 = vadd.xlane.f32.xlu0 %v684
        %v686 = vpop.xlane.xlu0 %685
        %v687 = vsel %vm622, %v669, 0.0
        %688 = vadd.xlane.f32.xlu0 %v687
        %v689 = vpop.xlane.xlu0 %688
        %v690 = vsel %vm622, %v670, 0.0
        %691 = vadd.xlane.f32.xlu0 %v690
        %v692 = vpop.xlane.xlu0 %691
        %v693 = vsel %vm622, %v671, 0.0
        %694 = vadd.xlane.f32.xlu0 %v693
        %v695 = vpop.xlane.xlu0 %694
        %v696 = vmul.f32 %v674, %v647
        %v697 = vmul.f32 %v677, %v647
        %v698 = vmul.f32 %v680, %v647
        %v699 = vmul.f32 %v683, %v647
        %v700 = vmul.f32 %v686, %v647
        %v701 = vmul.f32 %v689, %v647
        %v702 = vmul.f32 %v692, %v647
        %v703 = vmul.f32 %v695, %v647
        %v704 = vadd.f32 %v696, 1e-05
        %v705 = vadd.f32 %v697, 1e-05
        %v706 = vadd.f32 %v698, 1e-05
        %v707 = vadd.f32 %v699, 1e-05
        %v708 = vadd.f32 %v700, 1e-05
        %v709 = vadd.f32 %v701, 1e-05
        %v710 = vadd.f32 %v702, 1e-05
        %v711 = vadd.f32 %v703, 1e-05
        %v712 = vrsqrt.pop %v704
        %v713 = vrsqrt.pop %v705
        %v714 = vrsqrt.pop %v706
        %v715 = vrsqrt.pop %v707
        %v716 = vrsqrt.pop %v708
        %v717 = vrsqrt.pop %v709
        %v718 = vrsqrt.pop %v710
        %v719 = vrsqrt.pop %v711
        %v720 = vmul.f32 %v656, %v712
        %v721 = vmul.f32 %v657, %v713
        %v722 = vmul.f32 %v658, %v714
        %v723 = vmul.f32 %v659, %v715
        %v724 = vmul.f32 %v660, %v716
        %v725 = vmul.f32 %v661, %v717
        %v726 = vmul.f32 %v662, %v718
        %v727 = vmul.f32 %v663, %v719
        %v728 = vlaneseq
        %v729 = vshrl.u32 %v728, 7
        %v730 = vsub.s32 0, %v729
        %v731 = vrot.slane %v620, %v730
        %v732 = vmul.f32 %v720, %v731
        %v733 = vmul.f32 %v721, %v731
        %v734 = vmul.f32 %v722, %v731
        %v735 = vmul.f32 %v723, %v731
        %v736 = vmul.f32 %v724, %v731
        %v737 = vmul.f32 %v725, %v731
        %v738 = vmul.f32 %v726, %v731
        %v739 = vmul.f32 %v727, %v731
        %v740 = vlaneseq
        %v741 = vshrl.u32 %v740, 7
        %v742 = vsub.s32 1, %v741
        %v743 = vrot.slane %v620, %v742
        %v744 = vadd.f32 %v732, %v743
        %v745 = vadd.f32 %v733, %v743
        %v746 = vadd.f32 %v734, %v743
        %v747 = vadd.f32 %v735, %v743
        %v748 = vadd.f32 %v736, %v743
        %v749 = vadd.f32 %v737, %v743
        %v750 = vadd.f32 %v738, %v743
        %v751 = vadd.f32 %v739, %v743
        %v752 = vld [vmem:[%s4] sm:$0xff]
        %v753 = vld [vmem:[%s4 + $0x8] sm:$0xff]
        %v754 = vld [vmem:[%s4 + $0x10] sm:$0xff]
        %v755 = vld [vmem:[%s4 + $0x18] sm:$0xff]
        %v756 = vlaneseq
        %v757 = vshrl.u32 %v756, 7
        %v758 = vsub.s32 2, %v757
        %v759 = vrot.slane %v620, %v758
        %v761 = vsel %vm622, %v744, 0
        %v764 = vsel %vm622, %v745, 0
        %v767 = vsel %vm622, %v746, 0
        %v770 = vsel %vm622, %v747, 0
        %v773 = vsel %vm622, %v748, 0
        %v776 = vsel %vm622, %v749, 0
        %v779 = vsel %vm622, %v750, 0
        %v782 = vsel %vm622, %v751, 0
        %784 = vmatprep.subr.mxu0 0.0
        %785 = vmatpush1.msra.mxu0 %v752
        %786 = vmatprep.subr.mxu0 0.0
        %787 = vmatpush1.msra.mxu0 %v753
        %788 = vmatprep.subr.mxu0 0.0
        %789 = vmatpush1.msra.mxu0 %v754
        %790 = vmatprep.subr.mxu0 0.0
        %791 = vmatpush1.msra.mxu0 %v755
        %792 = vmatprep.subr.mxu0 0.0
        %793 = vmatpush1.msra.mxu0 0.0
        %794 = vmatprep.subr.mxu0 0.0
        %795 = vmatpush1.msra.mxu0 0.0
        %796 = vmatprep.subr.mxu0 0.0
        %797 = vmatpush1.msra.mxu0 0.0
        %798 = vmatprep.subr.mxu0 0.0
        %799 = vmatpush1.msra.mxu0 0.0
        %800 = vmatprep.subr.mxu0 0.0
        %801 = vmatpush1.msra.mxu0 0.0
        %802 = vmatprep.subr.mxu0 0.0
        %803 = vmatpush1.msra.mxu0 0.0
        %804 = vmatprep.subr.mxu0 0.0
        %805 = vmatpush1.msra.mxu0 0.0
        %806 = vmatprep.subr.mxu0 0.0
        %807 = vmatpush1.msra.mxu0 0.0
        %808 = vmatprep.subr.mxu0 0.0
        %809 = vmatpush1.msra.mxu0 0.0
        %810 = vmatprep.subr.mxu0 0.0
        %811 = vmatpush1.msra.mxu0 0.0
        %812 = vmatprep.subr.mxu0 0.0
        %813 = vmatpush1.msra.mxu0 0.0
        %814 = vmatprep.subr.mxu0 0.0
        %815 = vmatpush1.msra.mxu0 0.0
        %816 = vmatprep.subr.mxu0 0.0
        %817 = vmatpush1.msra.mxu0 0.0
        %818 = vmatprep.subr.mxu0 0.0
        %819 = vmatpush1.msra.mxu0 0.0
        %820 = vmatprep.subr.mxu0 0.0
        %821 = vmatpush1.msra.mxu0 0.0
        %822 = vmatprep.subr.mxu0 0.0
        %823 = vmatpush1.msra.mxu0 0.0
        %824 = vmatprep.subr.mxu0 0.0
        %825 = vmatpush1.msra.mxu0 0.0
        %826 = vmatprep.subr.mxu0 0.0
        %827 = vmatpush1.msra.mxu0 0.0
        %828 = vmatprep.subr.mxu0 0.0
        %829 = vmatpush1.msra.mxu0 0.0
        %830 = vmatprep.subr.mxu0 0.0
        %831 = vmatpush1.msra.mxu0 0.0
        %832 = vmatprep.subr.mxu0 0.0
        %833 = vmatpush1.msra.mxu0 0.0
        %834 = vmatprep.subr.mxu0 0.0
        %835 = vmatpush1.msra.mxu0 0.0
        %836 = vmatprep.subr.mxu0 0.0
        %837 = vmatpush1.msra.mxu0 0.0
        %838 = vmatprep.subr.mxu0 0.0
        %839 = vmatpush1.msra.mxu0 0.0
        %840 = vmatprep.subr.mxu0 0.0
        %841 = vmatpush1.msra.mxu0 0.0
        %842 = vmatprep.subr.mxu0 0.0
        %843 = vmatpush1.msra.mxu0 0.0
        %844 = vmatprep.subr.mxu0 0.0
        %845 = vmatpush1.msra.mxu0 0.0
        %846 = vmatprep.subr.mxu0 0.0
        %847 = vmatpush1.msra.mxu0 0.0
        %848 = vmatprep.mubr.f32.mxu0 0.0
        %849 = vmatmul.mubr.f32.gmra.mrb[0].mxu0 %v761
        %v850 = vpop.f32.mrb[0].mxu0
        %v851 = vadd.f32 %v759, %v850
        %v852 = vpop.f32.mrb[0].mxu0
        %853 = vmatprep.mubr.f32.mxu0 0.0
        %854 = vmatmul.mubr.f32.gmra.mrb[0].mxu0 %v764
        %v855 = vpop.f32.mrb[0].mxu0
        %v856 = vadd.f32 %v759, %v855
        %v857 = vpop.f32.mrb[0].mxu0
        %858 = vmatprep.mubr.f32.mxu0 0.0
        %859 = vmatmul.mubr.f32.gmra.mrb[0].mxu0 %v767
        %v860 = vpop.f32.mrb[0].mxu0
        %v861 = vadd.f32 %v759, %v860
        %v862 = vpop.f32.mrb[0].mxu0
        %863 = vmatprep.mubr.f32.mxu0 0.0
        %864 = vmatmul.mubr.f32.gmra.mrb[0].mxu0 %v770
        %v865 = vpop.f32.mrb[0].mxu0
        %v866 = vadd.f32 %v759, %v865
        %v867 = vpop.f32.mrb[0].mxu0
        %868 = vmatprep.mubr.f32.mxu0 0.0
        %869 = vmatmul.mubr.f32.gmra.mrb[0].mxu0 %v773
        %v870 = vpop.f32.mrb[0].mxu0
        %v871 = vadd.f32 %v759, %v870
        %v872 = vpop.f32.mrb[0].mxu0
        %873 = vmatprep.mubr.f32.mxu0 0.0
        %874 = vmatmul.mubr.f32.gmra.mrb[0].mxu0 %v776
        %v875 = vpop.f32.mrb[0].mxu0
        %v876 = vadd.f32 %v759, %v875
        %v877 = vpop.f32.mrb[0].mxu0
        %878 = vmatprep.mubr.f32.mxu0 0.0
        %879 = vmatmul.mubr.f32.gmra.mrb[0].mxu0 %v779
        %v880 = vpop.f32.mrb[0].mxu0
        %v881 = vadd.f32 %v759, %v880
        %v882 = vpop.f32.mrb[0].mxu0
        %883 = vmatprep.mubr.f32.mxu0 0.0
        %884 = vmatmul.mubr.f32.gmra.mrb[0].mxu0 %v782
        %v885 = vpop.f32.mrb[0].mxu0
        %v886 = vadd.f32 %v759, %v885
        %v887 = vpop.f32.mrb[0].mxu0
        %888 = vdwg.mxu0
        %v889 = vmul.f32 %v851, 0.35355338
        %v890 = vmul.f32 %v856, 0.35355338
        %v891 = vmul.f32 %v861, 0.35355338
        %v892 = vmul.f32 %v866, 0.35355338
        %v893 = vmul.f32 %v871, 0.35355338
        %v894 = vmul.f32 %v876, 0.35355338
        %v895 = vmul.f32 %v881, 0.35355338
        %v896 = vmul.f32 %v886, 0.35355338
        %v897 = vld [vmem:[%s5] sm:$0xff]
        %v898 = vld [vmem:[%s5 + $0x8] sm:$0xff]
        %v899 = vld [vmem:[%s5 + $0x10] sm:$0xff]
        %v900 = vld [vmem:[%s5 + $0x18] sm:$0xff]
        %v901 = vlaneseq
        %v902 = vshrl.u32 %v901, 7
        %v903 = vsub.s32 3, %v902
        %v904 = vrot.slane %v620, %v903
        %905 = vmatprep.subr.mxu0 0.0
        %906 = vmatpush1.msra.mxu0 %v897
        %907 = vmatprep.subr.mxu0 0.0
        %908 = vmatpush1.msra.mxu0 %v898
        %909 = vmatprep.subr.mxu0 0.0
        %910 = vmatpush1.msra.mxu0 %v899
        %911 = vmatprep.subr.mxu0 0.0
        %912 = vmatpush1.msra.mxu0 %v900
        %913 = vmatprep.subr.mxu0 0.0
        %914 = vmatpush1.msra.mxu0 0.0
        %915 = vmatprep.subr.mxu0 0.0
        %916 = vmatpush1.msra.mxu0 0.0
        %917 = vmatprep.subr.mxu0 0.0
        %918 = vmatpush1.msra.mxu0 0.0
        %919 = vmatprep.subr.mxu0 0.0
        %920 = vmatpush1.msra.mxu0 0.0
        %921 = vmatprep.subr.mxu0 0.0
        %922 = vmatpush1.msra.mxu0 0.0
        %923 = vmatprep.subr.mxu0 0.0
        %924 = vmatpush1.msra.mxu0 0.0
        %925 = vmatprep.subr.mxu0 0.0
        %926 = vmatpush1.msra.mxu0 0.0
        %927 = vmatprep.subr.mxu0 0.0
        %928 = vmatpush1.msra.mxu0 0.0
        %929 = vmatprep.subr.mxu0 0.0
        %930 = vmatpush1.msra.mxu0 0.0
        %931 = vmatprep.subr.mxu0 0.0
        %932 = vmatpush1.msra.mxu0 0.0
        %933 = vmatprep.subr.mxu0 0.0
        %934 = vmatpush1.msra.mxu0 0.0
        %935 = vmatprep.subr.mxu0 0.0
        %936 = vmatpush1.msra.mxu0 0.0
        %937 = vmatprep.subr.mxu0 0.0
        %938 = vmatpush1.msra.mxu0 0.0
        %939 = vmatprep.subr.mxu0 0.0
        %940 = vmatpush1.msra.mxu0 0.0
        %941 = vmatprep.subr.mxu0 0.0
        %942 = vmatpush1.msra.mxu0 0.0
        %943 = vmatprep.subr.mxu0 0.0
        %944 = vmatpush1.msra.mxu0 0.0
        %945 = vmatprep.subr.mxu0 0.0
        %946 = vmatpush1.msra.mxu0 0.0
        %947 = vmatprep.subr.mxu0 0.0
        %948 = vmatpush1.msra.mxu0 0.0
        %949 = vmatprep.subr.mxu0 0.0
        %950 = vmatpush1.msra.mxu0 0.0
        %951 = vmatprep.subr.mxu0 0.0
        %952 = vmatpush1.msra.mxu0 0.0
        %953 = vmatprep.subr.mxu0 0.0
        %954 = vmatpush1.msra.mxu0 0.0
        %955 = vmatprep.subr.mxu0 0.0
        %956 = vmatpush1.msra.mxu0 0.0
        %957 = vmatprep.subr.mxu0 0.0
        %958 = vmatpush1.msra.mxu0 0.0
        %959 = vmatprep.subr.mxu0 0.0
        %960 = vmatpush1.msra.mxu0 0.0
        %961 = vmatprep.subr.mxu0 0.0
        %962 = vmatpush1.msra.mxu0 0.0
        %963 = vmatprep.subr.mxu0 0.0
        %964 = vmatpush1.msra.mxu0 0.0
        %965 = vmatprep.subr.mxu0 0.0
        %966 = vmatpush1.msra.mxu0 0.0
        %967 = vmatprep.subr.mxu0 0.0
        %968 = vmatpush1.msra.mxu0 0.0
        %969 = vmatprep.mubr.f32.mxu0 0.0
        %970 = vmatmul.mubr.f32.gmra.mrb[0].mxu0 %v761
        %v971 = vpop.f32.mrb[0].mxu0
        %v972 = vadd.f32 %v904, %v971
        %v973 = vpop.f32.mrb[0].mxu0
        %974 = vmatprep.mubr.f32.mxu0 0.0
        %975 = vmatmul.mubr.f32.gmra.mrb[0].mxu0 %v764
        %v976 = vpop.f32.mrb[0].mxu0
        %v977 = vadd.f32 %v904, %v976
        %v978 = vpop.f32.mrb[0].mxu0
        %979 = vmatprep.mubr.f32.mxu0 0.0
        %980 = vmatmul.mubr.f32.gmra.mrb[0].mxu0 %v767
        %v981 = vpop.f32.mrb[0].mxu0
        %v982 = vadd.f32 %v904, %v981
        %v983 = vpop.f32.mrb[0].mxu0
        %984 = vmatprep.mubr.f32.mxu0 0.0
        %985 = vmatmul.mubr.f32.gmra.mrb[0].mxu0 %v770
        %v986 = vpop.f32.mrb[0].mxu0
        %v987 = vadd.f32 %v904, %v986
        %v988 = vpop.f32.mrb[0].mxu0
        %989 = vmatprep.mubr.f32.mxu0 0.0
        %990 = vmatmul.mubr.f32.gmra.mrb[0].mxu0 %v773
        %v991 = vpop.f32.mrb[0].mxu0
        %v992 = vadd.f32 %v904, %v991
        %v993 = vpop.f32.mrb[0].mxu0
        %994 = vmatprep.mubr.f32.mxu0 0.0
        %995 = vmatmul.mubr.f32.gmra.mrb[0].mxu0 %v776
        %v996 = vpop.f32.mrb[0].mxu0
        %v997 = vadd.f32 %v904, %v996
        %v998 = vpop.f32.mrb[0].mxu0
        %999 = vmatprep.mubr.f32.mxu0 0.0
        %1000 = vmatmul.mubr.f32.gmra.mrb[0].mxu0 %v779
        %v1001 = vpop.f32.mrb[0].mxu0
        %v1002 = vadd.f32 %v904, %v1001
        %v1003 = vpop.f32.mrb[0].mxu0
        %1004 = vmatprep.mubr.f32.mxu0 0.0
        %1005 = vmatmul.mubr.f32.gmra.mrb[0].mxu0 %v782
        %v1006 = vpop.f32.mrb[0].mxu0
        %v1007 = vadd.f32 %v904, %v1006
        %v1008 = vpop.f32.mrb[0].mxu0
        %1009 = vdwg.mxu0
        %v1010 = vld [vmem:[%s6] sm:$0xff]
        %v1011 = vld [vmem:[%s6 + $0x8] sm:$0xff]
        %v1012 = vld [vmem:[%s6 + $0x10] sm:$0xff]
        %v1013 = vld [vmem:[%s6 + $0x18] sm:$0xff]
        %v1014 = vlaneseq
        %v1015 = vshrl.u32 %v1014, 7
        %v1016 = vsub.s32 4, %v1015
        %v1017 = vrot.slane %v620, %v1016
        %1018 = vmatprep.subr.mxu0 0.0
        %1019 = vmatpush1.msra.mxu0 %v1010
        %1020 = vmatprep.subr.mxu0 0.0
        %1021 = vmatpush1.msra.mxu0 %v1011
        %1022 = vmatprep.subr.mxu0 0.0
        %1023 = vmatpush1.msra.mxu0 %v1012
        %1024 = vmatprep.subr.mxu0 0.0
        %1025 = vmatpush1.msra.mxu0 %v1013
        %1026 = vmatprep.subr.mxu0 0.0
        %1027 = vmatpush1.msra.mxu0 0.0
        %1028 = vmatprep.subr.mxu0 0.0
        %1029 = vmatpush1.msra.mxu0 0.0
        %1030 = vmatprep.subr.mxu0 0.0
        %1031 = vmatpush1.msra.mxu0 0.0
        %1032 = vmatprep.subr.mxu0 0.0
        %1033 = vmatpush1.msra.mxu0 0.0
        %1034 = vmatprep.subr.mxu0 0.0
        %1035 = vmatpush1.msra.mxu0 0.0
        %1036 = vmatprep.subr.mxu0 0.0
        %1037 = vmatpush1.msra.mxu0 0.0
        %1038 = vmatprep.subr.mxu0 0.0
        %1039 = vmatpush1.msra.mxu0 0.0
        %1040 = vmatprep.subr.mxu0 0.0
        %1041 = vmatpush1.msra.mxu0 0.0
        %1042 = vmatprep.subr.mxu0 0.0
        %1043 = vmatpush1.msra.mxu0 0.0
        %1044 = vmatprep.subr.mxu0 0.0
        %1045 = vmatpush1.msra.mxu0 0.0
        %1046 = vmatprep.subr.mxu0 0.0
        %1047 = vmatpush1.msra.mxu0 0.0
        %1048 = vmatprep.subr.mxu0 0.0
        %1049 = vmatpush1.msra.mxu0 0.0
        %1050 = vmatprep.subr.mxu0 0.0
        %1051 = vmatpush1.msra.mxu0 0.0
        %1052 = vmatprep.subr.mxu0 0.0
        %1053 = vmatpush1.msra.mxu0 0.0
        %1054 = vmatprep.subr.mxu0 0.0
        %1055 = vmatpush1.msra.mxu0 0.0
        %1056 = vmatprep.subr.mxu0 0.0
        %1057 = vmatpush1.msra.mxu0 0.0
        %1058 = vmatprep.subr.mxu0 0.0
        %1059 = vmatpush1.msra.mxu0 0.0
        %1060 = vmatprep.subr.mxu0 0.0
        %1061 = vmatpush1.msra.mxu0 0.0
        %1062 = vmatprep.subr.mxu0 0.0
        %1063 = vmatpush1.msra.mxu0 0.0
        %1064 = vmatprep.subr.mxu0 0.0
        %1065 = vmatpush1.msra.mxu0 0.0
        %1066 = vmatprep.subr.mxu0 0.0
        %1067 = vmatpush1.msra.mxu0 0.0
        %1068 = vmatprep.subr.mxu0 0.0
        %1069 = vmatpush1.msra.mxu0 0.0
        %1070 = vmatprep.subr.mxu0 0.0
        %1071 = vmatpush1.msra.mxu0 0.0
        %1072 = vmatprep.subr.mxu0 0.0
        %1073 = vmatpush1.msra.mxu0 0.0
        %1074 = vmatprep.subr.mxu0 0.0
        %1075 = vmatpush1.msra.mxu0 0.0
        %1076 = vmatprep.subr.mxu0 0.0
        %1077 = vmatpush1.msra.mxu0 0.0
        %1078 = vmatprep.subr.mxu0 0.0
        %1079 = vmatpush1.msra.mxu0 0.0
        %1080 = vmatprep.subr.mxu0 0.0
        %1081 = vmatpush1.msra.mxu0 0.0
        %1082 = vmatprep.mubr.f32.mxu0 0.0
        %1083 = vmatmul.mubr.f32.gmra.mrb[0].mxu0 %v761
        %v1084 = vpop.f32.mrb[0].mxu0
        %v1085 = vadd.f32 %v1017, %v1084
        %v1086 = vpop.f32.mrb[0].mxu0
        %1087 = vmatprep.mubr.f32.mxu0 0.0
        %1088 = vmatmul.mubr.f32.gmra.mrb[0].mxu0 %v764
        %v1089 = vpop.f32.mrb[0].mxu0
        %v1090 = vadd.f32 %v1017, %v1089
        %v1091 = vpop.f32.mrb[0].mxu0
        %1092 = vmatprep.mubr.f32.mxu0 0.0
        %1093 = vmatmul.mubr.f32.gmra.mrb[0].mxu0 %v767
        %v1094 = vpop.f32.mrb[0].mxu0
        %v1095 = vadd.f32 %v1017, %v1094
        %v1096 = vpop.f32.mrb[0].mxu0
        %1097 = vmatprep.mubr.f32.mxu0 0.0
        %1098 = vmatmul.mubr.f32.gmra.mrb[0].mxu0 %v770
        %v1099 = vpop.f32.mrb[0].mxu0
        %v1100 = vadd.f32 %v1017, %v1099
        %v1101 = vpop.f32.mrb[0].mxu0
        %1102 = vmatprep.mubr.f32.mxu0 0.0
        %1103 = vmatmul.mubr.f32.gmra.mrb[0].mxu0 %v773
        %v1104 = vpop.f32.mrb[0].mxu0
        %v1105 = vadd.f32 %v1017, %v1104
        %v1106 = vpop.f32.mrb[0].mxu0
        %1107 = vmatprep.mubr.f32.mxu0 0.0
        %1108 = vmatmul.mubr.f32.gmra.mrb[0].mxu0 %v776
        %v1109 = vpop.f32.mrb[0].mxu0
        %v1110 = vadd.f32 %v1017, %v1109
        %v1111 = vpop.f32.mrb[0].mxu0
        %1112 = vmatprep.mubr.f32.mxu0 0.0
        %1113 = vmatmul.mubr.f32.gmra.mrb[0].mxu0 %v779
        %v1114 = vpop.f32.mrb[0].mxu0
        %v1115 = vadd.f32 %v1017, %v1114
        %v1116 = vpop.f32.mrb[0].mxu0
        %1117 = vmatprep.mubr.f32.mxu0 0.0
        %1118 = vmatmul.mubr.f32.gmra.mrb[0].mxu0 %v782
        %v1119 = vpop.f32.mrb[0].mxu0
        %v1120 = vadd.f32 %v1017, %v1119
        %v1121 = vpop.f32.mrb[0].mxu0
        %1122 = vdwg.mxu0
        %1123 = vst.msk [vmem:[%s610] sm:$0xff] %vm622, %v972
        %1124 = vst.msk [vmem:[%s610 + $0x8] sm:$0xff] %vm622, %v977
        %1125 = vst.msk [vmem:[%s610 + $0x10] sm:$0xff] %vm622, %v982
        %1126 = vst.msk [vmem:[%s610 + $0x18] sm:$0xff] %vm622, %v987
        %1127 = vst.msk [vmem:[%s610 + $0x20] sm:$0xff] %vm622, %v992
        %1128 = vst.msk [vmem:[%s610 + $0x28] sm:$0xff] %vm622, %v997
        %1129 = vst.msk [vmem:[%s610 + $0x30] sm:$0xff] %vm622, %v1002
        %1130 = vst.msk [vmem:[%s610 + $0x38] sm:$0xff] %vm622, %v1007
        %v1131 = vld [vmem:[%s544] sm:$0xff]
        %v1132 = vld [vmem:[%s544 + $0x8] sm:$0xff]
        %v1133 = vld [vmem:[%s544 + $0x10] sm:$0xff]
        %v1134 = vld [vmem:[%s544 + $0x18] sm:$0xff]
        %v1135 = vld [vmem:[%s544 + $0x20] sm:$0xff]
        %v1136 = vld [vmem:[%s544 + $0x28] sm:$0xff]
        %v1137 = vld [vmem:[%s544 + $0x30] sm:$0xff]
        %v1138 = vld [vmem:[%s544 + $0x38] sm:$0xff]
        %v1139 = vld [vmem:[%s8] sm:$0xff]
        %v1140 = vld [vmem:[%s8 + $0x8] sm:$0xff]
        %vm1141 = vcmask 64512
        %v1143 = vsel %vm1141, %v889, 0
        %v1146 = vsel %vm1141, %v890, 0
        %v1149 = vsel %vm1141, %v1131, 0
        %v1152 = vsel %vm1141, %v1132, 0
        %1154 = vmatprep.subr.mxu0 0.0
        %1155 = vmatpush1.xpose.msra.mxu0 %v1149
        %1156 = vmatprep.subr.mxu0 0.0
        %1157 = vmatpush1.xpose.msra.mxu0 %v1152
        %1158 = vmatprep.subr.mxu0 0.0
        %1159 = vmatpush1.xpose.msra.mxu0 0.0
        %1160 = vmatprep.subr.mxu0 0.0
        %1161 = vmatpush1.xpose.msra.mxu0 0.0
        %1162 = vmatprep.subr.mxu0 0.0
        %1163 = vmatpush1.xpose.msra.mxu0 0.0
        %1164 = vmatprep.subr.mxu0 0.0
        %1165 = vmatpush1.xpose.msra.mxu0 0.0
        %1166 = vmatprep.subr.mxu0 0.0
        %1167 = vmatpush1.xpose.msra.mxu0 0.0
        %1168 = vmatprep.subr.mxu0 0.0
        %1169 = vmatpush1.xpose.msra.mxu0 0.0
        %1170 = vmatprep.subr.mxu0 0.0
        %1171 = vmatpush1.xpose.msra.mxu0 0.0
        %1172 = vmatprep.subr.mxu0 0.0
        %1173 = vmatpush1.xpose.msra.mxu0 0.0
        %1174 = vmatprep.subr.mxu0 0.0
        %1175 = vmatpush1.xpose.msra.mxu0 0.0
        %1176 = vmatprep.subr.mxu0 0.0
        %1177 = vmatpush1.xpose.msra.mxu0 0.0
        %1178 = vmatprep.subr.mxu0 0.0
        %1179 = vmatpush1.xpose.msra.mxu0 0.0
        %1180 = vmatprep.subr.mxu0 0.0
        %1181 = vmatpush1.xpose.msra.mxu0 0.0
        %1182 = vmatprep.subr.mxu0 0.0
        %1183 = vmatpush1.xpose.msra.mxu0 0.0
        %1184 = vmatprep.subr.mxu0 0.0
        %1185 = vmatpush1.xpose.msra.mxu0 0.0
        %1186 = vmatprep.subr.mxu0 0.0
        %1187 = vmatpush1.xpose.msra.mxu0 0.0
        %1188 = vmatprep.subr.mxu0 0.0
        %1189 = vmatpush1.xpose.msra.mxu0 0.0
        %1190 = vmatprep.subr.mxu0 0.0
        %1191 = vmatpush1.xpose.msra.mxu0 0.0
        %1192 = vmatprep.subr.mxu0 0.0
        %1193 = vmatpush1.xpose.msra.mxu0 0.0
        %1194 = vmatprep.subr.mxu0 0.0
        %1195 = vmatpush1.xpose.msra.mxu0 0.0
        %1196 = vmatprep.subr.mxu0 0.0
        %1197 = vmatpush1.xpose.msra.mxu0 0.0
        %1198 = vmatprep.subr.mxu0 0.0
        %1199 = vmatpush1.xpose.msra.mxu0 0.0
        %1200 = vmatprep.subr.mxu0 0.0
        %1201 = vmatpush1.xpose.msra.mxu0 0.0
        %1202 = vmatprep.subr.mxu0 0.0
        %1203 = vmatpush1.xpose.msra.mxu0 0.0
        %1204 = vmatprep.subr.mxu0 0.0
        %1205 = vmatpush1.xpose.msra.mxu0 0.0
        %1206 = vmatprep.subr.mxu0 0.0
        %1207 = vmatpush1.xpose.msra.mxu0 0.0
        %1208 = vmatprep.subr.mxu0 0.0
        %1209 = vmatpush1.xpose.msra.mxu0 0.0
        %1210 = vmatprep.subr.mxu0 0.0
        %1211 = vmatpush1.xpose.msra.mxu0 0.0
        %1212 = vmatprep.subr.mxu0 0.0
        %1213 = vmatpush1.xpose.msra.mxu0 0.0
        %1214 = vmatprep.subr.mxu0 0.0
        %1215 = vmatpush1.xpose.msra.mxu0 0.0
        %1216 = vmatprep.subr.mxu0 0.0
        %1217 = vmatpush1.xpose.msra.mxu0 0.0
        %1218 = vmatprep.mubr.f32.mxu0 0.0
        %1219 = vmatmul.mubr.f32.gmra.mrb[0].mxu0 %v1143
        %v1220 = vpop.f32.mrb[0].mxu0
        %v1221 = vadd.f32 %v1139, %v1220
        %v1222 = vpop.f32.mrb[0].mxu0
        %1223 = vmatprep.mubr.f32.mxu0 0.0
        %1224 = vmatmul.mubr.f32.gmra.mrb[0].mxu0 %v1146
        %v1225 = vpop.f32.mrb[0].mxu0
        %v1226 = vadd.f32 %v1140, %v1225
        %v1227 = vpop.f32.mrb[0].mxu0
        %1228 = vdwg.mxu0
        %v1230 = vsel %vm1141, %v891, 0
        %v1233 = vsel %vm1141, %v892, 0
        %v1236 = vsel %vm1141, %v1133, 0
        %v1239 = vsel %vm1141, %v1134, 0
        %1241 = vmatprep.subr.mxu0 0.0
        %1242 = vmatpush1.xpose.msra.mxu0 %v1236
        %1243 = vmatprep.subr.mxu0 0.0
        %1244 = vmatpush1.xpose.msra.mxu0 %v1239
        %1245 = vmatprep.subr.mxu0 0.0
        %1246 = vmatpush1.xpose.msra.mxu0 0.0
        %1247 = vmatprep.subr.mxu0 0.0
        %1248 = vmatpush1.xpose.msra.mxu0 0.0
        %1249 = vmatprep.subr.mxu0 0.0
        %1250 = vmatpush1.xpose.msra.mxu0 0.0
        %1251 = vmatprep.subr.mxu0 0.0
        %1252 = vmatpush1.xpose.msra.mxu0 0.0
        %1253 = vmatprep.subr.mxu0 0.0
        %1254 = vmatpush1.xpose.msra.mxu0 0.0
        %1255 = vmatprep.subr.mxu0 0.0
        %1256 = vmatpush1.xpose.msra.mxu0 0.0
        %1257 = vmatprep.subr.mxu0 0.0
        %1258 = vmatpush1.xpose.msra.mxu0 0.0
        %1259 = vmatprep.subr.mxu0 0.0
        %1260 = vmatpush1.xpose.msra.mxu0 0.0
        %1261 = vmatprep.subr.mxu0 0.0
        %1262 = vmatpush1.xpose.msra.mxu0 0.0
        %1263 = vmatprep.subr.mxu0 0.0
        %1264 = vmatpush1.xpose.msra.mxu0 0.0
        %1265 = vmatprep.subr.mxu0 0.0
        %1266 = vmatpush1.xpose.msra.mxu0 0.0
        %1267 = vmatprep.subr.mxu0 0.0
        %1268 = vmatpush1.xpose.msra.mxu0 0.0
        %1269 = vmatprep.subr.mxu0 0.0
        %1270 = vmatpush1.xpose.msra.mxu0 0.0
        %1271 = vmatprep.subr.mxu0 0.0
        %1272 = vmatpush1.xpose.msra.mxu0 0.0
        %1273 = vmatprep.subr.mxu0 0.0
        %1274 = vmatpush1.xpose.msra.mxu0 0.0
        %1275 = vmatprep.subr.mxu0 0.0
        %1276 = vmatpush1.xpose.msra.mxu0 0.0
        %1277 = vmatprep.subr.mxu0 0.0
        %1278 = vmatpush1.xpose.msra.mxu0 0.0
        %1279 = vmatprep.subr.mxu0 0.0
        %1280 = vmatpush1.xpose.msra.mxu0 0.0
        %1281 = vmatprep.subr.mxu0 0.0
        %1282 = vmatpush1.xpose.msra.mxu0 0.0
        %1283 = vmatprep.subr.mxu0 0.0
        %1284 = vmatpush1.xpose.msra.mxu0 0.0
        %1285 = vmatprep.subr.mxu0 0.0
        %1286 = vmatpush1.xpose.msra.mxu0 0.0
        %1287 = vmatprep.subr.mxu0 0.0
        %1288 = vmatpush1.xpose.msra.mxu0 0.0
        %1289 = vmatprep.subr.mxu0 0.0
        %1290 = vmatpush1.xpose.msra.mxu0 0.0
        %1291 = vmatprep.subr.mxu0 0.0
        %1292 = vmatpush1.xpose.msra.mxu0 0.0
        %1293 = vmatprep.subr.mxu0 0.0
        %1294 = vmatpush1.xpose.msra.mxu0 0.0
        %1295 = vmatprep.subr.mxu0 0.0
        %1296 = vmatpush1.xpose.msra.mxu0 0.0
        %1297 = vmatprep.subr.mxu0 0.0
        %1298 = vmatpush1.xpose.msra.mxu0 0.0
        %1299 = vmatprep.subr.mxu0 0.0
        %1300 = vmatpush1.xpose.msra.mxu0 0.0
        %1301 = vmatprep.subr.mxu0 0.0
        %1302 = vmatpush1.xpose.msra.mxu0 0.0
        %1303 = vmatprep.subr.mxu0 0.0
        %1304 = vmatpush1.xpose.msra.mxu0 0.0
        %1305 = vmatprep.mubr.f32.mxu0 0.0
        %1306 = vmatmul.mubr.f32.gmra.mrb[0].mxu0 %v1230
        %v1307 = vpop.f32.mrb[0].mxu0
        %v1308 = vadd.f32 %v1139, %v1307
        %v1309 = vpop.f32.mrb[0].mxu0
        %1310 = vmatprep.mubr.f32.mxu0 0.0
        %1311 = vmatmul.mubr.f32.gmra.mrb[0].mxu0 %v1233
        %v1312 = vpop.f32.mrb[0].mxu0
        %v1313 = vadd.f32 %v1140, %v1312
        %v1314 = vpop.f32.mrb[0].mxu0
        %1315 = vdwg.mxu0
        %v1317 = vsel %vm1141, %v893, 0
        %v1320 = vsel %vm1141, %v894, 0
        %v1323 = vsel %vm1141, %v1135, 0
        %v1326 = vsel %vm1141, %v1136, 0
        %1328 = vmatprep.subr.mxu0 0.0
        %1329 = vmatpush1.xpose.msra.mxu0 %v1323
        %1330 = vmatprep.subr.mxu0 0.0
        %1331 = vmatpush1.xpose.msra.mxu0 %v1326
        %1332 = vmatprep.subr.mxu0 0.0
        %1333 = vmatpush1.xpose.msra.mxu0 0.0
        %1334 = vmatprep.subr.mxu0 0.0
        %1335 = vmatpush1.xpose.msra.mxu0 0.0
        %1336 = vmatprep.subr.mxu0 0.0
        %1337 = vmatpush1.xpose.msra.mxu0 0.0
        %1338 = vmatprep.subr.mxu0 0.0
        %1339 = vmatpush1.xpose.msra.mxu0 0.0
        %1340 = vmatprep.subr.mxu0 0.0
        %1341 = vmatpush1.xpose.msra.mxu0 0.0
        %1342 = vmatprep.subr.mxu0 0.0
        %1343 = vmatpush1.xpose.msra.mxu0 0.0
        %1344 = vmatprep.subr.mxu0 0.0
        %1345 = vmatpush1.xpose.msra.mxu0 0.0
        %1346 = vmatprep.subr.mxu0 0.0
        %1347 = vmatpush1.xpose.msra.mxu0 0.0
        %1348 = vmatprep.subr.mxu0 0.0
        %1349 = vmatpush1.xpose.msra.mxu0 0.0
        %1350 = vmatprep.subr.mxu0 0.0
        %1351 = vmatpush1.xpose.msra.mxu0 0.0
        %1352 = vmatprep.subr.mxu0 0.0
        %1353 = vmatpush1.xpose.msra.mxu0 0.0
        %1354 = vmatprep.subr.mxu0 0.0
        %1355 = vmatpush1.xpose.msra.mxu0 0.0
        %1356 = vmatprep.subr.mxu0 0.0
        %1357 = vmatpush1.xpose.msra.mxu0 0.0
        %1358 = vmatprep.subr.mxu0 0.0
        %1359 = vmatpush1.xpose.msra.mxu0 0.0
        %1360 = vmatprep.subr.mxu0 0.0
        %1361 = vmatpush1.xpose.msra.mxu0 0.0
        %1362 = vmatprep.subr.mxu0 0.0
        %1363 = vmatpush1.xpose.msra.mxu0 0.0
        %1364 = vmatprep.subr.mxu0 0.0
        %1365 = vmatpush1.xpose.msra.mxu0 0.0
        %1366 = vmatprep.subr.mxu0 0.0
        %1367 = vmatpush1.xpose.msra.mxu0 0.0
        %1368 = vmatprep.subr.mxu0 0.0
        %1369 = vmatpush1.xpose.msra.mxu0 0.0
        %1370 = vmatprep.subr.mxu0 0.0
        %1371 = vmatpush1.xpose.msra.mxu0 0.0
        %1372 = vmatprep.subr.mxu0 0.0
        %1373 = vmatpush1.xpose.msra.mxu0 0.0
        %1374 = vmatprep.subr.mxu0 0.0
        %1375 = vmatpush1.xpose.msra.mxu0 0.0
        %1376 = vmatprep.subr.mxu0 0.0
        %1377 = vmatpush1.xpose.msra.mxu0 0.0
        %1378 = vmatprep.subr.mxu0 0.0
        %1379 = vmatpush1.xpose.msra.mxu0 0.0
        %1380 = vmatprep.subr.mxu0 0.0
        %1381 = vmatpush1.xpose.msra.mxu0 0.0
        %1382 = vmatprep.subr.mxu0 0.0
        %1383 = vmatpush1.xpose.msra.mxu0 0.0
        %1384 = vmatprep.subr.mxu0 0.0
        %1385 = vmatpush1.xpose.msra.mxu0 0.0
        %1386 = vmatprep.subr.mxu0 0.0
        %1387 = vmatpush1.xpose.msra.mxu0 0.0
        %1388 = vmatprep.subr.mxu0 0.0
        %1389 = vmatpush1.xpose.msra.mxu0 0.0
        %1390 = vmatprep.subr.mxu0 0.0
        %1391 = vmatpush1.xpose.msra.mxu0 0.0
        %1392 = vmatprep.mubr.f32.mxu0 0.0
        %1393 = vmatmul.mubr.f32.gmra.mrb[0].mxu0 %v1317
        %v1394 = vpop.f32.mrb[0].mxu0
        %v1395 = vadd.f32 %v1139, %v1394
        %v1396 = vpop.f32.mrb[0].mxu0
        %1397 = vmatprep.mubr.f32.mxu0 0.0
        %1398 = vmatmul.mubr.f32.gmra.mrb[0].mxu0 %v1320
        %v1399 = vpop.f32.mrb[0].mxu0
        %v1400 = vadd.f32 %v1140, %v1399
        %v1401 = vpop.f32.mrb[0].mxu0
        %1402 = vdwg.mxu0
        %v1404 = vsel %vm1141, %v895, 0
        %v1407 = vsel %vm1141, %v896, 0
        %v1410 = vsel %vm1141, %v1137, 0
        %v1413 = vsel %vm1141, %v1138, 0
        %1415 = vmatprep.subr.mxu0 0.0
        %1416 = vmatpush1.xpose.msra.mxu0 %v1410
        %1417 = vmatprep.subr.mxu0 0.0
        %1418 = vmatpush1.xpose.msra.mxu0 %v1413
        %1419 = vmatprep.subr.mxu0 0.0
        %1420 = vmatpush1.xpose.msra.mxu0 0.0
        %1421 = vmatprep.subr.mxu0 0.0
        %1422 = vmatpush1.xpose.msra.mxu0 0.0
        %1423 = vmatprep.subr.mxu0 0.0
        %1424 = vmatpush1.xpose.msra.mxu0 0.0
        %1425 = vmatprep.subr.mxu0 0.0
        %1426 = vmatpush1.xpose.msra.mxu0 0.0
        %1427 = vmatprep.subr.mxu0 0.0
        %1428 = vmatpush1.xpose.msra.mxu0 0.0
        %1429 = vmatprep.subr.mxu0 0.0
        %1430 = vmatpush1.xpose.msra.mxu0 0.0
        %1431 = vmatprep.subr.mxu0 0.0
        %1432 = vmatpush1.xpose.msra.mxu0 0.0
        %1433 = vmatprep.subr.mxu0 0.0
        %1434 = vmatpush1.xpose.msra.mxu0 0.0
        %1435 = vmatprep.subr.mxu0 0.0
        %1436 = vmatpush1.xpose.msra.mxu0 0.0
        %1437 = vmatprep.subr.mxu0 0.0
        %1438 = vmatpush1.xpose.msra.mxu0 0.0
        %1439 = vmatprep.subr.mxu0 0.0
        %1440 = vmatpush1.xpose.msra.mxu0 0.0
        %1441 = vmatprep.subr.mxu0 0.0
        %1442 = vmatpush1.xpose.msra.mxu0 0.0
        %1443 = vmatprep.subr.mxu0 0.0
        %1444 = vmatpush1.xpose.msra.mxu0 0.0
        %1445 = vmatprep.subr.mxu0 0.0
        %1446 = vmatpush1.xpose.msra.mxu0 0.0
        %1447 = vmatprep.subr.mxu0 0.0
        %1448 = vmatpush1.xpose.msra.mxu0 0.0
        %1449 = vmatprep.subr.mxu0 0.0
        %1450 = vmatpush1.xpose.msra.mxu0 0.0
        %1451 = vmatprep.subr.mxu0 0.0
        %1452 = vmatpush1.xpose.msra.mxu0 0.0
        %1453 = vmatprep.subr.mxu0 0.0
        %1454 = vmatpush1.xpose.msra.mxu0 0.0
        %1455 = vmatprep.subr.mxu0 0.0
        %1456 = vmatpush1.xpose.msra.mxu0 0.0
        %1457 = vmatprep.subr.mxu0 0.0
        %1458 = vmatpush1.xpose.msra.mxu0 0.0
        %1459 = vmatprep.subr.mxu0 0.0
        %1460 = vmatpush1.xpose.msra.mxu0 0.0
        %1461 = vmatprep.subr.mxu0 0.0
        %1462 = vmatpush1.xpose.msra.mxu0 0.0
        %1463 = vmatprep.subr.mxu0 0.0
        %1464 = vmatpush1.xpose.msra.mxu0 0.0
        %1465 = vmatprep.subr.mxu0 0.0
        %1466 = vmatpush1.xpose.msra.mxu0 0.0
        %1467 = vmatprep.subr.mxu0 0.0
        %1468 = vmatpush1.xpose.msra.mxu0 0.0
        %1469 = vmatprep.subr.mxu0 0.0
        %1470 = vmatpush1.xpose.msra.mxu0 0.0
        %1471 = vmatprep.subr.mxu0 0.0
        %1472 = vmatpush1.xpose.msra.mxu0 0.0
        %1473 = vmatprep.subr.mxu0 0.0
        %1474 = vmatpush1.xpose.msra.mxu0 0.0
        %1475 = vmatprep.subr.mxu0 0.0
        %1476 = vmatpush1.xpose.msra.mxu0 0.0
        %1477 = vmatprep.subr.mxu0 0.0
        %1478 = vmatpush1.xpose.msra.mxu0 0.0
        %1479 = vmatprep.mubr.f32.mxu0 0.0
        %1480 = vmatmul.mubr.f32.gmra.mrb[0].mxu0 %v1404
        %v1481 = vpop.f32.mrb[0].mxu0
        %v1482 = vadd.f32 %v1139, %v1481
        %v1483 = vpop.f32.mrb[0].mxu0
        %1484 = vmatprep.mubr.f32.mxu0 0.0
        %1485 = vmatmul.mubr.f32.gmra.mrb[0].mxu0 %v1407
        %v1486 = vpop.f32.mrb[0].mxu0
        %v1487 = vadd.f32 %v1140, %v1486
        %v1488 = vpop.f32.mrb[0].mxu0
        %1489 = vdwg.mxu0
        %vm1490 = vcmask 130048
        %v1491 = vsel %vm1490, %v1221, -inf
        %1492 = vmax.xlane.f32.xlu0 %v1491
        %v1493 = vpop.xlane.xlu0 %1492
        %v1494 = vsel %vm1490, %v1226, -inf
        %1495 = vmax.xlane.f32.xlu0 %v1494
        %v1496 = vpop.xlane.xlu0 %1495
        %v1497 = vsel %vm1490, %v1308, -inf
        %1498 = vmax.xlane.f32.xlu0 %v1497
        %v1499 = vpop.xlane.xlu0 %1498
        %v1500 = vsel %vm1490, %v1313, -inf
        %1501 = vmax.xlane.f32.xlu0 %v1500
        %v1502 = vpop.xlane.xlu0 %1501
        %v1503 = vsel %vm1490, %v1395, -inf
        %1504 = vmax.xlane.f32.xlu0 %v1503
        %v1505 = vpop.xlane.xlu0 %1504
        %v1506 = vsel %vm1490, %v1400, -inf
        %1507 = vmax.xlane.f32.xlu0 %v1506
        %v1508 = vpop.xlane.xlu0 %1507
        %v1509 = vsel %vm1490, %v1482, -inf
        %1510 = vmax.xlane.f32.xlu0 %v1509
        %v1511 = vpop.xlane.xlu0 %1510
        %v1512 = vsel %vm1490, %v1487, -inf
        %1513 = vmax.xlane.f32.xlu0 %v1512
        %v1514 = vpop.xlane.xlu0 %1513
        %v1515 = vsub.f32 %v1221, %v1493
        %v1516 = vsub.f32 %v1226, %v1496
        %v1517 = vsub.f32 %v1308, %v1499
        %v1518 = vsub.f32 %v1313, %v1502
        %v1519 = vsub.f32 %v1395, %v1505
        %v1520 = vsub.f32 %v1400, %v1508
        %v1521 = vsub.f32 %v1482, %v1511
        %v1522 = vsub.f32 %v1487, %v1514
        %v1523 = vmul.f32 %v1515, 1.442695
        %v1524 = vpow.pop %v1523
        %v1525 = vmul.f32 %v1516, 1.442695
        %v1526 = vpow.pop %v1525
        %v1527 = vmul.f32 %v1517, 1.442695
        %v1528 = vpow.pop %v1527
        %v1529 = vmul.f32 %v1518, 1.442695
        %v1530 = vpow.pop %v1529
        %v1531 = vmul.f32 %v1519, 1.442695
        %v1532 = vpow.pop %v1531
        %v1533 = vmul.f32 %v1520, 1.442695
        %v1534 = vpow.pop %v1533
        %v1535 = vmul.f32 %v1521, 1.442695
        %v1536 = vpow.pop %v1535
        %v1537 = vmul.f32 %v1522, 1.442695
        %v1538 = vpow.pop %v1537
        %v1539 = vsel %vm1490, %v1524, 0.0
        %1540 = vadd.xlane.f32.xlu0 %v1539
        %v1541 = vpop.xlane.xlu0 %1540
        %v1542 = vsel %vm1490, %v1526, 0.0
        %1543 = vadd.xlane.f32.xlu0 %v1542
        %v1544 = vpop.xlane.xlu0 %1543
        %v1545 = vsel %vm1490, %v1528, 0.0
        %1546 = vadd.xlane.f32.xlu0 %v1545
        %v1547 = vpop.xlane.xlu0 %1546
        %v1548 = vsel %vm1490, %v1530, 0.0
        %1549 = vadd.xlane.f32.xlu0 %v1548
        %v1550 = vpop.xlane.xlu0 %1549
        %v1551 = vsel %vm1490, %v1532, 0.0
        %1552 = vadd.xlane.f32.xlu0 %v1551
        %v1553 = vpop.xlane.xlu0 %1552
        %v1554 = vsel %vm1490, %v1534, 0.0
        %1555 = vadd.xlane.f32.xlu0 %v1554
        %v1556 = vpop.xlane.xlu0 %1555
        %v1557 = vsel %vm1490, %v1536, 0.0
        %1558 = vadd.xlane.f32.xlu0 %v1557
        %v1559 = vpop.xlane.xlu0 %1558
        %v1560 = vsel %vm1490, %v1538, 0.0
        %1561 = vadd.xlane.f32.xlu0 %v1560
        %v1562 = vpop.xlane.xlu0 %1561
        %v1563 = vrcp.pop %v1541
        %v1564 = vrcp.pop %v1544
        %v1565 = vrcp.pop %v1547
        %v1566 = vrcp.pop %v1550
        %v1567 = vrcp.pop %v1553
        %v1568 = vrcp.pop %v1556
        %v1569 = vrcp.pop %v1559
        %v1570 = vrcp.pop %v1562
        %v1571 = vmul.f32 %v1524, %v1563
        %v1572 = vmul.f32 %v1526, %v1564
        %v1573 = vmul.f32 %v1528, %v1565
        %v1574 = vmul.f32 %v1530, %v1566
        %v1575 = vmul.f32 %v1532, %v1567
        %v1576 = vmul.f32 %v1534, %v1568
        %v1577 = vmul.f32 %v1536, %v1569
        %v1578 = vmul.f32 %v1538, %v1570
        %v1580 = vsel %vm1490, %v1571, 0
        %v1583 = vsel %vm1490, %v1572, 0
        %1585 = vmatprep.subr.mxu0 0.0
        %1586 = vmatpush1.msra.mxu0 %v1085
        %1587 = vmatprep.subr.mxu0 0.0
        %1588 = vmatpush1.msra.mxu0 %v1090
        %1589 = vmatprep.subr.mxu0 0.0
        %1590 = vmatpush1.msra.mxu0 0.0
        %1591 = vmatprep.subr.mxu0 0.0
        %1592 = vmatpush1.msra.mxu0 0.0
        %1593 = vmatprep.subr.mxu0 0.0
        %1594 = vmatpush1.msra.mxu0 0.0
        %1595 = vmatprep.subr.mxu0 0.0
        %1596 = vmatpush1.msra.mxu0 0.0
        %1597 = vmatprep.subr.mxu0 0.0
        %1598 = vmatpush1.msra.mxu0 0.0
        %1599 = vmatprep.subr.mxu0 0.0
        %1600 = vmatpush1.msra.mxu0 0.0
        %1601 = vmatprep.subr.mxu0 0.0
        %1602 = vmatpush1.msra.mxu0 0.0
        %1603 = vmatprep.subr.mxu0 0.0
        %1604 = vmatpush1.msra.mxu0 0.0
        %1605 = vmatprep.subr.mxu0 0.0
        %1606 = vmatpush1.msra.mxu0 0.0
        %1607 = vmatprep.subr.mxu0 0.0
        %1608 = vmatpush1.msra.mxu0 0.0
        %1609 = vmatprep.subr.mxu0 0.0
        %1610 = vmatpush1.msra.mxu0 0.0
        %1611 = vmatprep.subr.mxu0 0.0
        %1612 = vmatpush1.msra.mxu0 0.0
        %1613 = vmatprep.subr.mxu0 0.0
        %1614 = vmatpush1.msra.mxu0 0.0
        %1615 = vmatprep.subr.mxu0 0.0
        %1616 = vmatpush1.msra.mxu0 0.0
        %1617 = vmatprep.subr.mxu0 0.0
        %1618 = vmatpush1.msra.mxu0 0.0
        %1619 = vmatprep.subr.mxu0 0.0
        %1620 = vmatpush1.msra.mxu0 0.0
        %1621 = vmatprep.subr.mxu0 0.0
        %1622 = vmatpush1.msra.mxu0 0.0
        %1623 = vmatprep.subr.mxu0 0.0
        %1624 = vmatpush1.msra.mxu0 0.0
        %1625 = vmatprep.subr.mxu0 0.0
        %1626 = vmatpush1.msra.mxu0 0.0
        %1627 = vmatprep.subr.mxu0 0.0
        %1628 = vmatpush1.msra.mxu0 0.0
        %1629 = vmatprep.subr.mxu0 0.0
        %1630 = vmatpush1.msra.mxu0 0.0
        %1631 = vmatprep.subr.mxu0 0.0
        %1632 = vmatpush1.msra.mxu0 0.0
        %1633 = vmatprep.subr.mxu0 0.0
        %1634 = vmatpush1.msra.mxu0 0.0
        %1635 = vmatprep.subr.mxu0 0.0
        %1636 = vmatpush1.msra.mxu0 0.0
        %1637 = vmatprep.subr.mxu0 0.0
        %1638 = vmatpush1.msra.mxu0 0.0
        %1639 = vmatprep.subr.mxu0 0.0
        %1640 = vmatpush1.msra.mxu0 0.0
        %1641 = vmatprep.subr.mxu0 0.0
        %1642 = vmatpush1.msra.mxu0 0.0
        %1643 = vmatprep.subr.mxu0 0.0
        %1644 = vmatpush1.msra.mxu0 0.0
        %1645 = vmatprep.subr.mxu0 0.0
        %1646 = vmatpush1.msra.mxu0 0.0
        %1647 = vmatprep.subr.mxu0 0.0
        %1648 = vmatpush1.msra.mxu0 0.0
        %1649 = vmatprep.mubr.f32.mxu0 0.0
        %1650 = vmatmul.mubr.f32.gmra.mrb[0].mxu0 %v1580
        %v1651 = vpop.f32.mrb[0].mxu0
        %v1652 = vadd.f32 0.0, %v1651
        %v1653 = vpop.f32.mrb[0].mxu0
        %1654 = vmatprep.mubr.f32.mxu0 0.0
        %1655 = vmatmul.mubr.f32.gmra.mrb[0].mxu0 %v1583
        %v1656 = vpop.f32.mrb[0].mxu0
        %v1657 = vadd.f32 0.0, %v1656
        %v1658 = vpop.f32.mrb[0].mxu0
        %1659 = vdwg.mxu0
        %v1661 = vsel %vm1490, %v1573, 0
        %v1664 = vsel %vm1490, %v1574, 0
        %1666 = vmatprep.subr.mxu0 0.0
        %1667 = vmatpush1.msra.mxu0 %v1095
        %1668 = vmatprep.subr.mxu0 0.0
        %1669 = vmatpush1.msra.mxu0 %v1100
        %1670 = vmatprep.subr.mxu0 0.0
        %1671 = vmatpush1.msra.mxu0 0.0
        %1672 = vmatprep.subr.mxu0 0.0
        %1673 = vmatpush1.msra.mxu0 0.0
        %1674 = vmatprep.subr.mxu0 0.0
        %1675 = vmatpush1.msra.mxu0 0.0
        %1676 = vmatprep.subr.mxu0 0.0
        %1677 = vmatpush1.msra.mxu0 0.0
        %1678 = vmatprep.subr.mxu0 0.0
        %1679 = vmatpush1.msra.mxu0 0.0
        %1680 = vmatprep.subr.mxu0 0.0
        %1681 = vmatpush1.msra.mxu0 0.0
        %1682 = vmatprep.subr.mxu0 0.0
        %1683 = vmatpush1.msra.mxu0 0.0
        %1684 = vmatprep.subr.mxu0 0.0
        %1685 = vmatpush1.msra.mxu0 0.0
        %1686 = vmatprep.subr.mxu0 0.0
        %1687 = vmatpush1.msra.mxu0 0.0
        %1688 = vmatprep.subr.mxu0 0.0
        %1689 = vmatpush1.msra.mxu0 0.0
        %1690 = vmatprep.subr.mxu0 0.0
        %1691 = vmatpush1.msra.mxu0 0.0
        %1692 = vmatprep.subr.mxu0 0.0
        %1693 = vmatpush1.msra.mxu0 0.0
        %1694 = vmatprep.subr.mxu0 0.0
        %1695 = vmatpush1.msra.mxu0 0.0
        %1696 = vmatprep.subr.mxu0 0.0
        %1697 = vmatpush1.msra.mxu0 0.0
        %1698 = vmatprep.subr.mxu0 0.0
        %1699 = vmatpush1.msra.mxu0 0.0
        %1700 = vmatprep.subr.mxu0 0.0
        %1701 = vmatpush1.msra.mxu0 0.0
        %1702 = vmatprep.subr.mxu0 0.0
        %1703 = vmatpush1.msra.mxu0 0.0
        %1704 = vmatprep.subr.mxu0 0.0
        %1705 = vmatpush1.msra.mxu0 0.0
        %1706 = vmatprep.subr.mxu0 0.0
        %1707 = vmatpush1.msra.mxu0 0.0
        %1708 = vmatprep.subr.mxu0 0.0
        %1709 = vmatpush1.msra.mxu0 0.0
        %1710 = vmatprep.subr.mxu0 0.0
        %1711 = vmatpush1.msra.mxu0 0.0
        %1712 = vmatprep.subr.mxu0 0.0
        %1713 = vmatpush1.msra.mxu0 0.0
        %1714 = vmatprep.subr.mxu0 0.0
        %1715 = vmatpush1.msra.mxu0 0.0
        %1716 = vmatprep.subr.mxu0 0.0
        %1717 = vmatpush1.msra.mxu0 0.0
        %1718 = vmatprep.subr.mxu0 0.0
        %1719 = vmatpush1.msra.mxu0 0.0
        %1720 = vmatprep.subr.mxu0 0.0
        %1721 = vmatpush1.msra.mxu0 0.0
        %1722 = vmatprep.subr.mxu0 0.0
        %1723 = vmatpush1.msra.mxu0 0.0
        %1724 = vmatprep.subr.mxu0 0.0
        %1725 = vmatpush1.msra.mxu0 0.0
        %1726 = vmatprep.subr.mxu0 0.0
        %1727 = vmatpush1.msra.mxu0 0.0
        %1728 = vmatprep.subr.mxu0 0.0
        %1729 = vmatpush1.msra.mxu0 0.0
        %1730 = vmatprep.mubr.f32.mxu0 0.0
        %1731 = vmatmul.mubr.f32.gmra.mrb[0].mxu0 %v1661
        %v1732 = vpop.f32.mrb[0].mxu0
        %v1733 = vadd.f32 0.0, %v1732
        %v1734 = vpop.f32.mrb[0].mxu0
        %1735 = vmatprep.mubr.f32.mxu0 0.0
        %1736 = vmatmul.mubr.f32.gmra.mrb[0].mxu0 %v1664
        %v1737 = vpop.f32.mrb[0].mxu0
        %v1738 = vadd.f32 0.0, %v1737
        %v1739 = vpop.f32.mrb[0].mxu0
        %1740 = vdwg.mxu0
        %v1742 = vsel %vm1490, %v1575, 0
        %v1745 = vsel %vm1490, %v1576, 0
        %1747 = vmatprep.subr.mxu0 0.0
        %1748 = vmatpush1.msra.mxu0 %v1105
        %1749 = vmatprep.subr.mxu0 0.0
        %1750 = vmatpush1.msra.mxu0 %v1110
        %1751 = vmatprep.subr.mxu0 0.0
        %1752 = vmatpush1.msra.mxu0 0.0
        %1753 = vmatprep.subr.mxu0 0.0
        %1754 = vmatpush1.msra.mxu0 0.0
        %1755 = vmatprep.subr.mxu0 0.0
        %1756 = vmatpush1.msra.mxu0 0.0
        %1757 = vmatprep.subr.mxu0 0.0
        %1758 = vmatpush1.msra.mxu0 0.0
        %1759 = vmatprep.subr.mxu0 0.0
        %1760 = vmatpush1.msra.mxu0 0.0
        %1761 = vmatprep.subr.mxu0 0.0
        %1762 = vmatpush1.msra.mxu0 0.0
        %1763 = vmatprep.subr.mxu0 0.0
        %1764 = vmatpush1.msra.mxu0 0.0
        %1765 = vmatprep.subr.mxu0 0.0
        %1766 = vmatpush1.msra.mxu0 0.0
        %1767 = vmatprep.subr.mxu0 0.0
        %1768 = vmatpush1.msra.mxu0 0.0
        %1769 = vmatprep.subr.mxu0 0.0
        %1770 = vmatpush1.msra.mxu0 0.0
        %1771 = vmatprep.subr.mxu0 0.0
        %1772 = vmatpush1.msra.mxu0 0.0
        %1773 = vmatprep.subr.mxu0 0.0
        %1774 = vmatpush1.msra.mxu0 0.0
        %1775 = vmatprep.subr.mxu0 0.0
        %1776 = vmatpush1.msra.mxu0 0.0
        %1777 = vmatprep.subr.mxu0 0.0
        %1778 = vmatpush1.msra.mxu0 0.0
        %1779 = vmatprep.subr.mxu0 0.0
        %1780 = vmatpush1.msra.mxu0 0.0
        %1781 = vmatprep.subr.mxu0 0.0
        %1782 = vmatpush1.msra.mxu0 0.0
        %1783 = vmatprep.subr.mxu0 0.0
        %1784 = vmatpush1.msra.mxu0 0.0
        %1785 = vmatprep.subr.mxu0 0.0
        %1786 = vmatpush1.msra.mxu0 0.0
        %1787 = vmatprep.subr.mxu0 0.0
        %1788 = vmatpush1.msra.mxu0 0.0
        %1789 = vmatprep.subr.mxu0 0.0
        %1790 = vmatpush1.msra.mxu0 0.0
        %1791 = vmatprep.subr.mxu0 0.0
        %1792 = vmatpush1.msra.mxu0 0.0
        %1793 = vmatprep.subr.mxu0 0.0
        %1794 = vmatpush1.msra.mxu0 0.0
        %1795 = vmatprep.subr.mxu0 0.0
        %1796 = vmatpush1.msra.mxu0 0.0
        %1797 = vmatprep.subr.mxu0 0.0
        %1798 = vmatpush1.msra.mxu0 0.0
        %1799 = vmatprep.subr.mxu0 0.0
        %1800 = vmatpush1.msra.mxu0 0.0
        %1801 = vmatprep.subr.mxu0 0.0
        %1802 = vmatpush1.msra.mxu0 0.0
        %1803 = vmatprep.subr.mxu0 0.0
        %1804 = vmatpush1.msra.mxu0 0.0
        %1805 = vmatprep.subr.mxu0 0.0
        %1806 = vmatpush1.msra.mxu0 0.0
        %1807 = vmatprep.subr.mxu0 0.0
        %1808 = vmatpush1.msra.mxu0 0.0
        %1809 = vmatprep.subr.mxu0 0.0
        %1810 = vmatpush1.msra.mxu0 0.0
        %1811 = vmatprep.mubr.f32.mxu0 0.0
        %1812 = vmatmul.mubr.f32.gmra.mrb[0].mxu0 %v1742
        %v1813 = vpop.f32.mrb[0].mxu0
        %v1814 = vadd.f32 0.0, %v1813
        %v1815 = vpop.f32.mrb[0].mxu0
        %1816 = vmatprep.mubr.f32.mxu0 0.0
        %1817 = vmatmul.mubr.f32.gmra.mrb[0].mxu0 %v1745
        %v1818 = vpop.f32.mrb[0].mxu0
        %v1819 = vadd.f32 0.0, %v1818
        %v1820 = vpop.f32.mrb[0].mxu0
        %1821 = vdwg.mxu0
        %v1823 = vsel %vm1490, %v1577, 0
        %v1826 = vsel %vm1490, %v1578, 0
        %1828 = vmatprep.subr.mxu0 0.0
        %1829 = vmatpush1.msra.mxu0 %v1115
        %1830 = vmatprep.subr.mxu0 0.0
        %1831 = vmatpush1.msra.mxu0 %v1120
        %1832 = vmatprep.subr.mxu0 0.0
        %1833 = vmatpush1.msra.mxu0 0.0
        %1834 = vmatprep.subr.mxu0 0.0
        %1835 = vmatpush1.msra.mxu0 0.0
        %1836 = vmatprep.subr.mxu0 0.0
        %1837 = vmatpush1.msra.mxu0 0.0
        %1838 = vmatprep.subr.mxu0 0.0
        %1839 = vmatpush1.msra.mxu0 0.0
        %1840 = vmatprep.subr.mxu0 0.0
        %1841 = vmatpush1.msra.mxu0 0.0
        %1842 = vmatprep.subr.mxu0 0.0
        %1843 = vmatpush1.msra.mxu0 0.0
        %1844 = vmatprep.subr.mxu0 0.0
        %1845 = vmatpush1.msra.mxu0 0.0
        %1846 = vmatprep.subr.mxu0 0.0
        %1847 = vmatpush1.msra.mxu0 0.0
        %1848 = vmatprep.subr.mxu0 0.0
        %1849 = vmatpush1.msra.mxu0 0.0
        %1850 = vmatprep.subr.mxu0 0.0
        %1851 = vmatpush1.msra.mxu0 0.0
        %1852 = vmatprep.subr.mxu0 0.0
        %1853 = vmatpush1.msra.mxu0 0.0
        %1854 = vmatprep.subr.mxu0 0.0
        %1855 = vmatpush1.msra.mxu0 0.0
        %1856 = vmatprep.subr.mxu0 0.0
        %1857 = vmatpush1.msra.mxu0 0.0
        %1858 = vmatprep.subr.mxu0 0.0
        %1859 = vmatpush1.msra.mxu0 0.0
        %1860 = vmatprep.subr.mxu0 0.0
        %1861 = vmatpush1.msra.mxu0 0.0
        %1862 = vmatprep.subr.mxu0 0.0
        %1863 = vmatpush1.msra.mxu0 0.0
        %1864 = vmatprep.subr.mxu0 0.0
        %1865 = vmatpush1.msra.mxu0 0.0
        %1866 = vmatprep.subr.mxu0 0.0
        %1867 = vmatpush1.msra.mxu0 0.0
        %1868 = vmatprep.subr.mxu0 0.0
        %1869 = vmatpush1.msra.mxu0 0.0
        %1870 = vmatprep.subr.mxu0 0.0
        %1871 = vmatpush1.msra.mxu0 0.0
        %1872 = vmatprep.subr.mxu0 0.0
        %1873 = vmatpush1.msra.mxu0 0.0
        %1874 = vmatprep.subr.mxu0 0.0
        %1875 = vmatpush1.msra.mxu0 0.0
        %1876 = vmatprep.subr.mxu0 0.0
        %1877 = vmatpush1.msra.mxu0 0.0
        %1878 = vmatprep.subr.mxu0 0.0
        %1879 = vmatpush1.msra.mxu0 0.0
        %1880 = vmatprep.subr.mxu0 0.0
        %1881 = vmatpush1.msra.mxu0 0.0
        %1882 = vmatprep.subr.mxu0 0.0
        %1883 = vmatpush1.msra.mxu0 0.0
        %1884 = vmatprep.subr.mxu0 0.0
        %1885 = vmatpush1.msra.mxu0 0.0
        %1886 = vmatprep.subr.mxu0 0.0
        %1887 = vmatpush1.msra.mxu0 0.0
        %1888 = vmatprep.subr.mxu0 0.0
        %1889 = vmatpush1.msra.mxu0 0.0
        %1890 = vmatprep.subr.mxu0 0.0
        %1891 = vmatpush1.msra.mxu0 0.0
        %1892 = vmatprep.mubr.f32.mxu0 0.0
        %1893 = vmatmul.mubr.f32.gmra.mrb[0].mxu0 %v1823
        %v1894 = vpop.f32.mrb[0].mxu0
        %v1895 = vadd.f32 0.0, %v1894
        %v1896 = vpop.f32.mrb[0].mxu0
        %1897 = vmatprep.mubr.f32.mxu0 0.0
        %1898 = vmatmul.mubr.f32.gmra.mrb[0].mxu0 %v1826
        %v1899 = vpop.f32.mrb[0].mxu0
        %v1900 = vadd.f32 0.0, %v1899
        %v1901 = vpop.f32.mrb[0].mxu0
        %1902 = vdwg.mxu0
        %1903 = vst.msk [vmem:[#allocation2] sm:$0xff] %vm1141, %v1652
        %1904 = vst.msk [vmem:[#allocation2 + $0x8] sm:$0xff] %vm1141, %v1657
        %1905 = vst.msk [vmem:[#allocation2 + $0x10] sm:$0xff] %vm1141, %v1733
        %1906 = vst.msk [vmem:[#allocation2 + $0x18] sm:$0xff] %vm1141, %v1738
        %1907 = vst.msk [vmem:[#allocation2 + $0x20] sm:$0xff] %vm1141, %v1814
        %1908 = vst.msk [vmem:[#allocation2 + $0x28] sm:$0xff] %vm1141, %v1819
        %1909 = vst.msk [vmem:[#allocation2 + $0x30] sm:$0xff] %vm1141, %v1895
        %1910 = vst.msk [vmem:[#allocation2 + $0x38] sm:$0xff] %vm1141, %v1900
        %s1911 = scalar_lea.vmem %s544, 64 [#allocation3]
        %v1912 = vld [vmem:[%s1911] sm:$0xff]
        %v1913 = vld [vmem:[%s1911 + $0x8] sm:$0xff]
        %v1914 = vld [vmem:[%s1911 + $0x10] sm:$0xff]
        %v1915 = vld [vmem:[%s1911 + $0x18] sm:$0xff]
        %v1916 = vld [vmem:[%s1911 + $0x20] sm:$0xff]
        %v1917 = vld [vmem:[%s1911 + $0x28] sm:$0xff]
        %v1918 = vld [vmem:[%s1911 + $0x30] sm:$0xff]
        %v1919 = vld [vmem:[%s1911 + $0x38] sm:$0xff]
        %s1920 = scalar_lea.vmem %s8, 16
        %v1921 = vld [vmem:[%s1920] sm:$0xff]
        %v1922 = vld [vmem:[%s1920 + $0x8] sm:$0xff]
        %1923 = vrot.lane.b32.xlu0 %v889, 120
        %v1924 = vpop.permute.xlu0 %1923
        %1925 = vrot.lane.b32.xlu0 %v890, 120
        %v1926 = vpop.permute.xlu0 %1925
        %v1927 = vsel %vm1141, %v1924, 0
        %v1929 = vsel %vm1141, %v1926, 0
        %v1932 = vsel %vm1141, %v1912, 0
        %v1935 = vsel %vm1141, %v1913, 0
        %1937 = vmatprep.subr.mxu0 0.0
        %1938 = vmatpush1.xpose.msra.mxu0 %v1932
        %1939 = vmatprep.subr.mxu0 0.0
        %1940 = vmatpush1.xpose.msra.mxu0 %v1935
        %1941 = vmatprep.subr.mxu0 0.0
        %1942 = vmatpush1.xpose.msra.mxu0 0.0
        %1943 = vmatprep.subr.mxu0 0.0
        %1944 = vmatpush1.xpose.msra.mxu0 0.0
        %1945 = vmatprep.subr.mxu0 0.0
        %1946 = vmatpush1.xpose.msra.mxu0 0.0
        %1947 = vmatprep.subr.mxu0 0.0
        %1948 = vmatpush1.xpose.msra.mxu0 0.0
        %1949 = vmatprep.subr.mxu0 0.0
        %1950 = vmatpush1.xpose.msra.mxu0 0.0
        %1951 = vmatprep.subr.mxu0 0.0
        %1952 = vmatpush1.xpose.msra.mxu0 0.0
        %1953 = vmatprep.subr.mxu0 0.0
        %1954 = vmatpush1.xpose.msra.mxu0 0.0
        %1955 = vmatprep.subr.mxu0 0.0
        %1956 = vmatpush1.xpose.msra.mxu0 0.0
        %1957 = vmatprep.subr.mxu0 0.0
        %1958 = vmatpush1.xpose.msra.mxu0 0.0
        %1959 = vmatprep.subr.mxu0 0.0
        %1960 = vmatpush1.xpose.msra.mxu0 0.0
        %1961 = vmatprep.subr.mxu0 0.0
        %1962 = vmatpush1.xpose.msra.mxu0 0.0
        %1963 = vmatprep.subr.mxu0 0.0
        %1964 = vmatpush1.xpose.msra.mxu0 0.0
        %1965 = vmatprep.subr.mxu0 0.0
        %1966 = vmatpush1.xpose.msra.mxu0 0.0
        %1967 = vmatprep.subr.mxu0 0.0
        %1968 = vmatpush1.xpose.msra.mxu0 0.0
        %1969 = vmatprep.subr.mxu0 0.0
        %1970 = vmatpush1.xpose.msra.mxu0 0.0
        %1971 = vmatprep.subr.mxu0 0.0
        %1972 = vmatpush1.xpose.msra.mxu0 0.0
        %1973 = vmatprep.subr.mxu0 0.0
        %1974 = vmatpush1.xpose.msra.mxu0 0.0
        %1975 = vmatprep.subr.mxu0 0.0
        %1976 = vmatpush1.xpose.msra.mxu0 0.0
        %1977 = vmatprep.subr.mxu0 0.0
        %1978 = vmatpush1.xpose.msra.mxu0 0.0
        %1979 = vmatprep.subr.mxu0 0.0
        %1980 = vmatpush1.xpose.msra.mxu0 0.0
        %1981 = vmatprep.subr.mxu0 0.0
        %1982 = vmatpush1.xpose.msra.mxu0 0.0
        %1983 = vmatprep.subr.mxu0 0.0
        %1984 = vmatpush1.xpose.msra.mxu0 0.0
        %1985 = vmatprep.subr.mxu0 0.0
        %1986 = vmatpush1.xpose.msra.mxu0 0.0
        %1987 = vmatprep.subr.mxu0 0.0
        %1988 = vmatpush1.xpose.msra.mxu0 0.0
        %1989 = vmatprep.subr.mxu0 0.0
        %1990 = vmatpush1.xpose.msra.mxu0 0.0
        %1991 = vmatprep.subr.mxu0 0.0
        %1992 = vmatpush1.xpose.msra.mxu0 0.0
        %1993 = vmatprep.subr.mxu0 0.0
        %1994 = vmatpush1.xpose.msra.mxu0 0.0
        %1995 = vmatprep.subr.mxu0 0.0
        %1996 = vmatpush1.xpose.msra.mxu0 0.0
        %1997 = vmatprep.subr.mxu0 0.0
        %1998 = vmatpush1.xpose.msra.mxu0 0.0
        %1999 = vmatprep.subr.mxu0 0.0
        %2000 = vmatpush1.xpose.msra.mxu0 0.0
        %2001 = vmatprep.mubr.f32.mxu0 0.0
        %2002 = vmatmul.mubr.f32.gmra.mrb[0].mxu0 %v1927
        %v2003 = vpop.f32.mrb[0].mxu0
        %v2004 = vadd.f32 %v1921, %v2003
        %v2005 = vpop.f32.mrb[0].mxu0
        %2006 = vmatprep.mubr.f32.mxu0 0.0
        %2007 = vmatmul.mubr.f32.gmra.mrb[0].mxu0 %v1929
        %v2008 = vpop.f32.mrb[0].mxu0
        %v2009 = vadd.f32 %v1922, %v2008
        %v2010 = vpop.f32.mrb[0].mxu0
        %2011 = vdwg.mxu0
        %2012 = vrot.lane.b32.xlu0 %v891, 120
        %v2013 = vpop.permute.xlu0 %2012
        %2014 = vrot.lane.b32.xlu0 %v892, 120
        %v2015 = vpop.permute.xlu0 %2014
        %v2016 = vsel %vm1141, %v2013, 0
        %v2018 = vsel %vm1141, %v2015, 0
        %v2021 = vsel %vm1141, %v1914, 0
        %v2024 = vsel %vm1141, %v1915, 0
        %2026 = vmatprep.subr.mxu0 0.0
        %2027 = vmatpush1.xpose.msra.mxu0 %v2021
        %2028 = vmatprep.subr.mxu0 0.0
        %2029 = vmatpush1.xpose.msra.mxu0 %v2024
        %2030 = vmatprep.subr.mxu0 0.0
        %2031 = vmatpush1.xpose.msra.mxu0 0.0
        %2032 = vmatprep.subr.mxu0 0.0
        %2033 = vmatpush1.xpose.msra.mxu0 0.0
        %2034 = vmatprep.subr.mxu0 0.0
        %2035 = vmatpush1.xpose.msra.mxu0 0.0
        %2036 = vmatprep.subr.mxu0 0.0
        %2037 = vmatpush1.xpose.msra.mxu0 0.0
        %2038 = vmatprep.subr.mxu0 0.0
        %2039 = vmatpush1.xpose.msra.mxu0 0.0
        %2040 = vmatprep.subr.mxu0 0.0
        %2041 = vmatpush1.xpose.msra.mxu0 0.0
        %2042 = vmatprep.subr.mxu0 0.0
        %2043 = vmatpush1.xpose.msra.mxu0 0.0
        %2044 = vmatprep.subr.mxu0 0.0
        %2045 = vmatpush1.xpose.msra.mxu0 0.0
        %2046 = vmatprep.subr.mxu0 0.0
        %2047 = vmatpush1.xpose.msra.mxu0 0.0
        %2048 = vmatprep.subr.mxu0 0.0
        %2049 = vmatpush1.xpose.msra.mxu0 0.0
        %2050 = vmatprep.subr.mxu0 0.0
        %2051 = vmatpush1.xpose.msra.mxu0 0.0
        %2052 = vmatprep.subr.mxu0 0.0
        %2053 = vmatpush1.xpose.msra.mxu0 0.0
        %2054 = vmatprep.subr.mxu0 0.0
        %2055 = vmatpush1.xpose.msra.mxu0 0.0
        %2056 = vmatprep.subr.mxu0 0.0
        %2057 = vmatpush1.xpose.msra.mxu0 0.0
        %2058 = vmatprep.subr.mxu0 0.0
        %2059 = vmatpush1.xpose.msra.mxu0 0.0
        %2060 = vmatprep.subr.mxu0 0.0
        %2061 = vmatpush1.xpose.msra.mxu0 0.0
        %2062 = vmatprep.subr.mxu0 0.0
        %2063 = vmatpush1.xpose.msra.mxu0 0.0
        %2064 = vmatprep.subr.mxu0 0.0
        %2065 = vmatpush1.xpose.msra.mxu0 0.0
        %2066 = vmatprep.subr.mxu0 0.0
        %2067 = vmatpush1.xpose.msra.mxu0 0.0
        %2068 = vmatprep.subr.mxu0 0.0
        %2069 = vmatpush1.xpose.msra.mxu0 0.0
        %2070 = vmatprep.subr.mxu0 0.0
        %2071 = vmatpush1.xpose.msra.mxu0 0.0
        %2072 = vmatprep.subr.mxu0 0.0
        %2073 = vmatpush1.xpose.msra.mxu0 0.0
        %2074 = vmatprep.subr.mxu0 0.0
        %2075 = vmatpush1.xpose.msra.mxu0 0.0
        %2076 = vmatprep.subr.mxu0 0.0
        %2077 = vmatpush1.xpose.msra.mxu0 0.0
        %2078 = vmatprep.subr.mxu0 0.0
        %2079 = vmatpush1.xpose.msra.mxu0 0.0
        %2080 = vmatprep.subr.mxu0 0.0
        %2081 = vmatpush1.xpose.msra.mxu0 0.0
        %2082 = vmatprep.subr.mxu0 0.0
        %2083 = vmatpush1.xpose.msra.mxu0 0.0
        %2084 = vmatprep.subr.mxu0 0.0
        %2085 = vmatpush1.xpose.msra.mxu0 0.0
        %2086 = vmatprep.subr.mxu0 0.0
        %2087 = vmatpush1.xpose.msra.mxu0 0.0
        %2088 = vmatprep.subr.mxu0 0.0
        %2089 = vmatpush1.xpose.msra.mxu0 0.0
        %2090 = vmatprep.mubr.f32.mxu0 0.0
        %2091 = vmatmul.mubr.f32.gmra.mrb[0].mxu0 %v2016
        %v2092 = vpop.f32.mrb[0].mxu0
        %v2093 = vadd.f32 %v1921, %v2092
        %v2094 = vpop.f32.mrb[0].mxu0
        %2095 = vmatprep.mubr.f32.mxu0 0.0
        %2096 = vmatmul.mubr.f32.gmra.mrb[0].mxu0 %v2018
        %v2097 = vpop.f32.mrb[0].mxu0
        %v2098 = vadd.f32 %v1922, %v2097
        %v2099 = vpop.f32.mrb[0].mxu0
        %2100 = vdwg.mxu0
        %2101 = vrot.lane.b32.xlu0 %v893, 120
        %v2102 = vpop.permute.xlu0 %2101
        %2103 = vrot.lane.b32.xlu0 %v894, 120
        %v2104 = vpop.permute.xlu0 %2103
        %v2105 = vsel %vm1141, %v2102, 0
        %v2107 = vsel %vm1141, %v2104, 0
        %v2110 = vsel %vm1141, %v1916, 0
        %v2113 = vsel %vm1141, %v1917, 0
        %2115 = vmatprep.subr.mxu0 0.0
        %2116 = vmatpush1.xpose.msra.mxu0 %v2110
        %2117 = vmatprep.subr.mxu0 0.0
        %2118 = vmatpush1.xpose.msra.mxu0 %v2113
        %2119 = vmatprep.subr.mxu0 0.0
        %2120 = vmatpush1.xpose.msra.mxu0 0.0
        %2121 = vmatprep.subr.mxu0 0.0
        %2122 = vmatpush1.xpose.msra.mxu0 0.0
        %2123 = vmatprep.subr.mxu0 0.0
        %2124 = vmatpush1.xpose.msra.mxu0 0.0
        %2125 = vmatprep.subr.mxu0 0.0
        %2126 = vmatpush1.xpose.msra.mxu0 0.0
        %2127 = vmatprep.subr.mxu0 0.0
        %2128 = vmatpush1.xpose.msra.mxu0 0.0
        %2129 = vmatprep.subr.mxu0 0.0
        %2130 = vmatpush1.xpose.msra.mxu0 0.0
        %2131 = vmatprep.subr.mxu0 0.0
        %2132 = vmatpush1.xpose.msra.mxu0 0.0
        %2133 = vmatprep.subr.mxu0 0.0
        %2134 = vmatpush1.xpose.msra.mxu0 0.0
        %2135 = vmatprep.subr.mxu0 0.0
        %2136 = vmatpush1.xpose.msra.mxu0 0.0
        %2137 = vmatprep.subr.mxu0 0.0
        %2138 = vmatpush1.xpose.msra.mxu0 0.0
        %2139 = vmatprep.subr.mxu0 0.0
        %2140 = vmatpush1.xpose.msra.mxu0 0.0
        %2141 = vmatprep.subr.mxu0 0.0
        %2142 = vmatpush1.xpose.msra.mxu0 0.0
        %2143 = vmatprep.subr.mxu0 0.0
        %2144 = vmatpush1.xpose.msra.mxu0 0.0
        %2145 = vmatprep.subr.mxu0 0.0
        %2146 = vmatpush1.xpose.msra.mxu0 0.0
        %2147 = vmatprep.subr.mxu0 0.0
        %2148 = vmatpush1.xpose.msra.mxu0 0.0
        %2149 = vmatprep.subr.mxu0 0.0
        %2150 = vmatpush1.xpose.msra.mxu0 0.0
        %2151 = vmatprep.subr.mxu0 0.0
        %2152 = vmatpush1.xpose.msra.mxu0 0.0
        %2153 = vmatprep.subr.mxu0 0.0
        %2154 = vmatpush1.xpose.msra.mxu0 0.0
        %2155 = vmatprep.subr.mxu0 0.0
        %2156 = vmatpush1.xpose.msra.mxu0 0.0
        %2157 = vmatprep.subr.mxu0 0.0
        %2158 = vmatpush1.xpose.msra.mxu0 0.0
        %2159 = vmatprep.subr.mxu0 0.0
        %2160 = vmatpush1.xpose.msra.mxu0 0.0
        %2161 = vmatprep.subr.mxu0 0.0
        %2162 = vmatpush1.xpose.msra.mxu0 0.0
        %2163 = vmatprep.subr.mxu0 0.0
        %2164 = vmatpush1.xpose.msra.mxu0 0.0
        %2165 = vmatprep.subr.mxu0 0.0
        %2166 = vmatpush1.xpose.msra.mxu0 0.0
        %2167 = vmatprep.subr.mxu0 0.0
        %2168 = vmatpush1.xpose.msra.mxu0 0.0
        %2169 = vmatprep.subr.mxu0 0.0
        %2170 = vmatpush1.xpose.msra.mxu0 0.0
        %2171 = vmatprep.subr.mxu0 0.0
        %2172 = vmatpush1.xpose.msra.mxu0 0.0
        %2173 = vmatprep.subr.mxu0 0.0
        %2174 = vmatpush1.xpose.msra.mxu0 0.0
        %2175 = vmatprep.subr.mxu0 0.0
        %2176 = vmatpush1.xpose.msra.mxu0 0.0
        %2177 = vmatprep.subr.mxu0 0.0
        %2178 = vmatpush1.xpose.msra.mxu0 0.0
        %2179 = vmatprep.mubr.f32.mxu0 0.0
        %2180 = vmatmul.mubr.f32.gmra.mrb[0].mxu0 %v2105
        %v2181 = vpop.f32.mrb[0].mxu0
        %v2182 = vadd.f32 %v1921, %v2181
        %v2183 = vpop.f32.mrb[0].mxu0
        %2184 = vmatprep.mubr.f32.mxu0 0.0
        %2185 = vmatmul.mubr.f32.gmra.mrb[0].mxu0 %v2107
        %v2186 = vpop.f32.mrb[0].mxu0
        %v2187 = vadd.f32 %v1922, %v2186
        %v2188 = vpop.f32.mrb[0].mxu0
        %2189 = vdwg.mxu0
        %2190 = vrot.lane.b32.xlu0 %v895, 120
        %v2191 = vpop.permute.xlu0 %2190
        %2192 = vrot.lane.b32.xlu0 %v896, 120
        %v2193 = vpop.permute.xlu0 %2192
        %v2194 = vsel %vm1141, %v2191, 0
        %v2196 = vsel %vm1141, %v2193, 0
        %v2199 = vsel %vm1141, %v1918, 0
        %v2202 = vsel %vm1141, %v1919, 0
        %2204 = vmatprep.subr.mxu0 0.0
        %2205 = vmatpush1.xpose.msra.mxu0 %v2199
        %2206 = vmatprep.subr.mxu0 0.0
        %2207 = vmatpush1.xpose.msra.mxu0 %v2202
        %2208 = vmatprep.subr.mxu0 0.0
        %2209 = vmatpush1.xpose.msra.mxu0 0.0
        %2210 = vmatprep.subr.mxu0 0.0
        %2211 = vmatpush1.xpose.msra.mxu0 0.0
        %2212 = vmatprep.subr.mxu0 0.0
        %2213 = vmatpush1.xpose.msra.mxu0 0.0
        %2214 = vmatprep.subr.mxu0 0.0
        %2215 = vmatpush1.xpose.msra.mxu0 0.0
        %2216 = vmatprep.subr.mxu0 0.0
        %2217 = vmatpush1.xpose.msra.mxu0 0.0
        %2218 = vmatprep.subr.mxu0 0.0
        %2219 = vmatpush1.xpose.msra.mxu0 0.0
        %2220 = vmatprep.subr.mxu0 0.0
        %2221 = vmatpush1.xpose.msra.mxu0 0.0
        %2222 = vmatprep.subr.mxu0 0.0
        %2223 = vmatpush1.xpose.msra.mxu0 0.0
        %2224 = vmatprep.subr.mxu0 0.0
        %2225 = vmatpush1.xpose.msra.mxu0 0.0
        %2226 = vmatprep.subr.mxu0 0.0
        %2227 = vmatpush1.xpose.msra.mxu0 0.0
        %2228 = vmatprep.subr.mxu0 0.0
        %2229 = vmatpush1.xpose.msra.mxu0 0.0
        %2230 = vmatprep.subr.mxu0 0.0
        %2231 = vmatpush1.xpose.msra.mxu0 0.0
        %2232 = vmatprep.subr.mxu0 0.0
        %2233 = vmatpush1.xpose.msra.mxu0 0.0
        %2234 = vmatprep.subr.mxu0 0.0
        %2235 = vmatpush1.xpose.msra.mxu0 0.0
        %2236 = vmatprep.subr.mxu0 0.0
        %2237 = vmatpush1.xpose.msra.mxu0 0.0
        %2238 = vmatprep.subr.mxu0 0.0
        %2239 = vmatpush1.xpose.msra.mxu0 0.0
        %2240 = vmatprep.subr.mxu0 0.0
        %2241 = vmatpush1.xpose.msra.mxu0 0.0
        %2242 = vmatprep.subr.mxu0 0.0
        %2243 = vmatpush1.xpose.msra.mxu0 0.0
        %2244 = vmatprep.subr.mxu0 0.0
        %2245 = vmatpush1.xpose.msra.mxu0 0.0
        %2246 = vmatprep.subr.mxu0 0.0
        %2247 = vmatpush1.xpose.msra.mxu0 0.0
        %2248 = vmatprep.subr.mxu0 0.0
        %2249 = vmatpush1.xpose.msra.mxu0 0.0
        %2250 = vmatprep.subr.mxu0 0.0
        %2251 = vmatpush1.xpose.msra.mxu0 0.0
        %2252 = vmatprep.subr.mxu0 0.0
        %2253 = vmatpush1.xpose.msra.mxu0 0.0
        %2254 = vmatprep.subr.mxu0 0.0
        %2255 = vmatpush1.xpose.msra.mxu0 0.0
        %2256 = vmatprep.subr.mxu0 0.0
        %2257 = vmatpush1.xpose.msra.mxu0 0.0
        %2258 = vmatprep.subr.mxu0 0.0
        %2259 = vmatpush1.xpose.msra.mxu0 0.0
        %2260 = vmatprep.subr.mxu0 0.0
        %2261 = vmatpush1.xpose.msra.mxu0 0.0
        %2262 = vmatprep.subr.mxu0 0.0
        %2263 = vmatpush1.xpose.msra.mxu0 0.0
        %2264 = vmatprep.subr.mxu0 0.0
        %2265 = vmatpush1.xpose.msra.mxu0 0.0
        %2266 = vmatprep.subr.mxu0 0.0
        %2267 = vmatpush1.xpose.msra.mxu0 0.0
        %2268 = vmatprep.mubr.f32.mxu0 0.0
        %2269 = vmatmul.mubr.f32.gmra.mrb[0].mxu0 %v2194
        %v2270 = vpop.f32.mrb[0].mxu0
        %v2271 = vadd.f32 %v1921, %v2270
        %v2272 = vpop.f32.mrb[0].mxu0
        %2273 = vmatprep.mubr.f32.mxu0 0.0
        %2274 = vmatmul.mubr.f32.gmra.mrb[0].mxu0 %v2196
        %v2275 = vpop.f32.mrb[0].mxu0
        %v2276 = vadd.f32 %v1922, %v2275
        %v2277 = vpop.f32.mrb[0].mxu0
        %2278 = vdwg.mxu0
        %v2279 = vsel %vm1490, %v2004, -inf
        %2280 = vmax.xlane.f32.xlu0 %v2279
        %v2281 = vpop.xlane.xlu0 %2280
        %v2282 = vsel %vm1490, %v2009, -inf
        %2283 = vmax.xlane.f32.xlu0 %v2282
        %v2284 = vpop.xlane.xlu0 %2283
        %v2285 = vsel %vm1490, %v2093, -inf
        %2286 = vmax.xlane.f32.xlu0 %v2285
        %v2287 = vpop.xlane.xlu0 %2286
        %v2288 = vsel %vm1490, %v2098, -inf
        %2289 = vmax.xlane.f32.xlu0 %v2288
        %v2290 = vpop.xlane.xlu0 %2289
        %v2291 = vsel %vm1490, %v2182, -inf
        %2292 = vmax.xlane.f32.xlu0 %v2291
        %v2293 = vpop.xlane.xlu0 %2292
        %v2294 = vsel %vm1490, %v2187, -inf
        %2295 = vmax.xlane.f32.xlu0 %v2294
        %v2296 = vpop.xlane.xlu0 %2295
        %v2297 = vsel %vm1490, %v2271, -inf
        %2298 = vmax.xlane.f32.xlu0 %v2297
        %v2299 = vpop.xlane.xlu0 %2298
        %v2300 = vsel %vm1490, %v2276, -inf
        %2301 = vmax.xlane.f32.xlu0 %v2300
        %v2302 = vpop.xlane.xlu0 %2301
        %v2303 = vsub.f32 %v2004, %v2281
        %v2304 = vsub.f32 %v2009, %v2284
        %v2305 = vsub.f32 %v2093, %v2287
        %v2306 = vsub.f32 %v2098, %v2290
        %v2307 = vsub.f32 %v2182, %v2293
        %v2308 = vsub.f32 %v2187, %v2296
        %v2309 = vsub.f32 %v2271, %v2299
        %v2310 = vsub.f32 %v2276, %v2302
        %v2311 = vmul.f32 %v2303, 1.442695
        %v2312 = vpow.pop %v2311
        %v2313 = vmul.f32 %v2304, 1.442695
        %v2314 = vpow.pop %v2313
        %v2315 = vmul.f32 %v2305, 1.442695
        %v2316 = vpow.pop %v2315
        %v2317 = vmul.f32 %v2306, 1.442695
        %v2318 = vpow.pop %v2317
        %v2319 = vmul.f32 %v2307, 1.442695
        %v2320 = vpow.pop %v2319
        %v2321 = vmul.f32 %v2308, 1.442695
        %v2322 = vpow.pop %v2321
        %v2323 = vmul.f32 %v2309, 1.442695
        %v2324 = vpow.pop %v2323
        %v2325 = vmul.f32 %v2310, 1.442695
        %v2326 = vpow.pop %v2325
        %v2327 = vsel %vm1490, %v2312, 0.0
        %2328 = vadd.xlane.f32.xlu0 %v2327
        %v2329 = vpop.xlane.xlu0 %2328
        %v2330 = vsel %vm1490, %v2314, 0.0
        %2331 = vadd.xlane.f32.xlu0 %v2330
        %v2332 = vpop.xlane.xlu0 %2331
        %v2333 = vsel %vm1490, %v2316, 0.0
        %2334 = vadd.xlane.f32.xlu0 %v2333
        %v2335 = vpop.xlane.xlu0 %2334
        %v2336 = vsel %vm1490, %v2318, 0.0
        %2337 = vadd.xlane.f32.xlu0 %v2336
        %v2338 = vpop.xlane.xlu0 %2337
        %v2339 = vsel %vm1490, %v2320, 0.0
        %2340 = vadd.xlane.f32.xlu0 %v2339
        %v2341 = vpop.xlane.xlu0 %2340
        %v2342 = vsel %vm1490, %v2322, 0.0
        %2343 = vadd.xlane.f32.xlu0 %v2342
        %v2344 = vpop.xlane.xlu0 %2343
        %v2345 = vsel %vm1490, %v2324, 0.0
        %2346 = vadd.xlane.f32.xlu0 %v2345
        %v2347 = vpop.xlane.xlu0 %2346
        %v2348 = vsel %vm1490, %v2326, 0.0
        %2349 = vadd.xlane.f32.xlu0 %v2348
        %v2350 = vpop.xlane.xlu0 %2349
        %v2351 = vrcp.pop %v2329
        %v2352 = vrcp.pop %v2332
        %v2353 = vrcp.pop %v2335
        %v2354 = vrcp.pop %v2338
        %v2355 = vrcp.pop %v2341
        %v2356 = vrcp.pop %v2344
        %v2357 = vrcp.pop %v2347
        %v2358 = vrcp.pop %v2350
        %v2359 = vmul.f32 %v2312, %v2351
        %v2360 = vmul.f32 %v2314, %v2352
        %v2361 = vmul.f32 %v2316, %v2353
        %v2362 = vmul.f32 %v2318, %v2354
        %v2363 = vmul.f32 %v2320, %v2355
        %v2364 = vmul.f32 %v2322, %v2356
        %v2365 = vmul.f32 %v2324, %v2357
        %v2366 = vmul.f32 %v2326, %v2358
        %2369 = vrot.lane.b32.xlu0 %v1085, 120
        %v2370 = vpop.permute.xlu0 %2369
        %2371 = vrot.lane.b32.xlu0 %v1090, 120
        %v2372 = vpop.permute.xlu0 %2371
        %v2376 = vsel %vm1490, %v2359, 0
        %v2379 = vsel %vm1490, %v2360, 0
        %2381 = vmatprep.subr.mxu0 0.0
        %2382 = vmatpush1.msra.mxu0 %v2370
        %2383 = vmatprep.subr.mxu0 0.0
        %2384 = vmatpush1.msra.mxu0 %v2372
        %2385 = vmatprep.subr.mxu0 0.0
        %2386 = vmatpush1.msra.mxu0 0.0
        %2387 = vmatprep.subr.mxu0 0.0
        %2388 = vmatpush1.msra.mxu0 0.0
        %2389 = vmatprep.subr.mxu0 0.0
        %2390 = vmatpush1.msra.mxu0 0.0
        %2391 = vmatprep.subr.mxu0 0.0
        %2392 = vmatpush1.msra.mxu0 0.0
        %2393 = vmatprep.subr.mxu0 0.0
        %2394 = vmatpush1.msra.mxu0 0.0
        %2395 = vmatprep.subr.mxu0 0.0
        %2396 = vmatpush1.msra.mxu0 0.0
        %2397 = vmatprep.subr.mxu0 0.0
        %2398 = vmatpush1.msra.mxu0 0.0
        %2399 = vmatprep.subr.mxu0 0.0
        %2400 = vmatpush1.msra.mxu0 0.0
        %2401 = vmatprep.subr.mxu0 0.0
        %2402 = vmatpush1.msra.mxu0 0.0
        %2403 = vmatprep.subr.mxu0 0.0
        %2404 = vmatpush1.msra.mxu0 0.0
        %2405 = vmatprep.subr.mxu0 0.0
        %2406 = vmatpush1.msra.mxu0 0.0
        %2407 = vmatprep.subr.mxu0 0.0
        %2408 = vmatpush1.msra.mxu0 0.0
        %2409 = vmatprep.subr.mxu0 0.0
        %2410 = vmatpush1.msra.mxu0 0.0
        %2411 = vmatprep.subr.mxu0 0.0
        %2412 = vmatpush1.msra.mxu0 0.0
        %2413 = vmatprep.subr.mxu0 0.0
        %2414 = vmatpush1.msra.mxu0 0.0
        %2415 = vmatprep.subr.mxu0 0.0
        %2416 = vmatpush1.msra.mxu0 0.0
        %2417 = vmatprep.subr.mxu0 0.0
        %2418 = vmatpush1.msra.mxu0 0.0
        %2419 = vmatprep.subr.mxu0 0.0
        %2420 = vmatpush1.msra.mxu0 0.0
        %2421 = vmatprep.subr.mxu0 0.0
        %2422 = vmatpush1.msra.mxu0 0.0
        %2423 = vmatprep.subr.mxu0 0.0
        %2424 = vmatpush1.msra.mxu0 0.0
        %2425 = vmatprep.subr.mxu0 0.0
        %2426 = vmatpush1.msra.mxu0 0.0
        %2427 = vmatprep.subr.mxu0 0.0
        %2428 = vmatpush1.msra.mxu0 0.0
        %2429 = vmatprep.subr.mxu0 0.0
        %2430 = vmatpush1.msra.mxu0 0.0
        %2431 = vmatprep.subr.mxu0 0.0
        %2432 = vmatpush1.msra.mxu0 0.0
        %2433 = vmatprep.subr.mxu0 0.0
        %2434 = vmatpush1.msra.mxu0 0.0
        %2435 = vmatprep.subr.mxu0 0.0
        %2436 = vmatpush1.msra.mxu0 0.0
        %2437 = vmatprep.subr.mxu0 0.0
        %2438 = vmatpush1.msra.mxu0 0.0
        %2439 = vmatprep.subr.mxu0 0.0
        %2440 = vmatpush1.msra.mxu0 0.0
        %2441 = vmatprep.subr.mxu0 0.0
        %2442 = vmatpush1.msra.mxu0 0.0
        %2443 = vmatprep.subr.mxu0 0.0
        %2444 = vmatpush1.msra.mxu0 0.0
        %2445 = vmatprep.mubr.f32.mxu0 0.0
        %2446 = vmatmul.mubr.f32.gmra.mrb[0].mxu0 %v2376
        %v2447 = vpop.f32.mrb[0].mxu0
        %v2448 = vadd.f32 0.0, %v2447
        %v2449 = vpop.f32.mrb[0].mxu0
        %2450 = vmatprep.mubr.f32.mxu0 0.0
        %2451 = vmatmul.mubr.f32.gmra.mrb[0].mxu0 %v2379
        %v2452 = vpop.f32.mrb[0].mxu0
        %v2453 = vadd.f32 0.0, %v2452
        %v2454 = vpop.f32.mrb[0].mxu0
        %2455 = vdwg.mxu0
        %2458 = vrot.lane.b32.xlu0 %v1095, 120
        %v2459 = vpop.permute.xlu0 %2458
        %2460 = vrot.lane.b32.xlu0 %v1100, 120
        %v2461 = vpop.permute.xlu0 %2460
        %v2465 = vsel %vm1490, %v2361, 0
        %v2468 = vsel %vm1490, %v2362, 0
        %2470 = vmatprep.subr.mxu0 0.0
        %2471 = vmatpush1.msra.mxu0 %v2459
        %2472 = vmatprep.subr.mxu0 0.0
        %2473 = vmatpush1.msra.mxu0 %v2461
        %2474 = vmatprep.subr.mxu0 0.0
        %2475 = vmatpush1.msra.mxu0 0.0
        %2476 = vmatprep.subr.mxu0 0.0
        %2477 = vmatpush1.msra.mxu0 0.0
        %2478 = vmatprep.subr.mxu0 0.0
        %2479 = vmatpush1.msra.mxu0 0.0
        %2480 = vmatprep.subr.mxu0 0.0
        %2481 = vmatpush1.msra.mxu0 0.0
        %2482 = vmatprep.subr.mxu0 0.0
        %2483 = vmatpush1.msra.mxu0 0.0
        %2484 = vmatprep.subr.mxu0 0.0
        %2485 = vmatpush1.msra.mxu0 0.0
        %2486 = vmatprep.subr.mxu0 0.0
        %2487 = vmatpush1.msra.mxu0 0.0
        %2488 = vmatprep.subr.mxu0 0.0
        %2489 = vmatpush1.msra.mxu0 0.0
        %2490 = vmatprep.subr.mxu0 0.0
        %2491 = vmatpush1.msra.mxu0 0.0
        %2492 = vmatprep.subr.mxu0 0.0
        %2493 = vmatpush1.msra.mxu0 0.0
        %2494 = vmatprep.subr.mxu0 0.0
        %2495 = vmatpush1.msra.mxu0 0.0
        %2496 = vmatprep.subr.mxu0 0.0
        %2497 = vmatpush1.msra.mxu0 0.0
        %2498 = vmatprep.subr.mxu0 0.0
        %2499 = vmatpush1.msra.mxu0 0.0
        %2500 = vmatprep.subr.mxu0 0.0
        %2501 = vmatpush1.msra.mxu0 0.0
        %2502 = vmatprep.subr.mxu0 0.0
        %2503 = vmatpush1.msra.mxu0 0.0
        %2504 = vmatprep.subr.mxu0 0.0
        %2505 = vmatpush1.msra.mxu0 0.0
        %2506 = vmatprep.subr.mxu0 0.0
        %2507 = vmatpush1.msra.mxu0 0.0
        %2508 = vmatprep.subr.mxu0 0.0
        %2509 = vmatpush1.msra.mxu0 0.0
        %2510 = vmatprep.subr.mxu0 0.0
        %2511 = vmatpush1.msra.mxu0 0.0
        %2512 = vmatprep.subr.mxu0 0.0
        %2513 = vmatpush1.msra.mxu0 0.0
        %2514 = vmatprep.subr.mxu0 0.0
        %2515 = vmatpush1.msra.mxu0 0.0
        %2516 = vmatprep.subr.mxu0 0.0
        %2517 = vmatpush1.msra.mxu0 0.0
        %2518 = vmatprep.subr.mxu0 0.0
        %2519 = vmatpush1.msra.mxu0 0.0
        %2520 = vmatprep.subr.mxu0 0.0
        %2521 = vmatpush1.msra.mxu0 0.0
        %2522 = vmatprep.subr.mxu0 0.0
        %2523 = vmatpush1.msra.mxu0 0.0
        %2524 = vmatprep.subr.mxu0 0.0
        %2525 = vmatpush1.msra.mxu0 0.0
        %2526 = vmatprep.subr.mxu0 0.0
        %2527 = vmatpush1.msra.mxu0 0.0
        %2528 = vmatprep.subr.mxu0 0.0
        %2529 = vmatpush1.msra.mxu0 0.0
        %2530 = vmatprep.subr.mxu0 0.0
        %2531 = vmatpush1.msra.mxu0 0.0
        %2532 = vmatprep.subr.mxu0 0.0
        %2533 = vmatpush1.msra.mxu0 0.0
        %2534 = vmatprep.mubr.f32.mxu0 0.0
        %2535 = vmatmul.mubr.f32.gmra.mrb[0].mxu0 %v2465
        %v2536 = vpop.f32.mrb[0].mxu0
        %v2537 = vadd.f32 0.0, %v2536
        %v2538 = vpop.f32.mrb[0].mxu0
        %2539 = vmatprep.mubr.f32.mxu0 0.0
        %2540 = vmatmul.mubr.f32.gmra.mrb[0].mxu0 %v2468
        %v2541 = vpop.f32.mrb[0].mxu0
        %v2542 = vadd.f32 0.0, %v2541
        %v2543 = vpop.f32.mrb[0].mxu0
        %2544 = vdwg.mxu0
        %2547 = vrot.lane.b32.xlu0 %v1105, 120
        %v2548 = vpop.permute.xlu0 %2547
        %2549 = vrot.lane.b32.xlu0 %v1110, 120
        %v2550 = vpop.permute.xlu0 %2549
        %v2554 = vsel %vm1490, %v2363, 0
        %v2557 = vsel %vm1490, %v2364, 0
        %2559 = vmatprep.subr.mxu0 0.0
        %2560 = vmatpush1.msra.mxu0 %v2548
        %2561 = vmatprep.subr.mxu0 0.0
        %2562 = vmatpush1.msra.mxu0 %v2550
        %2563 = vmatprep.subr.mxu0 0.0
        %2564 = vmatpush1.msra.mxu0 0.0
        %2565 = vmatprep.subr.mxu0 0.0
        %2566 = vmatpush1.msra.mxu0 0.0
        %2567 = vmatprep.subr.mxu0 0.0
        %2568 = vmatpush1.msra.mxu0 0.0
        %2569 = vmatprep.subr.mxu0 0.0
        %2570 = vmatpush1.msra.mxu0 0.0
        %2571 = vmatprep.subr.mxu0 0.0
        %2572 = vmatpush1.msra.mxu0 0.0
        %2573 = vmatprep.subr.mxu0 0.0
        %2574 = vmatpush1.msra.mxu0 0.0
        %2575 = vmatprep.subr.mxu0 0.0
        %2576 = vmatpush1.msra.mxu0 0.0
        %2577 = vmatprep.subr.mxu0 0.0
        %2578 = vmatpush1.msra.mxu0 0.0
        %2579 = vmatprep.subr.mxu0 0.0
        %2580 = vmatpush1.msra.mxu0 0.0
        %2581 = vmatprep.subr.mxu0 0.0
        %2582 = vmatpush1.msra.mxu0 0.0
        %2583 = vmatprep.subr.mxu0 0.0
        %2584 = vmatpush1.msra.mxu0 0.0
        %2585 = vmatprep.subr.mxu0 0.0
        %2586 = vmatpush1.msra.mxu0 0.0
        %2587 = vmatprep.subr.mxu0 0.0
        %2588 = vmatpush1.msra.mxu0 0.0
        %2589 = vmatprep.subr.mxu0 0.0
        %2590 = vmatpush1.msra.mxu0 0.0
        %2591 = vmatprep.subr.mxu0 0.0
        %2592 = vmatpush1.msra.mxu0 0.0
        %2593 = vmatprep.subr.mxu0 0.0
        %2594 = vmatpush1.msra.mxu0 0.0
        %2595 = vmatprep.subr.mxu0 0.0
        %2596 = vmatpush1.msra.mxu0 0.0
        %2597 = vmatprep.subr.mxu0 0.0
        %2598 = vmatpush1.msra.mxu0 0.0
        %2599 = vmatprep.subr.mxu0 0.0
        %2600 = vmatpush1.msra.mxu0 0.0
        %2601 = vmatprep.subr.mxu0 0.0
        %2602 = vmatpush1.msra.mxu0 0.0
        %2603 = vmatprep.subr.mxu0 0.0
        %2604 = vmatpush1.msra.mxu0 0.0
        %2605 = vmatprep.subr.mxu0 0.0
        %2606 = vmatpush1.msra.mxu0 0.0
        %2607 = vmatprep.subr.mxu0 0.0
        %2608 = vmatpush1.msra.mxu0 0.0
        %2609 = vmatprep.subr.mxu0 0.0
        %2610 = vmatpush1.msra.mxu0 0.0
        %2611 = vmatprep.subr.mxu0 0.0
        %2612 = vmatpush1.msra.mxu0 0.0
        %2613 = vmatprep.subr.mxu0 0.0
        %2614 = vmatpush1.msra.mxu0 0.0
        %2615 = vmatprep.subr.mxu0 0.0
        %2616 = vmatpush1.msra.mxu0 0.0
        %2617 = vmatprep.subr.mxu0 0.0
        %2618 = vmatpush1.msra.mxu0 0.0
        %2619 = vmatprep.subr.mxu0 0.0
        %2620 = vmatpush1.msra.mxu0 0.0
        %2621 = vmatprep.subr.mxu0 0.0
        %2622 = vmatpush1.msra.mxu0 0.0
        %2623 = vmatprep.mubr.f32.mxu0 0.0
        %2624 = vmatmul.mubr.f32.gmra.mrb[0].mxu0 %v2554
        %v2625 = vpop.f32.mrb[0].mxu0
        %v2626 = vadd.f32 0.0, %v2625
        %v2627 = vpop.f32.mrb[0].mxu0
        %2628 = vmatprep.mubr.f32.mxu0 0.0
        %2629 = vmatmul.mubr.f32.gmra.mrb[0].mxu0 %v2557
        %v2630 = vpop.f32.mrb[0].mxu0
        %v2631 = vadd.f32 0.0, %v2630
        %v2632 = vpop.f32.mrb[0].mxu0
        %2633 = vdwg.mxu0
        %2636 = vrot.lane.b32.xlu0 %v1115, 120
        %v2637 = vpop.permute.xlu0 %2636
        %2638 = vrot.lane.b32.xlu0 %v1120, 120
        %v2639 = vpop.permute.xlu0 %2638
        %v2643 = vsel %vm1490, %v2365, 0
        %v2646 = vsel %vm1490, %v2366, 0
        %2648 = vmatprep.subr.mxu0 0.0
        %2649 = vmatpush1.msra.mxu0 %v2637
        %2650 = vmatprep.subr.mxu0 0.0
        %2651 = vmatpush1.msra.mxu0 %v2639
        %2652 = vmatprep.subr.mxu0 0.0
        %2653 = vmatpush1.msra.mxu0 0.0
        %2654 = vmatprep.subr.mxu0 0.0
        %2655 = vmatpush1.msra.mxu0 0.0
        %2656 = vmatprep.subr.mxu0 0.0
        %2657 = vmatpush1.msra.mxu0 0.0
        %2658 = vmatprep.subr.mxu0 0.0
        %2659 = vmatpush1.msra.mxu0 0.0
        %2660 = vmatprep.subr.mxu0 0.0
        %2661 = vmatpush1.msra.mxu0 0.0
        %2662 = vmatprep.subr.mxu0 0.0
        %2663 = vmatpush1.msra.mxu0 0.0
        %2664 = vmatprep.subr.mxu0 0.0
        %2665 = vmatpush1.msra.mxu0 0.0
        %2666 = vmatprep.subr.mxu0 0.0
        %2667 = vmatpush1.msra.mxu0 0.0
        %2668 = vmatprep.subr.mxu0 0.0
        %2669 = vmatpush1.msra.mxu0 0.0
        %2670 = vmatprep.subr.mxu0 0.0
        %2671 = vmatpush1.msra.mxu0 0.0
        %2672 = vmatprep.subr.mxu0 0.0
        %2673 = vmatpush1.msra.mxu0 0.0
        %2674 = vmatprep.subr.mxu0 0.0
        %2675 = vmatpush1.msra.mxu0 0.0
        %2676 = vmatprep.subr.mxu0 0.0
        %2677 = vmatpush1.msra.mxu0 0.0
        %2678 = vmatprep.subr.mxu0 0.0
        %2679 = vmatpush1.msra.mxu0 0.0
        %2680 = vmatprep.subr.mxu0 0.0
        %2681 = vmatpush1.msra.mxu0 0.0
        %2682 = vmatprep.subr.mxu0 0.0
        %2683 = vmatpush1.msra.mxu0 0.0
        %2684 = vmatprep.subr.mxu0 0.0
        %2685 = vmatpush1.msra.mxu0 0.0
        %2686 = vmatprep.subr.mxu0 0.0
        %2687 = vmatpush1.msra.mxu0 0.0
        %2688 = vmatprep.subr.mxu0 0.0
        %2689 = vmatpush1.msra.mxu0 0.0
        %2690 = vmatprep.subr.mxu0 0.0
        %2691 = vmatpush1.msra.mxu0 0.0
        %2692 = vmatprep.subr.mxu0 0.0
        %2693 = vmatpush1.msra.mxu0 0.0
        %2694 = vmatprep.subr.mxu0 0.0
        %2695 = vmatpush1.msra.mxu0 0.0
        %2696 = vmatprep.subr.mxu0 0.0
        %2697 = vmatpush1.msra.mxu0 0.0
        %2698 = vmatprep.subr.mxu0 0.0
        %2699 = vmatpush1.msra.mxu0 0.0
        %2700 = vmatprep.subr.mxu0 0.0
        %2701 = vmatpush1.msra.mxu0 0.0
        %2702 = vmatprep.subr.mxu0 0.0
        %2703 = vmatpush1.msra.mxu0 0.0
        %2704 = vmatprep.subr.mxu0 0.0
        %2705 = vmatpush1.msra.mxu0 0.0
        %2706 = vmatprep.subr.mxu0 0.0
        %2707 = vmatpush1.msra.mxu0 0.0
        %2708 = vmatprep.subr.mxu0 0.0
        %2709 = vmatpush1.msra.mxu0 0.0
        %2710 = vmatprep.subr.mxu0 0.0
        %2711 = vmatpush1.msra.mxu0 0.0
        %2712 = vmatprep.mubr.f32.mxu0 0.0
        %2713 = vmatmul.mubr.f32.gmra.mrb[0].mxu0 %v2643
        %v2714 = vpop.f32.mrb[0].mxu0
        %v2715 = vadd.f32 0.0, %v2714
        %v2716 = vpop.f32.mrb[0].mxu0
        %2717 = vmatprep.mubr.f32.mxu0 0.0
        %2718 = vmatmul.mubr.f32.gmra.mrb[0].mxu0 %v2646
        %v2719 = vpop.f32.mrb[0].mxu0
        %v2720 = vadd.f32 0.0, %v2719
        %v2721 = vpop.f32.mrb[0].mxu0
        %2722 = vdwg.mxu0
        %2731 = vrot.lane.b32.xlu0 %v2448, 8
        %v2732 = vpop.permute.xlu0 %2731
        %2733 = vrot.lane.b32.xlu0 %v2453, 8
        %v2734 = vpop.permute.xlu0 %2733
        %2735 = vrot.lane.b32.xlu0 %v2537, 8
        %v2736 = vpop.permute.xlu0 %2735
        %2737 = vrot.lane.b32.xlu0 %v2542, 8
        %v2738 = vpop.permute.xlu0 %2737
        %2739 = vrot.lane.b32.xlu0 %v2626, 8
        %v2740 = vpop.permute.xlu0 %2739
        %2741 = vrot.lane.b32.xlu0 %v2631, 8
        %v2742 = vpop.permute.xlu0 %2741
        %2743 = vrot.lane.b32.xlu0 %v2715, 8
        %v2744 = vpop.permute.xlu0 %2743
        %2745 = vrot.lane.b32.xlu0 %v2720, 8
        %v2746 = vpop.permute.xlu0 %2745
        %vm2755 = vcmask 130112
        %2756 = vst.msk [vmem:[#allocation2] sm:$0xff] %vm2755, %v2732
        %2757 = vst.msk [vmem:[#allocation2 + $0x8] sm:$0xff] %vm2755, %v2734
        %2758 = vst.msk [vmem:[#allocation2 + $0x10] sm:$0xff] %vm2755, %v2736
        %2759 = vst.msk [vmem:[#allocation2 + $0x18] sm:$0xff] %vm2755, %v2738
        %2760 = vst.msk [vmem:[#allocation2 + $0x20] sm:$0xff] %vm2755, %v2740
        %2761 = vst.msk [vmem:[#allocation2 + $0x28] sm:$0xff] %vm2755, %v2742
        %2762 = vst.msk [vmem:[#allocation2 + $0x30] sm:$0xff] %vm2755, %v2744
        %2763 = vst.msk [vmem:[#allocation2 + $0x38] sm:$0xff] %vm2755, %v2746
        %s2764 = scalar_lea.vmem %s544, 128 [#allocation3]
        %v2765 = vld [vmem:[%s2764] sm:$0xff]
        %v2766 = vld [vmem:[%s2764 + $0x8] sm:$0xff]
        %v2767 = vld [vmem:[%s2764 + $0x10] sm:$0xff]
        %v2768 = vld [vmem:[%s2764 + $0x18] sm:$0xff]
        %v2769 = vld [vmem:[%s2764 + $0x20] sm:$0xff]
        %v2770 = vld [vmem:[%s2764 + $0x28] sm:$0xff]
        %v2771 = vld [vmem:[%s2764 + $0x30] sm:$0xff]
        %v2772 = vld [vmem:[%s2764 + $0x38] sm:$0xff]
        %s2773 = scalar_lea.vmem %s8, 32
        %v2774 = vld [vmem:[%s2773] sm:$0xff]
        %v2775 = vld [vmem:[%s2773 + $0x8] sm:$0xff]
        %2776 = vrot.lane.b32.xlu0 %v889, 112
        %v2777 = vpop.permute.xlu0 %2776
        %2778 = vrot.lane.b32.xlu0 %v890, 112
        %v2779 = vpop.permute.xlu0 %2778
        %v2780 = vsel %vm1141, %v2777, 0
        %v2782 = vsel %vm1141, %v2779, 0
        %v2785 = vsel %vm1141, %v2765, 0
        %v2788 = vsel %vm1141, %v2766, 0
        %2790 = vmatprep.subr.mxu0 0.0
        %2791 = vmatpush1.xpose.msra.mxu0 %v2785
        %2792 = vmatprep.subr.mxu0 0.0
        %2793 = vmatpush1.xpose.msra.mxu0 %v2788
        %2794 = vmatprep.subr.mxu0 0.0
        %2795 = vmatpush1.xpose.msra.mxu0 0.0
        %2796 = vmatprep.subr.mxu0 0.0
        %2797 = vmatpush1.xpose.msra.mxu0 0.0
        %2798 = vmatprep.subr.mxu0 0.0
        %2799 = vmatpush1.xpose.msra.mxu0 0.0
        %2800 = vmatprep.subr.mxu0 0.0
        %2801 = vmatpush1.xpose.msra.mxu0 0.0
        %2802 = vmatprep.subr.mxu0 0.0
        %2803 = vmatpush1.xpose.msra.mxu0 0.0
        %2804 = vmatprep.subr.mxu0 0.0
        %2805 = vmatpush1.xpose.msra.mxu0 0.0
        %2806 = vmatprep.subr.mxu0 0.0
        %2807 = vmatpush1.xpose.msra.mxu0 0.0
        %2808 = vmatprep.subr.mxu0 0.0
        %2809 = vmatpush1.xpose.msra.mxu0 0.0
        %2810 = vmatprep.subr.mxu0 0.0
        %2811 = vmatpush1.xpose.msra.mxu0 0.0
        %2812 = vmatprep.subr.mxu0 0.0
        %2813 = vmatpush1.xpose.msra.mxu0 0.0
        %2814 = vmatprep.subr.mxu0 0.0
        %2815 = vmatpush1.xpose.msra.mxu0 0.0
        %2816 = vmatprep.subr.mxu0 0.0
        %2817 = vmatpush1.xpose.msra.mxu0 0.0
        %2818 = vmatprep.subr.mxu0 0.0
        %2819 = vmatpush1.xpose.msra.mxu0 0.0
        %2820 = vmatprep.subr.mxu0 0.0
        %2821 = vmatpush1.xpose.msra.mxu0 0.0
        %2822 = vmatprep.subr.mxu0 0.0
        %2823 = vmatpush1.xpose.msra.mxu0 0.0
        %2824 = vmatprep.subr.mxu0 0.0
        %2825 = vmatpush1.xpose.msra.mxu0 0.0
        %2826 = vmatprep.subr.mxu0 0.0
        %2827 = vmatpush1.xpose.msra.mxu0 0.0
        %2828 = vmatprep.subr.mxu0 0.0
        %2829 = vmatpush1.xpose.msra.mxu0 0.0
        %2830 = vmatprep.subr.mxu0 0.0
        %2831 = vmatpush1.xpose.msra.mxu0 0.0
        %2832 = vmatprep.subr.mxu0 0.0
        %2833 = vmatpush1.xpose.msra.mxu0 0.0
        %2834 = vmatprep.subr.mxu0 0.0
        %2835 = vmatpush1.xpose.msra.mxu0 0.0
        %2836 = vmatprep.subr.mxu0 0.0
        %2837 = vmatpush1.xpose.msra.mxu0 0.0
        %2838 = vmatprep.subr.mxu0 0.0
        %2839 = vmatpush1.xpose.msra.mxu0 0.0
        %2840 = vmatprep.subr.mxu0 0.0
        %2841 = vmatpush1.xpose.msra.mxu0 0.0
        %2842 = vmatprep.subr.mxu0 0.0
        %2843 = vmatpush1.xpose.msra.mxu0 0.0
        %2844 = vmatprep.subr.mxu0 0.0
        %2845 = vmatpush1.xpose.msra.mxu0 0.0
        %2846 = vmatprep.subr.mxu0 0.0
        %2847 = vmatpush1.xpose.msra.mxu0 0.0
        %2848 = vmatprep.subr.mxu0 0.0
        %2849 = vmatpush1.xpose.msra.mxu0 0.0
        %2850 = vmatprep.subr.mxu0 0.0
        %2851 = vmatpush1.xpose.msra.mxu0 0.0
        %2852 = vmatprep.subr.mxu0 0.0
        %2853 = vmatpush1.xpose.msra.mxu0 0.0
        %2854 = vmatprep.mubr.f32.mxu0 0.0
        %2855 = vmatmul.mubr.f32.gmra.mrb[0].mxu0 %v2780
        %v2856 = vpop.f32.mrb[0].mxu0
        %v2857 = vadd.f32 %v2774, %v2856
        %v2858 = vpop.f32.mrb[0].mxu0
        %2859 = vmatprep.mubr.f32.mxu0 0.0
        %2860 = vmatmul.mubr.f32.gmra.mrb[0].mxu0 %v2782
        %v2861 = vpop.f32.mrb[0].mxu0
        %v2862 = vadd.f32 %v2775, %v2861
        %v2863 = vpop.f32.mrb[0].mxu0
        %2864 = vdwg.mxu0
        %2865 = vrot.lane.b32.xlu0 %v891, 112
        %v2866 = vpop.permute.xlu0 %2865
        %2867 = vrot.lane.b32.xlu0 %v892, 112
        %v2868 = vpop.permute.xlu0 %2867
        %v2869 = vsel %vm1141, %v2866, 0
        %v2871 = vsel %vm1141, %v2868, 0
        %v2874 = vsel %vm1141, %v2767, 0
        %v2877 = vsel %vm1141, %v2768, 0
        %2879 = vmatprep.subr.mxu0 0.0
        %2880 = vmatpush1.xpose.msra.mxu0 %v2874
        %2881 = vmatprep.subr.mxu0 0.0
        %2882 = vmatpush1.xpose.msra.mxu0 %v2877
        %2883 = vmatprep.subr.mxu0 0.0
        %2884 = vmatpush1.xpose.msra.mxu0 0.0
        %2885 = vmatprep.subr.mxu0 0.0
        %2886 = vmatpush1.xpose.msra.mxu0 0.0
        %2887 = vmatprep.subr.mxu0 0.0
        %2888 = vmatpush1.xpose.msra.mxu0 0.0
        %2889 = vmatprep.subr.mxu0 0.0
        %2890 = vmatpush1.xpose.msra.mxu0 0.0
        %2891 = vmatprep.subr.mxu0 0.0
        %2892 = vmatpush1.xpose.msra.mxu0 0.0
        %2893 = vmatprep.subr.mxu0 0.0
        %2894 = vmatpush1.xpose.msra.mxu0 0.0
        %2895 = vmatprep.subr.mxu0 0.0
        %2896 = vmatpush1.xpose.msra.mxu0 0.0
        %2897 = vmatprep.subr.mxu0 0.0
        %2898 = vmatpush1.xpose.msra.mxu0 0.0
        %2899 = vmatprep.subr.mxu0 0.0
        %2900 = vmatpush1.xpose.msra.mxu0 0.0
        %2901 = vmatprep.subr.mxu0 0.0
        %2902 = vmatpush1.xpose.msra.mxu0 0.0
        %2903 = vmatprep.subr.mxu0 0.0
        %2904 = vmatpush1.xpose.msra.mxu0 0.0
        %2905 = vmatprep.subr.mxu0 0.0
        %2906 = vmatpush1.xpose.msra.mxu0 0.0
        %2907 = vmatprep.subr.mxu0 0.0
        %2908 = vmatpush1.xpose.msra.mxu0 0.0
        %2909 = vmatprep.subr.mxu0 0.0
        %2910 = vmatpush1.xpose.msra.mxu0 0.0
        %2911 = vmatprep.subr.mxu0 0.0
        %2912 = vmatpush1.xpose.msra.mxu0 0.0
        %2913 = vmatprep.subr.mxu0 0.0
        %2914 = vmatpush1.xpose.msra.mxu0 0.0
        %2915 = vmatprep.subr.mxu0 0.0
        %2916 = vmatpush1.xpose.msra.mxu0 0.0
        %2917 = vmatprep.subr.mxu0 0.0
        %2918 = vmatpush1.xpose.msra.mxu0 0.0
        %2919 = vmatprep.subr.mxu0 0.0
        %2920 = vmatpush1.xpose.msra.mxu0 0.0
        %2921 = vmatprep.subr.mxu0 0.0
        %2922 = vmatpush1.xpose.msra.mxu0 0.0
        %2923 = vmatprep.subr.mxu0 0.0
        %2924 = vmatpush1.xpose.msra.mxu0 0.0
        %2925 = vmatprep.subr.mxu0 0.0
        %2926 = vmatpush1.xpose.msra.mxu0 0.0
        %2927 = vmatprep.subr.mxu0 0.0
        %2928 = vmatpush1.xpose.msra.mxu0 0.0
        %2929 = vmatprep.subr.mxu0 0.0
        %2930 = vmatpush1.xpose.msra.mxu0 0.0
        %2931 = vmatprep.subr.mxu0 0.0
        %2932 = vmatpush1.xpose.msra.mxu0 0.0
        %2933 = vmatprep.subr.mxu0 0.0
        %2934 = vmatpush1.xpose.msra.mxu0 0.0
        %2935 = vmatprep.subr.mxu0 0.0
        %2936 = vmatpush1.xpose.msra.mxu0 0.0
        %2937 = vmatprep.subr.mxu0 0.0
        %2938 = vmatpush1.xpose.msra.mxu0 0.0
        %2939 = vmatprep.subr.mxu0 0.0
        %2940 = vmatpush1.xpose.msra.mxu0 0.0
        %2941 = vmatprep.subr.mxu0 0.0
        %2942 = vmatpush1.xpose.msra.mxu0 0.0
        %2943 = vmatprep.mubr.f32.mxu0 0.0
        %2944 = vmatmul.mubr.f32.gmra.mrb[0].mxu0 %v2869
        %v2945 = vpop.f32.mrb[0].mxu0
        %v2946 = vadd.f32 %v2774, %v2945
        %v2947 = vpop.f32.mrb[0].mxu0
        %2948 = vmatprep.mubr.f32.mxu0 0.0
        %2949 = vmatmul.mubr.f32.gmra.mrb[0].mxu0 %v2871
        %v2950 = vpop.f32.mrb[0].mxu0
        %v2951 = vadd.f32 %v2775, %v2950
        %v2952 = vpop.f32.mrb[0].mxu0
        %2953 = vdwg.mxu0
        %2954 = vrot.lane.b32.xlu0 %v893, 112
        %v2955 = vpop.permute.xlu0 %2954
        %2956 = vrot.lane.b32.xlu0 %v894, 112
        %v2957 = vpop.permute.xlu0 %2956
        %v2958 = vsel %vm1141, %v2955, 0
        %v2960 = vsel %vm1141, %v2957, 0
        %v2963 = vsel %vm1141, %v2769, 0
        %v2966 = vsel %vm1141, %v2770, 0
        %2968 = vmatprep.subr.mxu0 0.0
        %2969 = vmatpush1.xpose.msra.mxu0 %v2963
        %2970 = vmatprep.subr.mxu0 0.0
        %2971 = vmatpush1.xpose.msra.mxu0 %v2966
        %2972 = vmatprep.subr.mxu0 0.0
        %2973 = vmatpush1.xpose.msra.mxu0 0.0
        %2974 = vmatprep.subr.mxu0 0.0
        %2975 = vmatpush1.xpose.msra.mxu0 0.0
        %2976 = vmatprep.subr.mxu0 0.0
        %2977 = vmatpush1.xpose.msra.mxu0 0.0
        %2978 = vmatprep.subr.mxu0 0.0
        %2979 = vmatpush1.xpose.msra.mxu0 0.0
        %2980 = vmatprep.subr.mxu0 0.0
        %2981 = vmatpush1.xpose.msra.mxu0 0.0
        %2982 = vmatprep.subr.mxu0 0.0
        %2983 = vmatpush1.xpose.msra.mxu0 0.0
        %2984 = vmatprep.subr.mxu0 0.0
        %2985 = vmatpush1.xpose.msra.mxu0 0.0
        %2986 = vmatprep.subr.mxu0 0.0
        %2987 = vmatpush1.xpose.msra.mxu0 0.0
        %2988 = vmatprep.subr.mxu0 0.0
        %2989 = vmatpush1.xpose.msra.mxu0 0.0
        %2990 = vmatprep.subr.mxu0 0.0
        %2991 = vmatpush1.xpose.msra.mxu0 0.0
        %2992 = vmatprep.subr.mxu0 0.0
        %2993 = vmatpush1.xpose.msra.mxu0 0.0
        %2994 = vmatprep.subr.mxu0 0.0
        %2995 = vmatpush1.xpose.msra.mxu0 0.0
        %2996 = vmatprep.subr.mxu0 0.0
        %2997 = vmatpush1.xpose.msra.mxu0 0.0
        %2998 = vmatprep.subr.mxu0 0.0
        %2999 = vmatpush1.xpose.msra.mxu0 0.0
        %3000 = vmatprep.subr.mxu0 0.0
        %3001 = vmatpush1.xpose.msra.mxu0 0.0
        %3002 = vmatprep.subr.mxu0 0.0
        %3003 = vmatpush1.xpose.msra.mxu0 0.0
        %3004 = vmatprep.subr.mxu0 0.0
        %3005 = vmatpush1.xpose.msra.mxu0 0.0
        %3006 = vmatprep.subr.mxu0 0.0
        %3007 = vmatpush1.xpose.msra.mxu0 0.0
        %3008 = vmatprep.subr.mxu0 0.0
        %3009 = vmatpush1.xpose.msra.mxu0 0.0
        %3010 = vmatprep.subr.mxu0 0.0
        %3011 = vmatpush1.xpose.msra.mxu0 0.0
        %3012 = vmatprep.subr.mxu0 0.0
        %3013 = vmatpush1.xpose.msra.mxu0 0.0
        %3014 = vmatprep.subr.mxu0 0.0
        %3015 = vmatpush1.xpose.msra.mxu0 0.0
        %3016 = vmatprep.subr.mxu0 0.0
        %3017 = vmatpush1.xpose.msra.mxu0 0.0
        %3018 = vmatprep.subr.mxu0 0.0
        %3019 = vmatpush1.xpose.msra.mxu0 0.0
        %3020 = vmatprep.subr.mxu0 0.0
        %3021 = vmatpush1.xpose.msra.mxu0 0.0
        %3022 = vmatprep.subr.mxu0 0.0
        %3023 = vmatpush1.xpose.msra.mxu0 0.0
        %3024 = vmatprep.subr.mxu0 0.0
        %3025 = vmatpush1.xpose.msra.mxu0 0.0
        %3026 = vmatprep.subr.mxu0 0.0
        %3027 = vmatpush1.xpose.msra.mxu0 0.0
        %3028 = vmatprep.subr.mxu0 0.0
        %3029 = vmatpush1.xpose.msra.mxu0 0.0
        %3030 = vmatprep.subr.mxu0 0.0
        %3031 = vmatpush1.xpose.msra.mxu0 0.0
        %3032 = vmatprep.mubr.f32.mxu0 0.0
        %3033 = vmatmul.mubr.f32.gmra.mrb[0].mxu0 %v2958
        %v3034 = vpop.f32.mrb[0].mxu0
        %v3035 = vadd.f32 %v2774, %v3034
        %v3036 = vpop.f32.mrb[0].mxu0
        %3037 = vmatprep.mubr.f32.mxu0 0.0
        %3038 = vmatmul.mubr.f32.gmra.mrb[0].mxu0 %v2960
        %v3039 = vpop.f32.mrb[0].mxu0
        %v3040 = vadd.f32 %v2775, %v3039
        %v3041 = vpop.f32.mrb[0].mxu0
        %3042 = vdwg.mxu0
        %3043 = vrot.lane.b32.xlu0 %v895, 112
        %v3044 = vpop.permute.xlu0 %3043
        %3045 = vrot.lane.b32.xlu0 %v896, 112
        %v3046 = vpop.permute.xlu0 %3045
        %v3047 = vsel %vm1141, %v3044, 0
        %v3049 = vsel %vm1141, %v3046, 0
        %v3052 = vsel %vm1141, %v2771, 0
        %v3055 = vsel %vm1141, %v2772, 0
        %3057 = vmatprep.subr.mxu0 0.0
        %3058 = vmatpush1.xpose.msra.mxu0 %v3052
        %3059 = vmatprep.subr.mxu0 0.0
        %3060 = vmatpush1.xpose.msra.mxu0 %v3055
        %3061 = vmatprep.subr.mxu0 0.0
        %3062 = vmatpush1.xpose.msra.mxu0 0.0
        %3063 = vmatprep.subr.mxu0 0.0
        %3064 = vmatpush1.xpose.msra.mxu0 0.0
        %3065 = vmatprep.subr.mxu0 0.0
        %3066 = vmatpush1.xpose.msra.mxu0 0.0
        %3067 = vmatprep.subr.mxu0 0.0
        %3068 = vmatpush1.xpose.msra.mxu0 0.0
        %3069 = vmatprep.subr.mxu0 0.0
        %3070 = vmatpush1.xpose.msra.mxu0 0.0
        %3071 = vmatprep.subr.mxu0 0.0
        %3072 = vmatpush1.xpose.msra.mxu0 0.0
        %3073 = vmatprep.subr.mxu0 0.0
        %3074 = vmatpush1.xpose.msra.mxu0 0.0
        %3075 = vmatprep.subr.mxu0 0.0
        %3076 = vmatpush1.xpose.msra.mxu0 0.0
        %3077 = vmatprep.subr.mxu0 0.0
        %3078 = vmatpush1.xpose.msra.mxu0 0.0
        %3079 = vmatprep.subr.mxu0 0.0
        %3080 = vmatpush1.xpose.msra.mxu0 0.0
        %3081 = vmatprep.subr.mxu0 0.0
        %3082 = vmatpush1.xpose.msra.mxu0 0.0
        %3083 = vmatprep.subr.mxu0 0.0
        %3084 = vmatpush1.xpose.msra.mxu0 0.0
        %3085 = vmatprep.subr.mxu0 0.0
        %3086 = vmatpush1.xpose.msra.mxu0 0.0
        %3087 = vmatprep.subr.mxu0 0.0
        %3088 = vmatpush1.xpose.msra.mxu0 0.0
        %3089 = vmatprep.subr.mxu0 0.0
        %3090 = vmatpush1.xpose.msra.mxu0 0.0
        %3091 = vmatprep.subr.mxu0 0.0
        %3092 = vmatpush1.xpose.msra.mxu0 0.0
        %3093 = vmatprep.subr.mxu0 0.0
        %3094 = vmatpush1.xpose.msra.mxu0 0.0
        %3095 = vmatprep.subr.mxu0 0.0
        %3096 = vmatpush1.xpose.msra.mxu0 0.0
        %3097 = vmatprep.subr.mxu0 0.0
        %3098 = vmatpush1.xpose.msra.mxu0 0.0
        %3099 = vmatprep.subr.mxu0 0.0
        %3100 = vmatpush1.xpose.msra.mxu0 0.0
        %3101 = vmatprep.subr.mxu0 0.0
        %3102 = vmatpush1.xpose.msra.mxu0 0.0
        %3103 = vmatprep.subr.mxu0 0.0
        %3104 = vmatpush1.xpose.msra.mxu0 0.0
        %3105 = vmatprep.subr.mxu0 0.0
        %3106 = vmatpush1.xpose.msra.mxu0 0.0
        %3107 = vmatprep.subr.mxu0 0.0
        %3108 = vmatpush1.xpose.msra.mxu0 0.0
        %3109 = vmatprep.subr.mxu0 0.0
        %3110 = vmatpush1.xpose.msra.mxu0 0.0
        %3111 = vmatprep.subr.mxu0 0.0
        %3112 = vmatpush1.xpose.msra.mxu0 0.0
        %3113 = vmatprep.subr.mxu0 0.0
        %3114 = vmatpush1.xpose.msra.mxu0 0.0
        %3115 = vmatprep.subr.mxu0 0.0
        %3116 = vmatpush1.xpose.msra.mxu0 0.0
        %3117 = vmatprep.subr.mxu0 0.0
        %3118 = vmatpush1.xpose.msra.mxu0 0.0
        %3119 = vmatprep.subr.mxu0 0.0
        %3120 = vmatpush1.xpose.msra.mxu0 0.0
        %3121 = vmatprep.mubr.f32.mxu0 0.0
        %3122 = vmatmul.mubr.f32.gmra.mrb[0].mxu0 %v3047
        %v3123 = vpop.f32.mrb[0].mxu0
        %v3124 = vadd.f32 %v2774, %v3123
        %v3125 = vpop.f32.mrb[0].mxu0
        %3126 = vmatprep.mubr.f32.mxu0 0.0
        %3127 = vmatmul.mubr.f32.gmra.mrb[0].mxu0 %v3049
        %v3128 = vpop.f32.mrb[0].mxu0
        %v3129 = vadd.f32 %v2775, %v3128
        %v3130 = vpop.f32.mrb[0].mxu0
        %3131 = vdwg.mxu0
        %v3132 = vsel %vm1490, %v2857, -inf
        %3133 = vmax.xlane.f32.xlu0 %v3132
        %v3134 = vpop.xlane.xlu0 %3133
        %v3135 = vsel %vm1490, %v2862, -inf
        %3136 = vmax.xlane.f32.xlu0 %v3135
        %v3137 = vpop.xlane.xlu0 %3136
        %v3138 = vsel %vm1490, %v2946, -inf
        %3139 = vmax.xlane.f32.xlu0 %v3138
        %v3140 = vpop.xlane.xlu0 %3139
        %v3141 = vsel %vm1490, %v2951, -inf
        %3142 = vmax.xlane.f32.xlu0 %v3141
        %v3143 = vpop.xlane.xlu0 %3142
        %v3144 = vsel %vm1490, %v3035, -inf
        %3145 = vmax.xlane.f32.xlu0 %v3144
        %v3146 = vpop.xlane.xlu0 %3145
        %v3147 = vsel %vm1490, %v3040, -inf
        %3148 = vmax.xlane.f32.xlu0 %v3147
        %v3149 = vpop.xlane.xlu0 %3148
        %v3150 = vsel %vm1490, %v3124, -inf
        %3151 = vmax.xlane.f32.xlu0 %v3150
        %v3152 = vpop.xlane.xlu0 %3151
        %v3153 = vsel %vm1490, %v3129, -inf
        %3154 = vmax.xlane.f32.xlu0 %v3153
        %v3155 = vpop.xlane.xlu0 %3154
        %v3156 = vsub.f32 %v2857, %v3134
        %v3157 = vsub.f32 %v2862, %v3137
        %v3158 = vsub.f32 %v2946, %v3140
        %v3159 = vsub.f32 %v2951, %v3143
        %v3160 = vsub.f32 %v3035, %v3146
        %v3161 = vsub.f32 %v3040, %v3149
        %v3162 = vsub.f32 %v3124, %v3152
        %v3163 = vsub.f32 %v3129, %v3155
        %v3164 = vmul.f32 %v3156, 1.442695
        %v3165 = vpow.pop %v3164
        %v3166 = vmul.f32 %v3157, 1.442695
        %v3167 = vpow.pop %v3166
        %v3168 = vmul.f32 %v3158, 1.442695
        %v3169 = vpow.pop %v3168
        %v3170 = vmul.f32 %v3159, 1.442695
        %v3171 = vpow.pop %v3170
        %v3172 = vmul.f32 %v3160, 1.442695
        %v3173 = vpow.pop %v3172
        %v3174 = vmul.f32 %v3161, 1.442695
        %v3175 = vpow.pop %v3174
        %v3176 = vmul.f32 %v3162, 1.442695
        %v3177 = vpow.pop %v3176
        %v3178 = vmul.f32 %v3163, 1.442695
        %v3179 = vpow.pop %v3178
        %v3180 = vsel %vm1490, %v3165, 0.0
        %3181 = vadd.xlane.f32.xlu0 %v3180
        %v3182 = vpop.xlane.xlu0 %3181
        %v3183 = vsel %vm1490, %v3167, 0.0
        %3184 = vadd.xlane.f32.xlu0 %v3183
        %v3185 = vpop.xlane.xlu0 %3184
        %v3186 = vsel %vm1490, %v3169, 0.0
        %3187 = vadd.xlane.f32.xlu0 %v3186
        %v3188 = vpop.xlane.xlu0 %3187
        %v3189 = vsel %vm1490, %v3171, 0.0
        %3190 = vadd.xlane.f32.xlu0 %v3189
        %v3191 = vpop.xlane.xlu0 %3190
        %v3192 = vsel %vm1490, %v3173, 0.0
        %3193 = vadd.xlane.f32.xlu0 %v3192
        %v3194 = vpop.xlane.xlu0 %3193
        %v3195 = vsel %vm1490, %v3175, 0.0
        %3196 = vadd.xlane.f32.xlu0 %v3195
        %v3197 = vpop.xlane.xlu0 %3196
        %v3198 = vsel %vm1490, %v3177, 0.0
        %3199 = vadd.xlane.f32.xlu0 %v3198
        %v3200 = vpop.xlane.xlu0 %3199
        %v3201 = vsel %vm1490, %v3179, 0.0
        %3202 = vadd.xlane.f32.xlu0 %v3201
        %v3203 = vpop.xlane.xlu0 %3202
        %v3204 = vrcp.pop %v3182
        %v3205 = vrcp.pop %v3185
        %v3206 = vrcp.pop %v3188
        %v3207 = vrcp.pop %v3191
        %v3208 = vrcp.pop %v3194
        %v3209 = vrcp.pop %v3197
        %v3210 = vrcp.pop %v3200
        %v3211 = vrcp.pop %v3203
        %v3212 = vmul.f32 %v3165, %v3204
        %v3213 = vmul.f32 %v3167, %v3205
        %v3214 = vmul.f32 %v3169, %v3206
        %v3215 = vmul.f32 %v3171, %v3207
        %v3216 = vmul.f32 %v3173, %v3208
        %v3217 = vmul.f32 %v3175, %v3209
        %v3218 = vmul.f32 %v3177, %v3210
        %v3219 = vmul.f32 %v3179, %v3211
        %3220 = vrot.lane.b32.xlu0 %v1085, 112
        %v3221 = vpop.permute.xlu0 %3220
        %3222 = vrot.lane.b32.xlu0 %v1090, 112
        %v3223 = vpop.permute.xlu0 %3222
        %v3227 = vsel %vm1490, %v3212, 0
        %v3230 = vsel %vm1490, %v3213, 0
        %3232 = vmatprep.subr.mxu0 0.0
        %3233 = vmatpush1.msra.mxu0 %v3221
        %3234 = vmatprep.subr.mxu0 0.0
        %3235 = vmatpush1.msra.mxu0 %v3223
        %3236 = vmatprep.subr.mxu0 0.0
        %3237 = vmatpush1.msra.mxu0 0.0
        %3238 = vmatprep.subr.mxu0 0.0
        %3239 = vmatpush1.msra.mxu0 0.0
        %3240 = vmatprep.subr.mxu0 0.0
        %3241 = vmatpush1.msra.mxu0 0.0
        %3242 = vmatprep.subr.mxu0 0.0
        %3243 = vmatpush1.msra.mxu0 0.0
        %3244 = vmatprep.subr.mxu0 0.0
        %3245 = vmatpush1.msra.mxu0 0.0
        %3246 = vmatprep.subr.mxu0 0.0
        %3247 = vmatpush1.msra.mxu0 0.0
        %3248 = vmatprep.subr.mxu0 0.0
        %3249 = vmatpush1.msra.mxu0 0.0
        %3250 = vmatprep.subr.mxu0 0.0
        %3251 = vmatpush1.msra.mxu0 0.0
        %3252 = vmatprep.subr.mxu0 0.0
        %3253 = vmatpush1.msra.mxu0 0.0
        %3254 = vmatprep.subr.mxu0 0.0
        %3255 = vmatpush1.msra.mxu0 0.0
        %3256 = vmatprep.subr.mxu0 0.0
        %3257 = vmatpush1.msra.mxu0 0.0
        %3258 = vmatprep.subr.mxu0 0.0
        %3259 = vmatpush1.msra.mxu0 0.0
        %3260 = vmatprep.subr.mxu0 0.0
        %3261 = vmatpush1.msra.mxu0 0.0
        %3262 = vmatprep.subr.mxu0 0.0
        %3263 = vmatpush1.msra.mxu0 0.0
        %3264 = vmatprep.subr.mxu0 0.0
        %3265 = vmatpush1.msra.mxu0 0.0
        %3266 = vmatprep.subr.mxu0 0.0
        %3267 = vmatpush1.msra.mxu0 0.0
        %3268 = vmatprep.subr.mxu0 0.0
        %3269 = vmatpush1.msra.mxu0 0.0
        %3270 = vmatprep.subr.mxu0 0.0
        %3271 = vmatpush1.msra.mxu0 0.0
        %3272 = vmatprep.subr.mxu0 0.0
        %3273 = vmatpush1.msra.mxu0 0.0
        %3274 = vmatprep.subr.mxu0 0.0
        %3275 = vmatpush1.msra.mxu0 0.0
        %3276 = vmatprep.subr.mxu0 0.0
        %3277 = vmatpush1.msra.mxu0 0.0
        %3278 = vmatprep.subr.mxu0 0.0
        %3279 = vmatpush1.msra.mxu0 0.0
        %3280 = vmatprep.subr.mxu0 0.0
        %3281 = vmatpush1.msra.mxu0 0.0
        %3282 = vmatprep.subr.mxu0 0.0
        %3283 = vmatpush1.msra.mxu0 0.0
        %3284 = vmatprep.subr.mxu0 0.0
        %3285 = vmatpush1.msra.mxu0 0.0
        %3286 = vmatprep.subr.mxu0 0.0
        %3287 = vmatpush1.msra.mxu0 0.0
        %3288 = vmatprep.subr.mxu0 0.0
        %3289 = vmatpush1.msra.mxu0 0.0
        %3290 = vmatprep.subr.mxu0 0.0
        %3291 = vmatpush1.msra.mxu0 0.0
        %3292 = vmatprep.subr.mxu0 0.0
        %3293 = vmatpush1.msra.mxu0 0.0
        %3294 = vmatprep.subr.mxu0 0.0
        %3295 = vmatpush1.msra.mxu0 0.0
        %3296 = vmatprep.mubr.f32.mxu0 0.0
        %3297 = vmatmul.mubr.f32.gmra.mrb[0].mxu0 %v3227
        %v3298 = vpop.f32.mrb[0].mxu0
        %v3299 = vadd.f32 0.0, %v3298
        %v3300 = vpop.f32.mrb[0].mxu0
        %3301 = vmatprep.mubr.f32.mxu0 0.0
        %3302 = vmatmul.mubr.f32.gmra.mrb[0].mxu0 %v3230
        %v3303 = vpop.f32.mrb[0].mxu0
        %v3304 = vadd.f32 0.0, %v3303
        %v3305 = vpop.f32.mrb[0].mxu0
        %3306 = vdwg.mxu0
        %3307 = vrot.lane.b32.xlu0 %v1095, 112
        %v3308 = vpop.permute.xlu0 %3307
        %3309 = vrot.lane.b32.xlu0 %v1100, 112
        %v3310 = vpop.permute.xlu0 %3309
        %v3314 = vsel %vm1490, %v3214, 0
        %v3317 = vsel %vm1490, %v3215, 0
        %3319 = vmatprep.subr.mxu0 0.0
        %3320 = vmatpush1.msra.mxu0 %v3308
        %3321 = vmatprep.subr.mxu0 0.0
        %3322 = vmatpush1.msra.mxu0 %v3310
        %3323 = vmatprep.subr.mxu0 0.0
        %3324 = vmatpush1.msra.mxu0 0.0
        %3325 = vmatprep.subr.mxu0 0.0
        %3326 = vmatpush1.msra.mxu0 0.0
        %3327 = vmatprep.subr.mxu0 0.0
        %3328 = vmatpush1.msra.mxu0 0.0
        %3329 = vmatprep.subr.mxu0 0.0
        %3330 = vmatpush1.msra.mxu0 0.0
        %3331 = vmatprep.subr.mxu0 0.0
        %3332 = vmatpush1.msra.mxu0 0.0
        %3333 = vmatprep.subr.mxu0 0.0
        %3334 = vmatpush1.msra.mxu0 0.0
        %3335 = vmatprep.subr.mxu0 0.0
        %3336 = vmatpush1.msra.mxu0 0.0
        %3337 = vmatprep.subr.mxu0 0.0
        %3338 = vmatpush1.msra.mxu0 0.0
        %3339 = vmatprep.subr.mxu0 0.0
        %3340 = vmatpush1.msra.mxu0 0.0
        %3341 = vmatprep.subr.mxu0 0.0
        %3342 = vmatpush1.msra.mxu0 0.0
        %3343 = vmatprep.subr.mxu0 0.0
        %3344 = vmatpush1.msra.mxu0 0.0
        %3345 = vmatprep.subr.mxu0 0.0
        %3346 = vmatpush1.msra.mxu0 0.0
        %3347 = vmatprep.subr.mxu0 0.0
        %3348 = vmatpush1.msra.mxu0 0.0
        %3349 = vmatprep.subr.mxu0 0.0
        %3350 = vmatpush1.msra.mxu0 0.0
        %3351 = vmatprep.subr.mxu0 0.0
        %3352 = vmatpush1.msra.mxu0 0.0
        %3353 = vmatprep.subr.mxu0 0.0
        %3354 = vmatpush1.msra.mxu0 0.0
        %3355 = vmatprep.subr.mxu0 0.0
        %3356 = vmatpush1.msra.mxu0 0.0
        %3357 = vmatprep.subr.mxu0 0.0
        %3358 = vmatpush1.msra.mxu0 0.0
        %3359 = vmatprep.subr.mxu0 0.0
        %3360 = vmatpush1.msra.mxu0 0.0
        %3361 = vmatprep.subr.mxu0 0.0
        %3362 = vmatpush1.msra.mxu0 0.0
        %3363 = vmatprep.subr.mxu0 0.0
        %3364 = vmatpush1.msra.mxu0 0.0
        %3365 = vmatprep.subr.mxu0 0.0
        %3366 = vmatpush1.msra.mxu0 0.0
        %3367 = vmatprep.subr.mxu0 0.0
        %3368 = vmatpush1.msra.mxu0 0.0
        %3369 = vmatprep.subr.mxu0 0.0
        %3370 = vmatpush1.msra.mxu0 0.0
        %3371 = vmatprep.subr.mxu0 0.0
        %3372 = vmatpush1.msra.mxu0 0.0
        %3373 = vmatprep.subr.mxu0 0.0
        %3374 = vmatpush1.msra.mxu0 0.0
        %3375 = vmatprep.subr.mxu0 0.0
        %3376 = vmatpush1.msra.mxu0 0.0
        %3377 = vmatprep.subr.mxu0 0.0
        %3378 = vmatpush1.msra.mxu0 0.0
        %3379 = vmatprep.subr.mxu0 0.0
        %3380 = vmatpush1.msra.mxu0 0.0
        %3381 = vmatprep.subr.mxu0 0.0
        %3382 = vmatpush1.msra.mxu0 0.0
        %3383 = vmatprep.mubr.f32.mxu0 0.0
        %3384 = vmatmul.mubr.f32.gmra.mrb[0].mxu0 %v3314
        %v3385 = vpop.f32.mrb[0].mxu0
        %v3386 = vadd.f32 0.0, %v3385
        %v3387 = vpop.f32.mrb[0].mxu0
        %3388 = vmatprep.mubr.f32.mxu0 0.0
        %3389 = vmatmul.mubr.f32.gmra.mrb[0].mxu0 %v3317
        %v3390 = vpop.f32.mrb[0].mxu0
        %v3391 = vadd.f32 0.0, %v3390
        %v3392 = vpop.f32.mrb[0].mxu0
        %3393 = vdwg.mxu0
        %3394 = vrot.lane.b32.xlu0 %v1105, 112
        %v3395 = vpop.permute.xlu0 %3394
        %3396 = vrot.lane.b32.xlu0 %v1110, 112
        %v3397 = vpop.permute.xlu0 %3396
        %v3401 = vsel %vm1490, %v3216, 0
        %v3404 = vsel %vm1490, %v3217, 0
        %3406 = vmatprep.subr.mxu0 0.0
        %3407 = vmatpush1.msra.mxu0 %v3395
        %3408 = vmatprep.subr.mxu0 0.0
        %3409 = vmatpush1.msra.mxu0 %v3397
        %3410 = vmatprep.subr.mxu0 0.0
        %3411 = vmatpush1.msra.mxu0 0.0
        %3412 = vmatprep.subr.mxu0 0.0
        %3413 = vmatpush1.msra.mxu0 0.0
        %3414 = vmatprep.subr.mxu0 0.0
        %3415 = vmatpush1.msra.mxu0 0.0
        %3416 = vmatprep.subr.mxu0 0.0
        %3417 = vmatpush1.msra.mxu0 0.0
        %3418 = vmatprep.subr.mxu0 0.0
        %3419 = vmatpush1.msra.mxu0 0.0
        %3420 = vmatprep.subr.mxu0 0.0
        %3421 = vmatpush1.msra.mxu0 0.0
        %3422 = vmatprep.subr.mxu0 0.0
        %3423 = vmatpush1.msra.mxu0 0.0
        %3424 = vmatprep.subr.mxu0 0.0
        %3425 = vmatpush1.msra.mxu0 0.0
        %3426 = vmatprep.subr.mxu0 0.0
        %3427 = vmatpush1.msra.mxu0 0.0
        %3428 = vmatprep.subr.mxu0 0.0
        %3429 = vmatpush1.msra.mxu0 0.0
        %3430 = vmatprep.subr.mxu0 0.0
        %3431 = vmatpush1.msra.mxu0 0.0
        %3432 = vmatprep.subr.mxu0 0.0
        %3433 = vmatpush1.msra.mxu0 0.0
        %3434 = vmatprep.subr.mxu0 0.0
        %3435 = vmatpush1.msra.mxu0 0.0
        %3436 = vmatprep.subr.mxu0 0.0
        %3437 = vmatpush1.msra.mxu0 0.0
        %3438 = vmatprep.subr.mxu0 0.0
        %3439 = vmatpush1.msra.mxu0 0.0
        %3440 = vmatprep.subr.mxu0 0.0
        %3441 = vmatpush1.msra.mxu0 0.0
        %3442 = vmatprep.subr.mxu0 0.0
        %3443 = vmatpush1.msra.mxu0 0.0
        %3444 = vmatprep.subr.mxu0 0.0
        %3445 = vmatpush1.msra.mxu0 0.0
        %3446 = vmatprep.subr.mxu0 0.0
        %3447 = vmatpush1.msra.mxu0 0.0
        %3448 = vmatprep.subr.mxu0 0.0
        %3449 = vmatpush1.msra.mxu0 0.0
        %3450 = vmatprep.subr.mxu0 0.0
        %3451 = vmatpush1.msra.mxu0 0.0
        %3452 = vmatprep.subr.mxu0 0.0
        %3453 = vmatpush1.msra.mxu0 0.0
        %3454 = vmatprep.subr.mxu0 0.0
        %3455 = vmatpush1.msra.mxu0 0.0
        %3456 = vmatprep.subr.mxu0 0.0
        %3457 = vmatpush1.msra.mxu0 0.0
        %3458 = vmatprep.subr.mxu0 0.0
        %3459 = vmatpush1.msra.mxu0 0.0
        %3460 = vmatprep.subr.mxu0 0.0
        %3461 = vmatpush1.msra.mxu0 0.0
        %3462 = vmatprep.subr.mxu0 0.0
        %3463 = vmatpush1.msra.mxu0 0.0
        %3464 = vmatprep.subr.mxu0 0.0
        %3465 = vmatpush1.msra.mxu0 0.0
        %3466 = vmatprep.subr.mxu0 0.0
        %3467 = vmatpush1.msra.mxu0 0.0
        %3468 = vmatprep.subr.mxu0 0.0
        %3469 = vmatpush1.msra.mxu0 0.0
        %3470 = vmatprep.mubr.f32.mxu0 0.0
        %3471 = vmatmul.mubr.f32.gmra.mrb[0].mxu0 %v3401
        %v3472 = vpop.f32.mrb[0].mxu0
        %v3473 = vadd.f32 0.0, %v3472
        %v3474 = vpop.f32.mrb[0].mxu0
        %3475 = vmatprep.mubr.f32.mxu0 0.0
        %3476 = vmatmul.mubr.f32.gmra.mrb[0].mxu0 %v3404
        %v3477 = vpop.f32.mrb[0].mxu0
        %v3478 = vadd.f32 0.0, %v3477
        %v3479 = vpop.f32.mrb[0].mxu0
        %3480 = vdwg.mxu0
        %3481 = vrot.lane.b32.xlu0 %v1115, 112
        %v3482 = vpop.permute.xlu0 %3481
        %3483 = vrot.lane.b32.xlu0 %v1120, 112
        %v3484 = vpop.permute.xlu0 %3483
        %v3488 = vsel %vm1490, %v3218, 0
        %v3491 = vsel %vm1490, %v3219, 0
        %3493 = vmatprep.subr.mxu0 0.0
        %3494 = vmatpush1.msra.mxu0 %v3482
        %3495 = vmatprep.subr.mxu0 0.0
        %3496 = vmatpush1.msra.mxu0 %v3484
        %3497 = vmatprep.subr.mxu0 0.0
        %3498 = vmatpush1.msra.mxu0 0.0
        %3499 = vmatprep.subr.mxu0 0.0
        %3500 = vmatpush1.msra.mxu0 0.0
        %3501 = vmatprep.subr.mxu0 0.0
        %3502 = vmatpush1.msra.mxu0 0.0
        %3503 = vmatprep.subr.mxu0 0.0
        %3504 = vmatpush1.msra.mxu0 0.0
        %3505 = vmatprep.subr.mxu0 0.0
        %3506 = vmatpush1.msra.mxu0 0.0
        %3507 = vmatprep.subr.mxu0 0.0
        %3508 = vmatpush1.msra.mxu0 0.0
        %3509 = vmatprep.subr.mxu0 0.0
        %3510 = vmatpush1.msra.mxu0 0.0
        %3511 = vmatprep.subr.mxu0 0.0
        %3512 = vmatpush1.msra.mxu0 0.0
        %3513 = vmatprep.subr.mxu0 0.0
        %3514 = vmatpush1.msra.mxu0 0.0
        %3515 = vmatprep.subr.mxu0 0.0
        %3516 = vmatpush1.msra.mxu0 0.0
        %3517 = vmatprep.subr.mxu0 0.0
        %3518 = vmatpush1.msra.mxu0 0.0
        %3519 = vmatprep.subr.mxu0 0.0
        %3520 = vmatpush1.msra.mxu0 0.0
        %3521 = vmatprep.subr.mxu0 0.0
        %3522 = vmatpush1.msra.mxu0 0.0
        %3523 = vmatprep.subr.mxu0 0.0
        %3524 = vmatpush1.msra.mxu0 0.0
        %3525 = vmatprep.subr.mxu0 0.0
        %3526 = vmatpush1.msra.mxu0 0.0
        %3527 = vmatprep.subr.mxu0 0.0
        %3528 = vmatpush1.msra.mxu0 0.0
        %3529 = vmatprep.subr.mxu0 0.0
        %3530 = vmatpush1.msra.mxu0 0.0
        %3531 = vmatprep.subr.mxu0 0.0
        %3532 = vmatpush1.msra.mxu0 0.0
        %3533 = vmatprep.subr.mxu0 0.0
        %3534 = vmatpush1.msra.mxu0 0.0
        %3535 = vmatprep.subr.mxu0 0.0
        %3536 = vmatpush1.msra.mxu0 0.0
        %3537 = vmatprep.subr.mxu0 0.0
        %3538 = vmatpush1.msra.mxu0 0.0
        %3539 = vmatprep.subr.mxu0 0.0
        %3540 = vmatpush1.msra.mxu0 0.0
        %3541 = vmatprep.subr.mxu0 0.0
        %3542 = vmatpush1.msra.mxu0 0.0
        %3543 = vmatprep.subr.mxu0 0.0
        %3544 = vmatpush1.msra.mxu0 0.0
        %3545 = vmatprep.subr.mxu0 0.0
        %3546 = vmatpush1.msra.mxu0 0.0
        %3547 = vmatprep.subr.mxu0 0.0
        %3548 = vmatpush1.msra.mxu0 0.0
        %3549 = vmatprep.subr.mxu0 0.0
        %3550 = vmatpush1.msra.mxu0 0.0
        %3551 = vmatprep.subr.mxu0 0.0
        %3552 = vmatpush1.msra.mxu0 0.0
        %3553 = vmatprep.subr.mxu0 0.0
        %3554 = vmatpush1.msra.mxu0 0.0
        %3555 = vmatprep.subr.mxu0 0.0
        %3556 = vmatpush1.msra.mxu0 0.0
        %3557 = vmatprep.mubr.f32.mxu0 0.0
        %3558 = vmatmul.mubr.f32.gmra.mrb[0].mxu0 %v3488
        %v3559 = vpop.f32.mrb[0].mxu0
        %v3560 = vadd.f32 0.0, %v3559
        %v3561 = vpop.f32.mrb[0].mxu0
        %3562 = vmatprep.mubr.f32.mxu0 0.0
        %3563 = vmatmul.mubr.f32.gmra.mrb[0].mxu0 %v3491
        %v3564 = vpop.f32.mrb[0].mxu0
        %v3565 = vadd.f32 0.0, %v3564
        %v3566 = vpop.f32.mrb[0].mxu0
        %3567 = vdwg.mxu0
        %3576 = vrot.lane.b32.xlu0 %v3299, 16
        %v3577 = vpop.permute.xlu0 %3576
        %3578 = vrot.lane.b32.xlu0 %v3304, 16
        %v3579 = vpop.permute.xlu0 %3578
        %3580 = vrot.lane.b32.xlu0 %v3386, 16
        %v3581 = vpop.permute.xlu0 %3580
        %3582 = vrot.lane.b32.xlu0 %v3391, 16
        %v3583 = vpop.permute.xlu0 %3582
        %3584 = vrot.lane.b32.xlu0 %v3473, 16
        %v3585 = vpop.permute.xlu0 %3584
        %3586 = vrot.lane.b32.xlu0 %v3478, 16
        %v3587 = vpop.permute.xlu0 %3586
        %3588 = vrot.lane.b32.xlu0 %v3560, 16
        %v3589 = vpop.permute.xlu0 %3588
        %3590 = vrot.lane.b32.xlu0 %v3565, 16
        %v3591 = vpop.permute.xlu0 %3590
        %vm3600 = vcmask 195712
        %3601 = vst.msk [vmem:[#allocation2] sm:$0xff] %vm3600, %v3577
        %3602 = vst.msk [vmem:[#allocation2 + $0x8] sm:$0xff] %vm3600, %v3579
        %3603 = vst.msk [vmem:[#allocation2 + $0x10] sm:$0xff] %vm3600, %v3581
        %3604 = vst.msk [vmem:[#allocation2 + $0x18] sm:$0xff] %vm3600, %v3583
        %3605 = vst.msk [vmem:[#allocation2 + $0x20] sm:$0xff] %vm3600, %v3585
        %3606 = vst.msk [vmem:[#allocation2 + $0x28] sm:$0xff] %vm3600, %v3587
        %3607 = vst.msk [vmem:[#allocation2 + $0x30] sm:$0xff] %vm3600, %v3589
        %3608 = vst.msk [vmem:[#allocation2 + $0x38] sm:$0xff] %vm3600, %v3591
        %s3609 = scalar_lea.vmem %s544, 192 [#allocation3]
        %v3610 = vld [vmem:[%s3609] sm:$0xff]
        %v3611 = vld [vmem:[%s3609 + $0x8] sm:$0xff]
        %v3612 = vld [vmem:[%s3609 + $0x10] sm:$0xff]
        %v3613 = vld [vmem:[%s3609 + $0x18] sm:$0xff]
        %v3614 = vld [vmem:[%s3609 + $0x20] sm:$0xff]
        %v3615 = vld [vmem:[%s3609 + $0x28] sm:$0xff]
        %v3616 = vld [vmem:[%s3609 + $0x30] sm:$0xff]
        %v3617 = vld [vmem:[%s3609 + $0x38] sm:$0xff]
        %s3618 = scalar_lea.vmem %s8, 48
        %v3619 = vld [vmem:[%s3618] sm:$0xff]
        %v3620 = vld [vmem:[%s3618 + $0x8] sm:$0xff]
        %3621 = vrot.lane.b32.xlu0 %v889, 104
        %v3622 = vpop.permute.xlu0 %3621
        %3623 = vrot.lane.b32.xlu0 %v890, 104
        %v3624 = vpop.permute.xlu0 %3623
        %v3625 = vsel %vm1141, %v3622, 0
        %v3627 = vsel %vm1141, %v3624, 0
        %v3630 = vsel %vm1141, %v3610, 0
        %v3633 = vsel %vm1141, %v3611, 0
        %3635 = vmatprep.subr.mxu0 0.0
        %3636 = vmatpush1.xpose.msra.mxu0 %v3630
        %3637 = vmatprep.subr.mxu0 0.0
        %3638 = vmatpush1.xpose.msra.mxu0 %v3633
        %3639 = vmatprep.subr.mxu0 0.0
        %3640 = vmatpush1.xpose.msra.mxu0 0.0
        %3641 = vmatprep.subr.mxu0 0.0
        %3642 = vmatpush1.xpose.msra.mxu0 0.0
        %3643 = vmatprep.subr.mxu0 0.0
        %3644 = vmatpush1.xpose.msra.mxu0 0.0
        %3645 = vmatprep.subr.mxu0 0.0
        %3646 = vmatpush1.xpose.msra.mxu0 0.0
        %3647 = vmatprep.subr.mxu0 0.0
        %3648 = vmatpush1.xpose.msra.mxu0 0.0
        %3649 = vmatprep.subr.mxu0 0.0
        %3650 = vmatpush1.xpose.msra.mxu0 0.0
        %3651 = vmatprep.subr.mxu0 0.0
        %3652 = vmatpush1.xpose.msra.mxu0 0.0
        %3653 = vmatprep.subr.mxu0 0.0
        %3654 = vmatpush1.xpose.msra.mxu0 0.0
        %3655 = vmatprep.subr.mxu0 0.0
        %3656 = vmatpush1.xpose.msra.mxu0 0.0
        %3657 = vmatprep.subr.mxu0 0.0
        %3658 = vmatpush1.xpose.msra.mxu0 0.0
        %3659 = vmatprep.subr.mxu0 0.0
        %3660 = vmatpush1.xpose.msra.mxu0 0.0
        %3661 = vmatprep.subr.mxu0 0.0
        %3662 = vmatpush1.xpose.msra.mxu0 0.0
        %3663 = vmatprep.subr.mxu0 0.0
        %3664 = vmatpush1.xpose.msra.mxu0 0.0
        %3665 = vmatprep.subr.mxu0 0.0
        %3666 = vmatpush1.xpose.msra.mxu0 0.0
        %3667 = vmatprep.subr.mxu0 0.0
        %3668 = vmatpush1.xpose.msra.mxu0 0.0
        %3669 = vmatprep.subr.mxu0 0.0
        %3670 = vmatpush1.xpose.msra.mxu0 0.0
        %3671 = vmatprep.subr.mxu0 0.0
        %3672 = vmatpush1.xpose.msra.mxu0 0.0
        %3673 = vmatprep.subr.mxu0 0.0
        %3674 = vmatpush1.xpose.msra.mxu0 0.0
        %3675 = vmatprep.subr.mxu0 0.0
        %3676 = vmatpush1.xpose.msra.mxu0 0.0
        %3677 = vmatprep.subr.mxu0 0.0
        %3678 = vmatpush1.xpose.msra.mxu0 0.0
        %3679 = vmatprep.subr.mxu0 0.0
        %3680 = vmatpush1.xpose.msra.mxu0 0.0
        %3681 = vmatprep.subr.mxu0 0.0
        %3682 = vmatpush1.xpose.msra.mxu0 0.0
        %3683 = vmatprep.subr.mxu0 0.0
        %3684 = vmatpush1.xpose.msra.mxu0 0.0
        %3685 = vmatprep.subr.mxu0 0.0
        %3686 = vmatpush1.xpose.msra.mxu0 0.0
        %3687 = vmatprep.subr.mxu0 0.0
        %3688 = vmatpush1.xpose.msra.mxu0 0.0
        %3689 = vmatprep.subr.mxu0 0.0
        %3690 = vmatpush1.xpose.msra.mxu0 0.0
        %3691 = vmatprep.subr.mxu0 0.0
        %3692 = vmatpush1.xpose.msra.mxu0 0.0
        %3693 = vmatprep.subr.mxu0 0.0
        %3694 = vmatpush1.xpose.msra.mxu0 0.0
        %3695 = vmatprep.subr.mxu0 0.0
        %3696 = vmatpush1.xpose.msra.mxu0 0.0
        %3697 = vmatprep.subr.mxu0 0.0
        %3698 = vmatpush1.xpose.msra.mxu0 0.0
        %3699 = vmatprep.mubr.f32.mxu0 0.0
        %3700 = vmatmul.mubr.f32.gmra.mrb[0].mxu0 %v3625
        %v3701 = vpop.f32.mrb[0].mxu0
        %v3702 = vadd.f32 %v3619, %v3701
        %v3703 = vpop.f32.mrb[0].mxu0
        %3704 = vmatprep.mubr.f32.mxu0 0.0
        %3705 = vmatmul.mubr.f32.gmra.mrb[0].mxu0 %v3627
        %v3706 = vpop.f32.mrb[0].mxu0
        %v3707 = vadd.f32 %v3620, %v3706
        %v3708 = vpop.f32.mrb[0].mxu0
        %3709 = vdwg.mxu0
        %3710 = vrot.lane.b32.xlu0 %v891, 104
        %v3711 = vpop.permute.xlu0 %3710
        %3712 = vrot.lane.b32.xlu0 %v892, 104
        %v3713 = vpop.permute.xlu0 %3712
        %v3714 = vsel %vm1141, %v3711, 0
        %v3716 = vsel %vm1141, %v3713, 0
        %v3719 = vsel %vm1141, %v3612, 0
        %v3722 = vsel %vm1141, %v3613, 0
        %3724 = vmatprep.subr.mxu0 0.0
        %3725 = vmatpush1.xpose.msra.mxu0 %v3719
        %3726 = vmatprep.subr.mxu0 0.0
        %3727 = vmatpush1.xpose.msra.mxu0 %v3722
        %3728 = vmatprep.subr.mxu0 0.0
        %3729 = vmatpush1.xpose.msra.mxu0 0.0
        %3730 = vmatprep.subr.mxu0 0.0
        %3731 = vmatpush1.xpose.msra.mxu0 0.0
        %3732 = vmatprep.subr.mxu0 0.0
        %3733 = vmatpush1.xpose.msra.mxu0 0.0
        %3734 = vmatprep.subr.mxu0 0.0
        %3735 = vmatpush1.xpose.msra.mxu0 0.0
        %3736 = vmatprep.subr.mxu0 0.0
        %3737 = vmatpush1.xpose.msra.mxu0 0.0
        %3738 = vmatprep.subr.mxu0 0.0
        %3739 = vmatpush1.xpose.msra.mxu0 0.0
        %3740 = vmatprep.subr.mxu0 0.0
        %3741 = vmatpush1.xpose.msra.mxu0 0.0
        %3742 = vmatprep.subr.mxu0 0.0
        %3743 = vmatpush1.xpose.msra.mxu0 0.0
        %3744 = vmatprep.subr.mxu0 0.0
        %3745 = vmatpush1.xpose.msra.mxu0 0.0
        %3746 = vmatprep.subr.mxu0 0.0
        %3747 = vmatpush1.xpose.msra.mxu0 0.0
        %3748 = vmatprep.subr.mxu0 0.0
        %3749 = vmatpush1.xpose.msra.mxu0 0.0
        %3750 = vmatprep.subr.mxu0 0.0
        %3751 = vmatpush1.xpose.msra.mxu0 0.0
        %3752 = vmatprep.subr.mxu0 0.0
        %3753 = vmatpush1.xpose.msra.mxu0 0.0
        %3754 = vmatprep.subr.mxu0 0.0
        %3755 = vmatpush1.xpose.msra.mxu0 0.0
        %3756 = vmatprep.subr.mxu0 0.0
        %3757 = vmatpush1.xpose.msra.mxu0 0.0
        %3758 = vmatprep.subr.mxu0 0.0
        %3759 = vmatpush1.xpose.msra.mxu0 0.0
        %3760 = vmatprep.subr.mxu0 0.0
        %3761 = vmatpush1.xpose.msra.mxu0 0.0
        %3762 = vmatprep.subr.mxu0 0.0
        %3763 = vmatpush1.xpose.msra.mxu0 0.0
        %3764 = vmatprep.subr.mxu0 0.0
        %3765 = vmatpush1.xpose.msra.mxu0 0.0
        %3766 = vmatprep.subr.mxu0 0.0
        %3767 = vmatpush1.xpose.msra.mxu0 0.0
        %3768 = vmatprep.subr.mxu0 0.0
        %3769 = vmatpush1.xpose.msra.mxu0 0.0
        %3770 = vmatprep.subr.mxu0 0.0
        %3771 = vmatpush1.xpose.msra.mxu0 0.0
        %3772 = vmatprep.subr.mxu0 0.0
        %3773 = vmatpush1.xpose.msra.mxu0 0.0
        %3774 = vmatprep.subr.mxu0 0.0
        %3775 = vmatpush1.xpose.msra.mxu0 0.0
        %3776 = vmatprep.subr.mxu0 0.0
        %3777 = vmatpush1.xpose.msra.mxu0 0.0
        %3778 = vmatprep.subr.mxu0 0.0
        %3779 = vmatpush1.xpose.msra.mxu0 0.0
        %3780 = vmatprep.subr.mxu0 0.0
        %3781 = vmatpush1.xpose.msra.mxu0 0.0
        %3782 = vmatprep.subr.mxu0 0.0
        %3783 = vmatpush1.xpose.msra.mxu0 0.0
        %3784 = vmatprep.subr.mxu0 0.0
        %3785 = vmatpush1.xpose.msra.mxu0 0.0
        %3786 = vmatprep.subr.mxu0 0.0
        %3787 = vmatpush1.xpose.msra.mxu0 0.0
        %3788 = vmatprep.mubr.f32.mxu0 0.0
        %3789 = vmatmul.mubr.f32.gmra.mrb[0].mxu0 %v3714
        %v3790 = vpop.f32.mrb[0].mxu0
        %v3791 = vadd.f32 %v3619, %v3790
        %v3792 = vpop.f32.mrb[0].mxu0
        %3793 = vmatprep.mubr.f32.mxu0 0.0
        %3794 = vmatmul.mubr.f32.gmra.mrb[0].mxu0 %v3716
        %v3795 = vpop.f32.mrb[0].mxu0
        %v3796 = vadd.f32 %v3620, %v3795
        %v3797 = vpop.f32.mrb[0].mxu0
        %3798 = vdwg.mxu0
        %3799 = vrot.lane.b32.xlu0 %v893, 104
        %v3800 = vpop.permute.xlu0 %3799
        %3801 = vrot.lane.b32.xlu0 %v894, 104
        %v3802 = vpop.permute.xlu0 %3801
        %v3803 = vsel %vm1141, %v3800, 0
        %v3805 = vsel %vm1141, %v3802, 0
        %v3808 = vsel %vm1141, %v3614, 0
        %v3811 = vsel %vm1141, %v3615, 0
        %3813 = vmatprep.subr.mxu0 0.0
        %3814 = vmatpush1.xpose.msra.mxu0 %v3808
        %3815 = vmatprep.subr.mxu0 0.0
        %3816 = vmatpush1.xpose.msra.mxu0 %v3811
        %3817 = vmatprep.subr.mxu0 0.0
        %3818 = vmatpush1.xpose.msra.mxu0 0.0
        %3819 = vmatprep.subr.mxu0 0.0
        %3820 = vmatpush1.xpose.msra.mxu0 0.0
        %3821 = vmatprep.subr.mxu0 0.0
        %3822 = vmatpush1.xpose.msra.mxu0 0.0
        %3823 = vmatprep.subr.mxu0 0.0
        %3824 = vmatpush1.xpose.msra.mxu0 0.0
        %3825 = vmatprep.subr.mxu0 0.0
        %3826 = vmatpush1.xpose.msra.mxu0 0.0
        %3827 = vmatprep.subr.mxu0 0.0
        %3828 = vmatpush1.xpose.msra.mxu0 0.0
        %3829 = vmatprep.subr.mxu0 0.0
        %3830 = vmatpush1.xpose.msra.mxu0 0.0
        %3831 = vmatprep.subr.mxu0 0.0
        %3832 = vmatpush1.xpose.msra.mxu0 0.0
        %3833 = vmatprep.subr.mxu0 0.0
        %3834 = vmatpush1.xpose.msra.mxu0 0.0
        %3835 = vmatprep.subr.mxu0 0.0
        %3836 = vmatpush1.xpose.msra.mxu0 0.0
        %3837 = vmatprep.subr.mxu0 0.0
        %3838 = vmatpush1.xpose.msra.mxu0 0.0
        %3839 = vmatprep.subr.mxu0 0.0
        %3840 = vmatpush1.xpose.msra.mxu0 0.0
        %3841 = vmatprep.subr.mxu0 0.0
        %3842 = vmatpush1.xpose.msra.mxu0 0.0
        %3843 = vmatprep.subr.mxu0 0.0
        %3844 = vmatpush1.xpose.msra.mxu0 0.0
        %3845 = vmatprep.subr.mxu0 0.0
        %3846 = vmatpush1.xpose.msra.mxu0 0.0
        %3847 = vmatprep.subr.mxu0 0.0
        %3848 = vmatpush1.xpose.msra.mxu0 0.0
        %3849 = vmatprep.subr.mxu0 0.0
        %3850 = vmatpush1.xpose.msra.mxu0 0.0
        %3851 = vmatprep.subr.mxu0 0.0
        %3852 = vmatpush1.xpose.msra.mxu0 0.0
        %3853 = vmatprep.subr.mxu0 0.0
        %3854 = vmatpush1.xpose.msra.mxu0 0.0
        %3855 = vmatprep.subr.mxu0 0.0
        %3856 = vmatpush1.xpose.msra.mxu0 0.0
        %3857 = vmatprep.subr.mxu0 0.0
        %3858 = vmatpush1.xpose.msra.mxu0 0.0
        %3859 = vmatprep.subr.mxu0 0.0
        %3860 = vmatpush1.xpose.msra.mxu0 0.0
        %3861 = vmatprep.subr.mxu0 0.0
        %3862 = vmatpush1.xpose.msra.mxu0 0.0
        %3863 = vmatprep.subr.mxu0 0.0
        %3864 = vmatpush1.xpose.msra.mxu0 0.0
        %3865 = vmatprep.subr.mxu0 0.0
        %3866 = vmatpush1.xpose.msra.mxu0 0.0
        %3867 = vmatprep.subr.mxu0 0.0
        %3868 = vmatpush1.xpose.msra.mxu0 0.0
        %3869 = vmatprep.subr.mxu0 0.0
        %3870 = vmatpush1.xpose.msra.mxu0 0.0
        %3871 = vmatprep.subr.mxu0 0.0
        %3872 = vmatpush1.xpose.msra.mxu0 0.0
        %3873 = vmatprep.subr.mxu0 0.0
        %3874 = vmatpush1.xpose.msra.mxu0 0.0
        %3875 = vmatprep.subr.mxu0 0.0
        %3876 = vmatpush1.xpose.msra.mxu0 0.0
        %3877 = vmatprep.mubr.f32.mxu0 0.0
        %3878 = vmatmul.mubr.f32.gmra.mrb[0].mxu0 %v3803
        %v3879 = vpop.f32.mrb[0].mxu0
        %v3880 = vadd.f32 %v3619, %v3879
        %v3881 = vpop.f32.mrb[0].mxu0
        %3882 = vmatprep.mubr.f32.mxu0 0.0
        %3883 = vmatmul.mubr.f32.gmra.mrb[0].mxu0 %v3805
        %v3884 = vpop.f32.mrb[0].mxu0
        %v3885 = vadd.f32 %v3620, %v3884
        %v3886 = vpop.f32.mrb[0].mxu0
        %3887 = vdwg.mxu0
        %3888 = vrot.lane.b32.xlu0 %v895, 104
        %v3889 = vpop.permute.xlu0 %3888
        %3890 = vrot.lane.b32.xlu0 %v896, 104
        %v3891 = vpop.permute.xlu0 %3890
        %v3892 = vsel %vm1141, %v3889, 0
        %v3894 = vsel %vm1141, %v3891, 0
        %v3897 = vsel %vm1141, %v3616, 0
        %v3900 = vsel %vm1141, %v3617, 0
        %3902 = vmatprep.subr.mxu0 0.0
        %3903 = vmatpush1.xpose.msra.mxu0 %v3897
        %3904 = vmatprep.subr.mxu0 0.0
        %3905 = vmatpush1.xpose.msra.mxu0 %v3900
        %3906 = vmatprep.subr.mxu0 0.0
        %3907 = vmatpush1.xpose.msra.mxu0 0.0
        %3908 = vmatprep.subr.mxu0 0.0
        %3909 = vmatpush1.xpose.msra.mxu0 0.0
        %3910 = vmatprep.subr.mxu0 0.0
        %3911 = vmatpush1.xpose.msra.mxu0 0.0
        %3912 = vmatprep.subr.mxu0 0.0
        %3913 = vmatpush1.xpose.msra.mxu0 0.0
        %3914 = vmatprep.subr.mxu0 0.0
        %3915 = vmatpush1.xpose.msra.mxu0 0.0
        %3916 = vmatprep.subr.mxu0 0.0
        %3917 = vmatpush1.xpose.msra.mxu0 0.0
        %3918 = vmatprep.subr.mxu0 0.0
        %3919 = vmatpush1.xpose.msra.mxu0 0.0
        %3920 = vmatprep.subr.mxu0 0.0
        %3921 = vmatpush1.xpose.msra.mxu0 0.0
        %3922 = vmatprep.subr.mxu0 0.0
        %3923 = vmatpush1.xpose.msra.mxu0 0.0
        %3924 = vmatprep.subr.mxu0 0.0
        %3925 = vmatpush1.xpose.msra.mxu0 0.0
        %3926 = vmatprep.subr.mxu0 0.0
        %3927 = vmatpush1.xpose.msra.mxu0 0.0
        %3928 = vmatprep.subr.mxu0 0.0
        %3929 = vmatpush1.xpose.msra.mxu0 0.0
        %3930 = vmatprep.subr.mxu0 0.0
        %3931 = vmatpush1.xpose.msra.mxu0 0.0
        %3932 = vmatprep.subr.mxu0 0.0
        %3933 = vmatpush1.xpose.msra.mxu0 0.0
        %3934 = vmatprep.subr.mxu0 0.0
        %3935 = vmatpush1.xpose.msra.mxu0 0.0
        %3936 = vmatprep.subr.mxu0 0.0
        %3937 = vmatpush1.xpose.msra.mxu0 0.0
        %3938 = vmatprep.subr.mxu0 0.0
        %3939 = vmatpush1.xpose.msra.mxu0 0.0
        %3940 = vmatprep.subr.mxu0 0.0
        %3941 = vmatpush1.xpose.msra.mxu0 0.0
        %3942 = vmatprep.subr.mxu0 0.0
        %3943 = vmatpush1.xpose.msra.mxu0 0.0
        %3944 = vmatprep.subr.mxu0 0.0
        %3945 = vmatpush1.xpose.msra.mxu0 0.0
        %3946 = vmatprep.subr.mxu0 0.0
        %3947 = vmatpush1.xpose.msra.mxu0 0.0
        %3948 = vmatprep.subr.mxu0 0.0
        %3949 = vmatpush1.xpose.msra.mxu0 0.0
        %3950 = vmatprep.subr.mxu0 0.0
        %3951 = vmatpush1.xpose.msra.mxu0 0.0
        %3952 = vmatprep.subr.mxu0 0.0
        %3953 = vmatpush1.xpose.msra.mxu0 0.0
        %3954 = vmatprep.subr.mxu0 0.0
        %3955 = vmatpush1.xpose.msra.mxu0 0.0
        %3956 = vmatprep.subr.mxu0 0.0
        %3957 = vmatpush1.xpose.msra.mxu0 0.0
        %3958 = vmatprep.subr.mxu0 0.0
        %3959 = vmatpush1.xpose.msra.mxu0 0.0
        %3960 = vmatprep.subr.mxu0 0.0
        %3961 = vmatpush1.xpose.msra.mxu0 0.0
        %3962 = vmatprep.subr.mxu0 0.0
        %3963 = vmatpush1.xpose.msra.mxu0 0.0
        %3964 = vmatprep.subr.mxu0 0.0
        %3965 = vmatpush1.xpose.msra.mxu0 0.0
        %3966 = vmatprep.mubr.f32.mxu0 0.0
        %3967 = vmatmul.mubr.f32.gmra.mrb[0].mxu0 %v3892
        %v3968 = vpop.f32.mrb[0].mxu0
        %v3969 = vadd.f32 %v3619, %v3968
        %v3970 = vpop.f32.mrb[0].mxu0
        %3971 = vmatprep.mubr.f32.mxu0 0.0
        %3972 = vmatmul.mubr.f32.gmra.mrb[0].mxu0 %v3894
        %v3973 = vpop.f32.mrb[0].mxu0
        %v3974 = vadd.f32 %v3620, %v3973
        %v3975 = vpop.f32.mrb[0].mxu0
        %3976 = vdwg.mxu0
        %v3977 = vsel %vm1490, %v3702, -inf
        %3978 = vmax.xlane.f32.xlu0 %v3977
        %v3979 = vpop.xlane.xlu0 %3978
        %v3980 = vsel %vm1490, %v3707, -inf
        %3981 = vmax.xlane.f32.xlu0 %v3980
        %v3982 = vpop.xlane.xlu0 %3981
        %v3983 = vsel %vm1490, %v3791, -inf
        %3984 = vmax.xlane.f32.xlu0 %v3983
        %v3985 = vpop.xlane.xlu0 %3984
        %v3986 = vsel %vm1490, %v3796, -inf
        %3987 = vmax.xlane.f32.xlu0 %v3986
        %v3988 = vpop.xlane.xlu0 %3987
        %v3989 = vsel %vm1490, %v3880, -inf
        %3990 = vmax.xlane.f32.xlu0 %v3989
        %v3991 = vpop.xlane.xlu0 %3990
        %v3992 = vsel %vm1490, %v3885, -inf
        %3993 = vmax.xlane.f32.xlu0 %v3992
        %v3994 = vpop.xlane.xlu0 %3993
        %v3995 = vsel %vm1490, %v3969, -inf
        %3996 = vmax.xlane.f32.xlu0 %v3995
        %v3997 = vpop.xlane.xlu0 %3996
        %v3998 = vsel %vm1490, %v3974, -inf
        %3999 = vmax.xlane.f32.xlu0 %v3998
        %v4000 = vpop.xlane.xlu0 %3999
        %v4001 = vsub.f32 %v3702, %v3979
        %v4002 = vsub.f32 %v3707, %v3982
        %v4003 = vsub.f32 %v3791, %v3985
        %v4004 = vsub.f32 %v3796, %v3988
        %v4005 = vsub.f32 %v3880, %v3991
        %v4006 = vsub.f32 %v3885, %v3994
        %v4007 = vsub.f32 %v3969, %v3997
        %v4008 = vsub.f32 %v3974, %v4000
        %v4009 = vmul.f32 %v4001, 1.442695
        %v4010 = vpow.pop %v4009
        %v4011 = vmul.f32 %v4002, 1.442695
        %v4012 = vpow.pop %v4011
        %v4013 = vmul.f32 %v4003, 1.442695
        %v4014 = vpow.pop %v4013
        %v4015 = vmul.f32 %v4004, 1.442695
        %v4016 = vpow.pop %v4015
        %v4017 = vmul.f32 %v4005, 1.442695
        %v4018 = vpow.pop %v4017
        %v4019 = vmul.f32 %v4006, 1.442695
        %v4020 = vpow.pop %v4019
        %v4021 = vmul.f32 %v4007, 1.442695
        %v4022 = vpow.pop %v4021
        %v4023 = vmul.f32 %v4008, 1.442695
        %v4024 = vpow.pop %v4023
        %v4025 = vsel %vm1490, %v4010, 0.0
        %4026 = vadd.xlane.f32.xlu0 %v4025
        %v4027 = vpop.xlane.xlu0 %4026
        %v4028 = vsel %vm1490, %v4012, 0.0
        %4029 = vadd.xlane.f32.xlu0 %v4028
        %v4030 = vpop.xlane.xlu0 %4029
        %v4031 = vsel %vm1490, %v4014, 0.0
        %4032 = vadd.xlane.f32.xlu0 %v4031
        %v4033 = vpop.xlane.xlu0 %4032
        %v4034 = vsel %vm1490, %v4016, 0.0
        %4035 = vadd.xlane.f32.xlu0 %v4034
        %v4036 = vpop.xlane.xlu0 %4035
        %v4037 = vsel %vm1490, %v4018, 0.0
        %4038 = vadd.xlane.f32.xlu0 %v4037
        %v4039 = vpop.xlane.xlu0 %4038
        %v4040 = vsel %vm1490, %v4020, 0.0
        %4041 = vadd.xlane.f32.xlu0 %v4040
        %v4042 = vpop.xlane.xlu0 %4041
        %v4043 = vsel %vm1490, %v4022, 0.0
        %4044 = vadd.xlane.f32.xlu0 %v4043
        %v4045 = vpop.xlane.xlu0 %4044
        %v4046 = vsel %vm1490, %v4024, 0.0
        %4047 = vadd.xlane.f32.xlu0 %v4046
        %v4048 = vpop.xlane.xlu0 %4047
        %v4049 = vrcp.pop %v4027
        %v4050 = vrcp.pop %v4030
        %v4051 = vrcp.pop %v4033
        %v4052 = vrcp.pop %v4036
        %v4053 = vrcp.pop %v4039
        %v4054 = vrcp.pop %v4042
        %v4055 = vrcp.pop %v4045
        %v4056 = vrcp.pop %v4048
        %v4057 = vmul.f32 %v4010, %v4049
        %v4058 = vmul.f32 %v4012, %v4050
        %v4059 = vmul.f32 %v4014, %v4051
        %v4060 = vmul.f32 %v4016, %v4052
        %v4061 = vmul.f32 %v4018, %v4053
        %v4062 = vmul.f32 %v4020, %v4054
        %v4063 = vmul.f32 %v4022, %v4055
        %v4064 = vmul.f32 %v4024, %v4056
        %4065 = vrot.lane.b32.xlu0 %v1085, 104
        %v4066 = vpop.permute.xlu0 %4065
        %4067 = vrot.lane.b32.xlu0 %v1090, 104
        %v4068 = vpop.permute.xlu0 %4067
        %v4072 = vsel %vm1490, %v4057, 0
        %v4075 = vsel %vm1490, %v4058, 0
        %4077 = vmatprep.subr.mxu0 0.0
        %4078 = vmatpush1.msra.mxu0 %v4066
        %4079 = vmatprep.subr.mxu0 0.0
        %4080 = vmatpush1.msra.mxu0 %v4068
        %4081 = vmatprep.subr.mxu0 0.0
        %4082 = vmatpush1.msra.mxu0 0.0
        %4083 = vmatprep.subr.mxu0 0.0
        %4084 = vmatpush1.msra.mxu0 0.0
        %4085 = vmatprep.subr.mxu0 0.0
        %4086 = vmatpush1.msra.mxu0 0.0
        %4087 = vmatprep.subr.mxu0 0.0
        %4088 = vmatpush1.msra.mxu0 0.0
        %4089 = vmatprep.subr.mxu0 0.0
        %4090 = vmatpush1.msra.mxu0 0.0
        %4091 = vmatprep.subr.mxu0 0.0
        %4092 = vmatpush1.msra.mxu0 0.0
        %4093 = vmatprep.subr.mxu0 0.0
        %4094 = vmatpush1.msra.mxu0 0.0
        %4095 = vmatprep.subr.mxu0 0.0
        %4096 = vmatpush1.msra.mxu0 0.0
        %4097 = vmatprep.subr.mxu0 0.0
        %4098 = vmatpush1.msra.mxu0 0.0
        %4099 = vmatprep.subr.mxu0 0.0
        %4100 = vmatpush1.msra.mxu0 0.0
        %4101 = vmatprep.subr.mxu0 0.0
        %4102 = vmatpush1.msra.mxu0 0.0
        %4103 = vmatprep.subr.mxu0 0.0
        %4104 = vmatpush1.msra.mxu0 0.0
        %4105 = vmatprep.subr.mxu0 0.0
        %4106 = vmatpush1.msra.mxu0 0.0
        %4107 = vmatprep.subr.mxu0 0.0
        %4108 = vmatpush1.msra.mxu0 0.0
        %4109 = vmatprep.subr.mxu0 0.0
        %4110 = vmatpush1.msra.mxu0 0.0
        %4111 = vmatprep.subr.mxu0 0.0
        %4112 = vmatpush1.msra.mxu0 0.0
        %4113 = vmatprep.subr.mxu0 0.0
        %4114 = vmatpush1.msra.mxu0 0.0
        %4115 = vmatprep.subr.mxu0 0.0
        %4116 = vmatpush1.msra.mxu0 0.0
        %4117 = vmatprep.subr.mxu0 0.0
        %4118 = vmatpush1.msra.mxu0 0.0
        %4119 = vmatprep.subr.mxu0 0.0
        %4120 = vmatpush1.msra.mxu0 0.0
        %4121 = vmatprep.subr.mxu0 0.0
        %4122 = vmatpush1.msra.mxu0 0.0
        %4123 = vmatprep.subr.mxu0 0.0
        %4124 = vmatpush1.msra.mxu0 0.0
        %4125 = vmatprep.subr.mxu0 0.0
        %4126 = vmatpush1.msra.mxu0 0.0
        %4127 = vmatprep.subr.mxu0 0.0
        %4128 = vmatpush1.msra.mxu0 0.0
        %4129 = vmatprep.subr.mxu0 0.0
        %4130 = vmatpush1.msra.mxu0 0.0
        %4131 = vmatprep.subr.mxu0 0.0
        %4132 = vmatpush1.msra.mxu0 0.0
        %4133 = vmatprep.subr.mxu0 0.0
        %4134 = vmatpush1.msra.mxu0 0.0
        %4135 = vmatprep.subr.mxu0 0.0
        %4136 = vmatpush1.msra.mxu0 0.0
        %4137 = vmatprep.subr.mxu0 0.0
        %4138 = vmatpush1.msra.mxu0 0.0
        %4139 = vmatprep.subr.mxu0 0.0
        %4140 = vmatpush1.msra.mxu0 0.0
        %4141 = vmatprep.mubr.f32.mxu0 0.0
        %4142 = vmatmul.mubr.f32.gmra.mrb[0].mxu0 %v4072
        %v4143 = vpop.f32.mrb[0].mxu0
        %v4144 = vadd.f32 0.0, %v4143
        %v4145 = vpop.f32.mrb[0].mxu0
        %4146 = vmatprep.mubr.f32.mxu0 0.0
        %4147 = vmatmul.mubr.f32.gmra.mrb[0].mxu0 %v4075
        %v4148 = vpop.f32.mrb[0].mxu0
        %v4149 = vadd.f32 0.0, %v4148
        %v4150 = vpop.f32.mrb[0].mxu0
        %4151 = vdwg.mxu0
        %4152 = vrot.lane.b32.xlu0 %v1095, 104
        %v4153 = vpop.permute.xlu0 %4152
        %4154 = vrot.lane.b32.xlu0 %v1100, 104
        %v4155 = vpop.permute.xlu0 %4154
        %v4159 = vsel %vm1490, %v4059, 0
        %v4162 = vsel %vm1490, %v4060, 0
        %4164 = vmatprep.subr.mxu0 0.0
        %4165 = vmatpush1.msra.mxu0 %v4153
        %4166 = vmatprep.subr.mxu0 0.0
        %4167 = vmatpush1.msra.mxu0 %v4155
        %4168 = vmatprep.subr.mxu0 0.0
        %4169 = vmatpush1.msra.mxu0 0.0
        %4170 = vmatprep.subr.mxu0 0.0
        %4171 = vmatpush1.msra.mxu0 0.0
        %4172 = vmatprep.subr.mxu0 0.0
        %4173 = vmatpush1.msra.mxu0 0.0
        %4174 = vmatprep.subr.mxu0 0.0
        %4175 = vmatpush1.msra.mxu0 0.0
        %4176 = vmatprep.subr.mxu0 0.0
        %4177 = vmatpush1.msra.mxu0 0.0
        %4178 = vmatprep.subr.mxu0 0.0
        %4179 = vmatpush1.msra.mxu0 0.0
        %4180 = vmatprep.subr.mxu0 0.0
        %4181 = vmatpush1.msra.mxu0 0.0
        %4182 = vmatprep.subr.mxu0 0.0
        %4183 = vmatpush1.msra.mxu0 0.0
        %4184 = vmatprep.subr.mxu0 0.0
        %4185 = vmatpush1.msra.mxu0 0.0
        %4186 = vmatprep.subr.mxu0 0.0
        %4187 = vmatpush1.msra.mxu0 0.0
        %4188 = vmatprep.subr.mxu0 0.0
        %4189 = vmatpush1.msra.mxu0 0.0
        %4190 = vmatprep.subr.mxu0 0.0
        %4191 = vmatpush1.msra.mxu0 0.0
        %4192 = vmatprep.subr.mxu0 0.0
        %4193 = vmatpush1.msra.mxu0 0.0
        %4194 = vmatprep.subr.mxu0 0.0
        %4195 = vmatpush1.msra.mxu0 0.0
        %4196 = vmatprep.subr.mxu0 0.0
        %4197 = vmatpush1.msra.mxu0 0.0
        %4198 = vmatprep.subr.mxu0 0.0
        %4199 = vmatpush1.msra.mxu0 0.0
        %4200 = vmatprep.subr.mxu0 0.0
        %4201 = vmatpush1.msra.mxu0 0.0
        %4202 = vmatprep.subr.mxu0 0.0
        %4203 = vmatpush1.msra.mxu0 0.0
        %4204 = vmatprep.subr.mxu0 0.0
        %4205 = vmatpush1.msra.mxu0 0.0
        %4206 = vmatprep.subr.mxu0 0.0
        %4207 = vmatpush1.msra.mxu0 0.0
        %4208 = vmatprep.subr.mxu0 0.0
        %4209 = vmatpush1.msra.mxu0 0.0
        %4210 = vmatprep.subr.mxu0 0.0
        %4211 = vmatpush1.msra.mxu0 0.0
        %4212 = vmatprep.subr.mxu0 0.0
        %4213 = vmatpush1.msra.mxu0 0.0
        %4214 = vmatprep.subr.mxu0 0.0
        %4215 = vmatpush1.msra.mxu0 0.0
        %4216 = vmatprep.subr.mxu0 0.0
        %4217 = vmatpush1.msra.mxu0 0.0
        %4218 = vmatprep.subr.mxu0 0.0
        %4219 = vmatpush1.msra.mxu0 0.0
        %4220 = vmatprep.subr.mxu0 0.0
        %4221 = vmatpush1.msra.mxu0 0.0
        %4222 = vmatprep.subr.mxu0 0.0
        %4223 = vmatpush1.msra.mxu0 0.0
        %4224 = vmatprep.subr.mxu0 0.0
        %4225 = vmatpush1.msra.mxu0 0.0
        %4226 = vmatprep.subr.mxu0 0.0
        %4227 = vmatpush1.msra.mxu0 0.0
        %4228 = vmatprep.mubr.f32.mxu0 0.0
        %4229 = vmatmul.mubr.f32.gmra.mrb[0].mxu0 %v4159
        %v4230 = vpop.f32.mrb[0].mxu0
        %v4231 = vadd.f32 0.0, %v4230
        %v4232 = vpop.f32.mrb[0].mxu0
        %4233 = vmatprep.mubr.f32.mxu0 0.0
        %4234 = vmatmul.mubr.f32.gmra.mrb[0].mxu0 %v4162
        %v4235 = vpop.f32.mrb[0].mxu0
        %v4236 = vadd.f32 0.0, %v4235
        %v4237 = vpop.f32.mrb[0].mxu0
        %4238 = vdwg.mxu0
        %4239 = vrot.lane.b32.xlu0 %v1105, 104
        %v4240 = vpop.permute.xlu0 %4239
        %4241 = vrot.lane.b32.xlu0 %v1110, 104
        %v4242 = vpop.permute.xlu0 %4241
        %v4246 = vsel %vm1490, %v4061, 0
        %v4249 = vsel %vm1490, %v4062, 0
        %4251 = vmatprep.subr.mxu0 0.0
        %4252 = vmatpush1.msra.mxu0 %v4240
        %4253 = vmatprep.subr.mxu0 0.0
        %4254 = vmatpush1.msra.mxu0 %v4242
        %4255 = vmatprep.subr.mxu0 0.0
        %4256 = vmatpush1.msra.mxu0 0.0
        %4257 = vmatprep.subr.mxu0 0.0
        %4258 = vmatpush1.msra.mxu0 0.0
        %4259 = vmatprep.subr.mxu0 0.0
        %4260 = vmatpush1.msra.mxu0 0.0
        %4261 = vmatprep.subr.mxu0 0.0
        %4262 = vmatpush1.msra.mxu0 0.0
        %4263 = vmatprep.subr.mxu0 0.0
        %4264 = vmatpush1.msra.mxu0 0.0
        %4265 = vmatprep.subr.mxu0 0.0
        %4266 = vmatpush1.msra.mxu0 0.0
        %4267 = vmatprep.subr.mxu0 0.0
        %4268 = vmatpush1.msra.mxu0 0.0
        %4269 = vmatprep.subr.mxu0 0.0
        %4270 = vmatpush1.msra.mxu0 0.0
        %4271 = vmatprep.subr.mxu0 0.0
        %4272 = vmatpush1.msra.mxu0 0.0
        %4273 = vmatprep.subr.mxu0 0.0
        %4274 = vmatpush1.msra.mxu0 0.0
        %4275 = vmatprep.subr.mxu0 0.0
        %4276 = vmatpush1.msra.mxu0 0.0
        %4277 = vmatprep.subr.mxu0 0.0
        %4278 = vmatpush1.msra.mxu0 0.0
        %4279 = vmatprep.subr.mxu0 0.0
        %4280 = vmatpush1.msra.mxu0 0.0
        %4281 = vmatprep.subr.mxu0 0.0
        %4282 = vmatpush1.msra.mxu0 0.0
        %4283 = vmatprep.subr.mxu0 0.0
        %4284 = vmatpush1.msra.mxu0 0.0
        %4285 = vmatprep.subr.mxu0 0.0
        %4286 = vmatpush1.msra.mxu0 0.0
        %4287 = vmatprep.subr.mxu0 0.0
        %4288 = vmatpush1.msra.mxu0 0.0
        %4289 = vmatprep.subr.mxu0 0.0
        %4290 = vmatpush1.msra.mxu0 0.0
        %4291 = vmatprep.subr.mxu0 0.0
        %4292 = vmatpush1.msra.mxu0 0.0
        %4293 = vmatprep.subr.mxu0 0.0
        %4294 = vmatpush1.msra.mxu0 0.0
        %4295 = vmatprep.subr.mxu0 0.0
        %4296 = vmatpush1.msra.mxu0 0.0
        %4297 = vmatprep.subr.mxu0 0.0
        %4298 = vmatpush1.msra.mxu0 0.0
        %4299 = vmatprep.subr.mxu0 0.0
        %4300 = vmatpush1.msra.mxu0 0.0
        %4301 = vmatprep.subr.mxu0 0.0
        %4302 = vmatpush1.msra.mxu0 0.0
        %4303 = vmatprep.subr.mxu0 0.0
        %4304 = vmatpush1.msra.mxu0 0.0
        %4305 = vmatprep.subr.mxu0 0.0
        %4306 = vmatpush1.msra.mxu0 0.0
        %4307 = vmatprep.subr.mxu0 0.0
        %4308 = vmatpush1.msra.mxu0 0.0
        %4309 = vmatprep.subr.mxu0 0.0
        %4310 = vmatpush1.msra.mxu0 0.0
        %4311 = vmatprep.subr.mxu0 0.0
        %4312 = vmatpush1.msra.mxu0 0.0
        %4313 = vmatprep.subr.mxu0 0.0
        %4314 = vmatpush1.msra.mxu0 0.0
        %4315 = vmatprep.mubr.f32.mxu0 0.0
        %4316 = vmatmul.mubr.f32.gmra.mrb[0].mxu0 %v4246
        %v4317 = vpop.f32.mrb[0].mxu0
        %v4318 = vadd.f32 0.0, %v4317
        %v4319 = vpop.f32.mrb[0].mxu0
        %4320 = vmatprep.mubr.f32.mxu0 0.0
        %4321 = vmatmul.mubr.f32.gmra.mrb[0].mxu0 %v4249
        %v4322 = vpop.f32.mrb[0].mxu0
        %v4323 = vadd.f32 0.0, %v4322
        %v4324 = vpop.f32.mrb[0].mxu0
        %4325 = vdwg.mxu0
        %4326 = vrot.lane.b32.xlu0 %v1115, 104
        %v4327 = vpop.permute.xlu0 %4326
        %4328 = vrot.lane.b32.xlu0 %v1120, 104
        %v4329 = vpop.permute.xlu0 %4328
        %v4333 = vsel %vm1490, %v4063, 0
        %v4336 = vsel %vm1490, %v4064, 0
        %4338 = vmatprep.subr.mxu0 0.0
        %4339 = vmatpush1.msra.mxu0 %v4327
        %4340 = vmatprep.subr.mxu0 0.0
        %4341 = vmatpush1.msra.mxu0 %v4329
        %4342 = vmatprep.subr.mxu0 0.0
        %4343 = vmatpush1.msra.mxu0 0.0
        %4344 = vmatprep.subr.mxu0 0.0
        %4345 = vmatpush1.msra.mxu0 0.0
        %4346 = vmatprep.subr.mxu0 0.0
        %4347 = vmatpush1.msra.mxu0 0.0
        %4348 = vmatprep.subr.mxu0 0.0
        %4349 = vmatpush1.msra.mxu0 0.0
        %4350 = vmatprep.subr.mxu0 0.0
        %4351 = vmatpush1.msra.mxu0 0.0
        %4352 = vmatprep.subr.mxu0 0.0
        %4353 = vmatpush1.msra.mxu0 0.0
        %4354 = vmatprep.subr.mxu0 0.0
        %4355 = vmatpush1.msra.mxu0 0.0
        %4356 = vmatprep.subr.mxu0 0.0
        %4357 = vmatpush1.msra.mxu0 0.0
        %4358 = vmatprep.subr.mxu0 0.0
        %4359 = vmatpush1.msra.mxu0 0.0
        %4360 = vmatprep.subr.mxu0 0.0
        %4361 = vmatpush1.msra.mxu0 0.0
        %4362 = vmatprep.subr.mxu0 0.0
        %4363 = vmatpush1.msra.mxu0 0.0
        %4364 = vmatprep.subr.mxu0 0.0
        %4365 = vmatpush1.msra.mxu0 0.0
        %4366 = vmatprep.subr.mxu0 0.0
        %4367 = vmatpush1.msra.mxu0 0.0
        %4368 = vmatprep.subr.mxu0 0.0
        %4369 = vmatpush1.msra.mxu0 0.0
        %4370 = vmatprep.subr.mxu0 0.0
        %4371 = vmatpush1.msra.mxu0 0.0
        %4372 = vmatprep.subr.mxu0 0.0
        %4373 = vmatpush1.msra.mxu0 0.0
        %4374 = vmatprep.subr.mxu0 0.0
        %4375 = vmatpush1.msra.mxu0 0.0
        %4376 = vmatprep.subr.mxu0 0.0
        %4377 = vmatpush1.msra.mxu0 0.0
        %4378 = vmatprep.subr.mxu0 0.0
        %4379 = vmatpush1.msra.mxu0 0.0
        %4380 = vmatprep.subr.mxu0 0.0
        %4381 = vmatpush1.msra.mxu0 0.0
        %4382 = vmatprep.subr.mxu0 0.0
        %4383 = vmatpush1.msra.mxu0 0.0
        %4384 = vmatprep.subr.mxu0 0.0
        %4385 = vmatpush1.msra.mxu0 0.0
        %4386 = vmatprep.subr.mxu0 0.0
        %4387 = vmatpush1.msra.mxu0 0.0
        %4388 = vmatprep.subr.mxu0 0.0
        %4389 = vmatpush1.msra.mxu0 0.0
        %4390 = vmatprep.subr.mxu0 0.0
        %4391 = vmatpush1.msra.mxu0 0.0
        %4392 = vmatprep.subr.mxu0 0.0
        %4393 = vmatpush1.msra.mxu0 0.0
        %4394 = vmatprep.subr.mxu0 0.0
        %4395 = vmatpush1.msra.mxu0 0.0
        %4396 = vmatprep.subr.mxu0 0.0
        %4397 = vmatpush1.msra.mxu0 0.0
        %4398 = vmatprep.subr.mxu0 0.0
        %4399 = vmatpush1.msra.mxu0 0.0
        %4400 = vmatprep.subr.mxu0 0.0
        %4401 = vmatpush1.msra.mxu0 0.0
        %4402 = vmatprep.mubr.f32.mxu0 0.0
        %4403 = vmatmul.mubr.f32.gmra.mrb[0].mxu0 %v4333
        %v4404 = vpop.f32.mrb[0].mxu0
        %v4405 = vadd.f32 0.0, %v4404
        %v4406 = vpop.f32.mrb[0].mxu0
        %4407 = vmatprep.mubr.f32.mxu0 0.0
        %4408 = vmatmul.mubr.f32.gmra.mrb[0].mxu0 %v4336
        %v4409 = vpop.f32.mrb[0].mxu0
        %v4410 = vadd.f32 0.0, %v4409
        %v4411 = vpop.f32.mrb[0].mxu0
        %4412 = vdwg.mxu0
        %4421 = vrot.lane.b32.xlu0 %v4144, 24
        %v4422 = vpop.permute.xlu0 %4421
        %4423 = vrot.lane.b32.xlu0 %v4149, 24
        %v4424 = vpop.permute.xlu0 %4423
        %4425 = vrot.lane.b32.xlu0 %v4231, 24
        %v4426 = vpop.permute.xlu0 %4425
        %4427 = vrot.lane.b32.xlu0 %v4236, 24
        %v4428 = vpop.permute.xlu0 %4427
        %4429 = vrot.lane.b32.xlu0 %v4318, 24
        %v4430 = vpop.permute.xlu0 %4429
        %4431 = vrot.lane.b32.xlu0 %v4323, 24
        %v4432 = vpop.permute.xlu0 %4431
        %4433 = vrot.lane.b32.xlu0 %v4405, 24
        %v4434 = vpop.permute.xlu0 %4433
        %4435 = vrot.lane.b32.xlu0 %v4410, 24
        %v4436 = vpop.permute.xlu0 %4435
        %vm4445 = vcmask 261312
        %4446 = vst.msk [vmem:[#allocation2] sm:$0xff] %vm4445, %v4422
        %4447 = vst.msk [vmem:[#allocation2 + $0x8] sm:$0xff] %vm4445, %v4424
        %4448 = vst.msk [vmem:[#allocation2 + $0x10] sm:$0xff] %vm4445, %v4426
        %4449 = vst.msk [vmem:[#allocation2 + $0x18] sm:$0xff] %vm4445, %v4428
        %4450 = vst.msk [vmem:[#allocation2 + $0x20] sm:$0xff] %vm4445, %v4430
        %4451 = vst.msk [vmem:[#allocation2 + $0x28] sm:$0xff] %vm4445, %v4432
        %4452 = vst.msk [vmem:[#allocation2 + $0x30] sm:$0xff] %vm4445, %v4434
        %4453 = vst.msk [vmem:[#allocation2 + $0x38] sm:$0xff] %vm4445, %v4436
        %v4454 = vld [vmem:[#allocation2] sm:$0xff]
        %v4455 = vld [vmem:[#allocation2 + $0x8] sm:$0xff]
        %v4456 = vld [vmem:[#allocation2 + $0x10] sm:$0xff]
        %v4457 = vld [vmem:[#allocation2 + $0x18] sm:$0xff]
        %v4458 = vld [vmem:[#allocation2 + $0x20] sm:$0xff]
        %v4459 = vld [vmem:[#allocation2 + $0x28] sm:$0xff]
        %v4460 = vld [vmem:[#allocation2 + $0x30] sm:$0xff]
        %v4461 = vld [vmem:[#allocation2 + $0x38] sm:$0xff]
        %v4462 = vld [vmem:[%s7] sm:$0xff]
        %v4463 = vld [vmem:[%s7 + $0x8] sm:$0xff]
        %v4464 = vld [vmem:[%s7 + $0x10] sm:$0xff]
        %v4465 = vld [vmem:[%s7 + $0x18] sm:$0xff]
        %v4466 = vlaneseq
        %v4467 = vshrl.u32 %v4466, 7
        %v4468 = vsub.s32 5, %v4467
        %v4469 = vrot.slane %v620, %v4468
        %v4471 = vsel %vm622, %v4454, 0
        %v4474 = vsel %vm622, %v4455, 0
        %v4477 = vsel %vm622, %v4456, 0
        %v4480 = vsel %vm622, %v4457, 0
        %v4483 = vsel %vm622, %v4458, 0
        %v4486 = vsel %vm622, %v4459, 0
        %v4489 = vsel %vm622, %v4460, 0
        %v4492 = vsel %vm622, %v4461, 0
        %4494 = vmatprep.subr.mxu0 0.0
        %4495 = vmatpush1.msra.mxu0 %v4462
        %4496 = vmatprep.subr.mxu0 0.0
        %4497 = vmatpush1.msra.mxu0 %v4463
        %4498 = vmatprep.subr.mxu0 0.0
        %4499 = vmatpush1.msra.mxu0 %v4464
        %4500 = vmatprep.subr.mxu0 0.0
        %4501 = vmatpush1.msra.mxu0 %v4465
        %4502 = vmatprep.subr.mxu0 0.0
        %4503 = vmatpush1.msra.mxu0 0.0
        %4504 = vmatprep.subr.mxu0 0.0
        %4505 = vmatpush1.msra.mxu0 0.0
        %4506 = vmatprep.subr.mxu0 0.0
        %4507 = vmatpush1.msra.mxu0 0.0
        %4508 = vmatprep.subr.mxu0 0.0
        %4509 = vmatpush1.msra.mxu0 0.0
        %4510 = vmatprep.subr.mxu0 0.0
        %4511 = vmatpush1.msra.mxu0 0.0
        %4512 = vmatprep.subr.mxu0 0.0
        %4513 = vmatpush1.msra.mxu0 0.0
        %4514 = vmatprep.subr.mxu0 0.0
        %4515 = vmatpush1.msra.mxu0 0.0
        %4516 = vmatprep.subr.mxu0 0.0
        %4517 = vmatpush1.msra.mxu0 0.0
        %4518 = vmatprep.subr.mxu0 0.0
        %4519 = vmatpush1.msra.mxu0 0.0
        %4520 = vmatprep.subr.mxu0 0.0
        %4521 = vmatpush1.msra.mxu0 0.0
        %4522 = vmatprep.subr.mxu0 0.0
        %4523 = vmatpush1.msra.mxu0 0.0
        %4524 = vmatprep.subr.mxu0 0.0
        %4525 = vmatpush1.msra.mxu0 0.0
        %4526 = vmatprep.subr.mxu0 0.0
        %4527 = vmatpush1.msra.mxu0 0.0
        %4528 = vmatprep.subr.mxu0 0.0
        %4529 = vmatpush1.msra.mxu0 0.0
        %4530 = vmatprep.subr.mxu0 0.0
        %4531 = vmatpush1.msra.mxu0 0.0
        %4532 = vmatprep.subr.mxu0 0.0
        %4533 = vmatpush1.msra.mxu0 0.0
        %4534 = vmatprep.subr.mxu0 0.0
        %4535 = vmatpush1.msra.mxu0 0.0
        %4536 = vmatprep.subr.mxu0 0.0
        %4537 = vmatpush1.msra.mxu0 0.0
        %4538 = vmatprep.subr.mxu0 0.0
        %4539 = vmatpush1.msra.mxu0 0.0
        %4540 = vmatprep.subr.mxu0 0.0
        %4541 = vmatpush1.msra.mxu0 0.0
        %4542 = vmatprep.subr.mxu0 0.0
        %4543 = vmatpush1.msra.mxu0 0.0
        %4544 = vmatprep.subr.mxu0 0.0
        %4545 = vmatpush1.msra.mxu0 0.0
        %4546 = vmatprep.subr.mxu0 0.0
        %4547 = vmatpush1.msra.mxu0 0.0
        %4548 = vmatprep.subr.mxu0 0.0
        %4549 = vmatpush1.msra.mxu0 0.0
        %4550 = vmatprep.subr.mxu0 0.0
        %4551 = vmatpush1.msra.mxu0 0.0
        %4552 = vmatprep.subr.mxu0 0.0
        %4553 = vmatpush1.msra.mxu0 0.0
        %4554 = vmatprep.subr.mxu0 0.0
        %4555 = vmatpush1.msra.mxu0 0.0
        %4556 = vmatprep.subr.mxu0 0.0
        %4557 = vmatpush1.msra.mxu0 0.0
        %4558 = vmatprep.mubr.f32.mxu0 0.0
        %4559 = vmatmul.mubr.f32.gmra.mrb[0].mxu0 %v4471
        %v4560 = vpop.f32.mrb[0].mxu0
        %v4561 = vadd.f32 %v4469, %v4560
        %v4562 = vpop.f32.mrb[0].mxu0
        %4563 = vmatprep.mubr.f32.mxu0 0.0
        %4564 = vmatmul.mubr.f32.gmra.mrb[0].mxu0 %v4474
        %v4565 = vpop.f32.mrb[0].mxu0
        %v4566 = vadd.f32 %v4469, %v4565
        %v4567 = vpop.f32.mrb[0].mxu0
        %4568 = vmatprep.mubr.f32.mxu0 0.0
        %4569 = vmatmul.mubr.f32.gmra.mrb[0].mxu0 %v4477
        %v4570 = vpop.f32.mrb[0].mxu0
        %v4571 = vadd.f32 %v4469, %v4570
        %v4572 = vpop.f32.mrb[0].mxu0
        %4573 = vmatprep.mubr.f32.mxu0 0.0
        %4574 = vmatmul.mubr.f32.gmra.mrb[0].mxu0 %v4480
        %v4575 = vpop.f32.mrb[0].mxu0
        %v4576 = vadd.f32 %v4469, %v4575
        %v4577 = vpop.f32.mrb[0].mxu0
        %4578 = vmatprep.mubr.f32.mxu0 0.0
        %4579 = vmatmul.mubr.f32.gmra.mrb[0].mxu0 %v4483
        %v4580 = vpop.f32.mrb[0].mxu0
        %v4581 = vadd.f32 %v4469, %v4580
        %v4582 = vpop.f32.mrb[0].mxu0
        %4583 = vmatprep.mubr.f32.mxu0 0.0
        %4584 = vmatmul.mubr.f32.gmra.mrb[0].mxu0 %v4486
        %v4585 = vpop.f32.mrb[0].mxu0
        %v4586 = vadd.f32 %v4469, %v4585
        %v4587 = vpop.f32.mrb[0].mxu0
        %4588 = vmatprep.mubr.f32.mxu0 0.0
        %4589 = vmatmul.mubr.f32.gmra.mrb[0].mxu0 %v4489
        %v4590 = vpop.f32.mrb[0].mxu0
        %v4591 = vadd.f32 %v4469, %v4590
        %v4592 = vpop.f32.mrb[0].mxu0
        %4593 = vmatprep.mubr.f32.mxu0 0.0
        %4594 = vmatmul.mubr.f32.gmra.mrb[0].mxu0 %v4492
        %v4595 = vpop.f32.mrb[0].mxu0
        %v4596 = vadd.f32 %v4469, %v4595
        %v4597 = vpop.f32.mrb[0].mxu0
        %4598 = vdwg.mxu0
        %v4599 = vadd.f32 %v612, %v4561
        %v4600 = vadd.f32 %v613, %v4566
        %v4601 = vadd.f32 %v614, %v4571
        %v4602 = vadd.f32 %v615, %v4576
        %v4603 = vadd.f32 %v616, %v4581
        %v4604 = vadd.f32 %v617, %v4586
        %v4605 = vadd.f32 %v618, %v4591
        %v4606 = vadd.f32 %v619, %v4596
        %v4607 = vsel %vm622, %v4599, 0.0
        %4608 = vadd.xlane.f32.xlu0 %v4607
        %v4609 = vpop.xlane.xlu0 %4608
        %v4610 = vsel %vm622, %v4600, 0.0
        %4611 = vadd.xlane.f32.xlu0 %v4610
        %v4612 = vpop.xlane.xlu0 %4611
        %v4613 = vsel %vm622, %v4601, 0.0
        %4614 = vadd.xlane.f32.xlu0 %v4613
        %v4615 = vpop.xlane.xlu0 %4614
        %v4616 = vsel %vm622, %v4602, 0.0
        %4617 = vadd.xlane.f32.xlu0 %v4616
        %v4618 = vpop.xlane.xlu0 %4617
        %v4619 = vsel %vm622, %v4603, 0.0
        %4620 = vadd.xlane.f32.xlu0 %v4619
        %v4621 = vpop.xlane.xlu0 %4620
        %v4622 = vsel %vm622, %v4604, 0.0
        %4623 = vadd.xlane.f32.xlu0 %v4622
        %v4624 = vpop.xlane.xlu0 %4623
        %v4625 = vsel %vm622, %v4605, 0.0
        %4626 = vadd.xlane.f32.xlu0 %v4625
        %v4627 = vpop.xlane.xlu0 %4626
        %v4628 = vsel %vm622, %v4606, 0.0
        %4629 = vadd.xlane.f32.xlu0 %v4628
        %v4630 = vpop.xlane.xlu0 %4629
        %v4631 = vmul.f32 %v4609, %v647
        %v4632 = vmul.f32 %v4612, %v647
        %v4633 = vmul.f32 %v4615, %v647
        %v4634 = vmul.f32 %v4618, %v647
        %v4635 = vmul.f32 %v4621, %v647
        %v4636 = vmul.f32 %v4624, %v647
        %v4637 = vmul.f32 %v4627, %v647
        %v4638 = vmul.f32 %v4630, %v647
        %v4639 = vsub.f32 %v4599, %v4631
        %v4640 = vsub.f32 %v4600, %v4632
        %v4641 = vsub.f32 %v4601, %v4633
        %v4642 = vsub.f32 %v4602, %v4634
        %v4643 = vsub.f32 %v4603, %v4635
        %v4644 = vsub.f32 %v4604, %v4636
        %v4645 = vsub.f32 %v4605, %v4637
        %v4646 = vsub.f32 %v4606, %v4638
        %v4647 = vmul.f32 %v4639, %v4639
        %v4648 = vmul.f32 %v4640, %v4640
        %v4649 = vmul.f32 %v4641, %v4641
        %v4650 = vmul.f32 %v4642, %v4642
        %v4651 = vmul.f32 %v4643, %v4643
        %v4652 = vmul.f32 %v4644, %v4644
        %v4653 = vmul.f32 %v4645, %v4645
        %v4654 = vmul.f32 %v4646, %v4646
        %v4655 = vsel %vm622, %v4647, 0.0
        %4656 = vadd.xlane.f32.xlu0 %v4655
        %v4657 = vpop.xlane.xlu0 %4656
        %v4658 = vsel %vm622, %v4648, 0.0
        %4659 = vadd.xlane.f32.xlu0 %v4658
        %v4660 = vpop.xlane.xlu0 %4659
        %v4661 = vsel %vm622, %v4649, 0.0
        %4662 = vadd.xlane.f32.xlu0 %v4661
        %v4663 = vpop.xlane.xlu0 %4662
        %v4664 = vsel %vm622, %v4650, 0.0
        %4665 = vadd.xlane.f32.xlu0 %v4664
        %v4666 = vpop.xlane.xlu0 %4665
        %v4667 = vsel %vm622, %v4651, 0.0
        %4668 = vadd.xlane.f32.xlu0 %v4667
        %v4669 = vpop.xlane.xlu0 %4668
        %v4670 = vsel %vm622, %v4652, 0.0
        %4671 = vadd.xlane.f32.xlu0 %v4670
        %v4672 = vpop.xlane.xlu0 %4671
        %v4673 = vsel %vm622, %v4653, 0.0
        %4674 = vadd.xlane.f32.xlu0 %v4673
        %v4675 = vpop.xlane.xlu0 %4674
        %v4676 = vsel %vm622, %v4654, 0.0
        %4677 = vadd.xlane.f32.xlu0 %v4676
        %v4678 = vpop.xlane.xlu0 %4677
        %v4679 = vmul.f32 %v4657, %v647
        %v4680 = vmul.f32 %v4660, %v647
        %v4681 = vmul.f32 %v4663, %v647
        %v4682 = vmul.f32 %v4666, %v647
        %v4683 = vmul.f32 %v4669, %v647
        %v4684 = vmul.f32 %v4672, %v647
        %v4685 = vmul.f32 %v4675, %v647
        %v4686 = vmul.f32 %v4678, %v647
        %v4687 = vadd.f32 %v4679, 1e-05
        %v4688 = vadd.f32 %v4680, 1e-05
        %v4689 = vadd.f32 %v4681, 1e-05
        %v4690 = vadd.f32 %v4682, 1e-05
        %v4691 = vadd.f32 %v4683, 1e-05
        %v4692 = vadd.f32 %v4684, 1e-05
        %v4693 = vadd.f32 %v4685, 1e-05
        %v4694 = vadd.f32 %v4686, 1e-05
        %v4695 = vrsqrt.pop %v4687
        %v4696 = vrsqrt.pop %v4688
        %v4697 = vrsqrt.pop %v4689
        %v4698 = vrsqrt.pop %v4690
        %v4699 = vrsqrt.pop %v4691
        %v4700 = vrsqrt.pop %v4692
        %v4701 = vrsqrt.pop %v4693
        %v4702 = vrsqrt.pop %v4694
        %v4703 = vmul.f32 %v4639, %v4695
        %v4704 = vmul.f32 %v4640, %v4696
        %v4705 = vmul.f32 %v4641, %v4697
        %v4706 = vmul.f32 %v4642, %v4698
        %v4707 = vmul.f32 %v4643, %v4699
        %v4708 = vmul.f32 %v4644, %v4700
        %v4709 = vmul.f32 %v4645, %v4701
        %v4710 = vmul.f32 %v4646, %v4702
        %v4711 = vlaneseq
        %v4712 = vshrl.u32 %v4711, 7
        %v4713 = vsub.s32 6, %v4712
        %v4714 = vrot.slane %v620, %v4713
        %v4715 = vmul.f32 %v4703, %v4714
        %v4716 = vmul.f32 %v4704, %v4714
        %v4717 = vmul.f32 %v4705, %v4714
        %v4718 = vmul.f32 %v4706, %v4714
        %v4719 = vmul.f32 %v4707, %v4714
        %v4720 = vmul.f32 %v4708, %v4714
        %v4721 = vmul.f32 %v4709, %v4714
        %v4722 = vmul.f32 %v4710, %v4714
        %v4723 = vlaneseq
        %v4724 = vshrl.u32 %v4723, 7
        %v4725 = vsub.s32 7, %v4724
        %v4726 = vrot.slane %v620, %v4725
        %v4727 = vadd.f32 %v4715, %v4726
        %v4728 = vadd.f32 %v4716, %v4726
        %v4729 = vadd.f32 %v4717, %v4726
        %v4730 = vadd.f32 %v4718, %v4726
        %v4731 = vadd.f32 %v4719, %v4726
        %v4732 = vadd.f32 %v4720, %v4726
        %v4733 = vadd.f32 %v4721, %v4726
        %v4734 = vadd.f32 %v4722, %v4726
        %v4735 = vld [vmem:[%s9] sm:$0xff]
        %v4736 = vld [vmem:[%s9 + $0x8] sm:$0xff]
        %v4737 = vld [vmem:[%s9 + $0x10] sm:$0xff]
        %v4738 = vld [vmem:[%s9 + $0x18] sm:$0xff]
        %v4739 = vld [vmem:[%s3] sm:$0x1]
        %v4741 = vlaneseq
        %v4742 = vshrl.u32 %v4741, 7
        %v4743 = vsub.s32 0, %v4742
        %v4744 = vrot.slane %v4739, %v4743
        %v4747 = vsel %vm622, %v4727, 0
        %v4750 = vsel %vm622, %v4728, 0
        %v4753 = vsel %vm622, %v4729, 0
        %v4756 = vsel %vm622, %v4730, 0
        %v4759 = vsel %vm622, %v4731, 0
        %v4762 = vsel %vm622, %v4732, 0
        %v4765 = vsel %vm622, %v4733, 0
        %v4768 = vsel %vm622, %v4734, 0
        %4770 = vmatprep.subr.mxu0 0.0
        %4771 = vmatpush1.msra.mxu0 %v4735
        %4772 = vmatprep.subr.mxu0 0.0
        %4773 = vmatpush1.msra.mxu0 %v4736
        %4774 = vmatprep.subr.mxu0 0.0
        %4775 = vmatpush1.msra.mxu0 %v4737
        %4776 = vmatprep.subr.mxu0 0.0
        %4777 = vmatpush1.msra.mxu0 %v4738
        %4778 = vmatprep.subr.mxu0 0.0
        %4779 = vmatpush1.msra.mxu0 0.0
        %4780 = vmatprep.subr.mxu0 0.0
        %4781 = vmatpush1.msra.mxu0 0.0
        %4782 = vmatprep.subr.mxu0 0.0
        %4783 = vmatpush1.msra.mxu0 0.0
        %4784 = vmatprep.subr.mxu0 0.0
        %4785 = vmatpush1.msra.mxu0 0.0
        %4786 = vmatprep.subr.mxu0 0.0
        %4787 = vmatpush1.msra.mxu0 0.0
        %4788 = vmatprep.subr.mxu0 0.0
        %4789 = vmatpush1.msra.mxu0 0.0
        %4790 = vmatprep.subr.mxu0 0.0
        %4791 = vmatpush1.msra.mxu0 0.0
        %4792 = vmatprep.subr.mxu0 0.0
        %4793 = vmatpush1.msra.mxu0 0.0
        %4794 = vmatprep.subr.mxu0 0.0
        %4795 = vmatpush1.msra.mxu0 0.0
        %4796 = vmatprep.subr.mxu0 0.0
        %4797 = vmatpush1.msra.mxu0 0.0
        %4798 = vmatprep.subr.mxu0 0.0
        %4799 = vmatpush1.msra.mxu0 0.0
        %4800 = vmatprep.subr.mxu0 0.0
        %4801 = vmatpush1.msra.mxu0 0.0
        %4802 = vmatprep.subr.mxu0 0.0
        %4803 = vmatpush1.msra.mxu0 0.0
        %4804 = vmatprep.subr.mxu0 0.0
        %4805 = vmatpush1.msra.mxu0 0.0
        %4806 = vmatprep.subr.mxu0 0.0
        %4807 = vmatpush1.msra.mxu0 0.0
        %4808 = vmatprep.subr.mxu0 0.0
        %4809 = vmatpush1.msra.mxu0 0.0
        %4810 = vmatprep.subr.mxu0 0.0
        %4811 = vmatpush1.msra.mxu0 0.0
        %4812 = vmatprep.subr.mxu0 0.0
        %4813 = vmatpush1.msra.mxu0 0.0
        %4814 = vmatprep.subr.mxu0 0.0
        %4815 = vmatpush1.msra.mxu0 0.0
        %4816 = vmatprep.subr.mxu0 0.0
        %4817 = vmatpush1.msra.mxu0 0.0
        %4818 = vmatprep.subr.mxu0 0.0
        %4819 = vmatpush1.msra.mxu0 0.0
        %4820 = vmatprep.subr.mxu0 0.0
        %4821 = vmatpush1.msra.mxu0 0.0
        %4822 = vmatprep.subr.mxu0 0.0
        %4823 = vmatpush1.msra.mxu0 0.0
        %4824 = vmatprep.subr.mxu0 0.0
        %4825 = vmatpush1.msra.mxu0 0.0
        %4826 = vmatprep.subr.mxu0 0.0
        %4827 = vmatpush1.msra.mxu0 0.0
        %4828 = vmatprep.subr.mxu0 0.0
        %4829 = vmatpush1.msra.mxu0 0.0
        %4830 = vmatprep.subr.mxu0 0.0
        %4831 = vmatpush1.msra.mxu0 0.0
        %4832 = vmatprep.subr.mxu0 0.0
        %4833 = vmatpush1.msra.mxu0 0.0
        %4834 = vmatprep.mubr.f32.mxu0 0.0
        %4835 = vmatmul.mubr.f32.gmra.mrb[0].mxu0 %v4747
        %v4836 = vpop.f32.mrb[0].mxu0
        %v4837 = vadd.f32 %v4744, %v4836
        %v4838 = vpop.f32.mrb[0].mxu0
        %4839 = vmatprep.mubr.f32.mxu0 0.0
        %4840 = vmatmul.mubr.f32.gmra.mrb[0].mxu0 %v4750
        %v4841 = vpop.f32.mrb[0].mxu0
        %v4842 = vadd.f32 %v4744, %v4841
        %v4843 = vpop.f32.mrb[0].mxu0
        %4844 = vmatprep.mubr.f32.mxu0 0.0
        %4845 = vmatmul.mubr.f32.gmra.mrb[0].mxu0 %v4753
        %v4846 = vpop.f32.mrb[0].mxu0
        %v4847 = vadd.f32 %v4744, %v4846
        %v4848 = vpop.f32.mrb[0].mxu0
        %4849 = vmatprep.mubr.f32.mxu0 0.0
        %4850 = vmatmul.mubr.f32.gmra.mrb[0].mxu0 %v4756
        %v4851 = vpop.f32.mrb[0].mxu0
        %v4852 = vadd.f32 %v4744, %v4851
        %v4853 = vpop.f32.mrb[0].mxu0
        %4854 = vmatprep.mubr.f32.mxu0 0.0
        %4855 = vmatmul.mubr.f32.gmra.mrb[0].mxu0 %v4759
        %v4856 = vpop.f32.mrb[0].mxu0
        %v4857 = vadd.f32 %v4744, %v4856
        %v4858 = vpop.f32.mrb[0].mxu0
        %4859 = vmatprep.mubr.f32.mxu0 0.0
        %4860 = vmatmul.mubr.f32.gmra.mrb[0].mxu0 %v4762
        %v4861 = vpop.f32.mrb[0].mxu0
        %v4862 = vadd.f32 %v4744, %v4861
        %v4863 = vpop.f32.mrb[0].mxu0
        %4864 = vmatprep.mubr.f32.mxu0 0.0
        %4865 = vmatmul.mubr.f32.gmra.mrb[0].mxu0 %v4765
        %v4866 = vpop.f32.mrb[0].mxu0
        %v4867 = vadd.f32 %v4744, %v4866
        %v4868 = vpop.f32.mrb[0].mxu0
        %4869 = vmatprep.mubr.f32.mxu0 0.0
        %4870 = vmatmul.mubr.f32.gmra.mrb[0].mxu0 %v4768
        %v4871 = vpop.f32.mrb[0].mxu0
        %v4872 = vadd.f32 %v4744, %v4871
        %v4873 = vpop.f32.mrb[0].mxu0
        %4874 = vdwg.mxu0
        %v4875 = vmul.f32 %v4837, 0.5
        %v4876 = vmul.f32 %v4842, 0.5
        %v4877 = vmul.f32 %v4847, 0.5
        %v4878 = vmul.f32 %v4852, 0.5
        %v4879 = vmul.f32 %v4857, 0.5
        %v4880 = vmul.f32 %v4862, 0.5
        %v4881 = vmul.f32 %v4867, 0.5
        %v4882 = vmul.f32 %v4872, 0.5
        %v4883 = vmul.f32 %v4837, 0.70710677
        %v4884 = vmul.f32 %v4842, 0.70710677
        %v4885 = vmul.f32 %v4847, 0.70710677
        %v4886 = vmul.f32 %v4852, 0.70710677
        %v4887 = vmul.f32 %v4857, 0.70710677
        %v4888 = vmul.f32 %v4862, 0.70710677
        %v4889 = vmul.f32 %v4867, 0.70710677
        %v4890 = vmul.f32 %v4872, 0.70710677
        %v4891 = vand.u32 2147483647, %v4883
        %v4892 = vand.u32 2147483647, %v4884
        %v4893 = vand.u32 2147483647, %v4885
        %v4894 = vand.u32 2147483647, %v4886
        %v4895 = vand.u32 2147483647, %v4887
        %v4896 = vand.u32 2147483647, %v4888
        %v4897 = vand.u32 2147483647, %v4889
        %v4898 = vand.u32 2147483647, %v4890
        %v4899 = vmul.f32 %v4891, 0.3275911
        %v4900 = vmul.f32 %v4892, 0.3275911
        %v4901 = vmul.f32 %v4893, 0.3275911
        %v4902 = vmul.f32 %v4894, 0.3275911
        %v4903 = vmul.f32 %v4895, 0.3275911
        %v4904 = vmul.f32 %v4896, 0.3275911
        %v4905 = vmul.f32 %v4897, 0.3275911
        %v4906 = vmul.f32 %v4898, 0.3275911
        %v4907 = vadd.f32 %v4899, 1.0
        %v4908 = vadd.f32 %v4900, 1.0
        %v4909 = vadd.f32 %v4901, 1.0
        %v4910 = vadd.f32 %v4902, 1.0
        %v4911 = vadd.f32 %v4903, 1.0
        %v4912 = vadd.f32 %v4904, 1.0
        %v4913 = vadd.f32 %v4905, 1.0
        %v4914 = vadd.f32 %v4906, 1.0
        %v4915 = vrcp.pop %v4907
        %v4916 = vmul.f32 1.0, %v4915
        %v4917 = vrcp.pop %v4908
        %v4918 = vmul.f32 1.0, %v4917
        %v4919 = vrcp.pop %v4909
        %v4920 = vmul.f32 1.0, %v4919
        %v4921 = vrcp.pop %v4910
        %v4922 = vmul.f32 1.0, %v4921
        %v4923 = vrcp.pop %v4911
        %v4924 = vmul.f32 1.0, %v4923
        %v4925 = vrcp.pop %v4912
        %v4926 = vmul.f32 1.0, %v4925
        %v4927 = vrcp.pop %v4913
        %v4928 = vmul.f32 1.0, %v4927
        %v4929 = vrcp.pop %v4914
        %v4930 = vmul.f32 1.0, %v4929
        %v4931 = vmul.f32 %v4916, 1.0614054
        %v4932 = vmul.f32 %v4918, 1.0614054
        %v4933 = vmul.f32 %v4920, 1.0614054
        %v4934 = vmul.f32 %v4922, 1.0614054
        %v4935 = vmul.f32 %v4924, 1.0614054
        %v4936 = vmul.f32 %v4926, 1.0614054
        %v4937 = vmul.f32 %v4928, 1.0614054
        %v4938 = vmul.f32 %v4930, 1.0614054
        %v4939 = vsub.f32 %v4931, 1.4531521
        %v4940 = vsub.f32 %v4932, 1.4531521
        %v4941 = vsub.f32 %v4933, 1.4531521
        %v4942 = vsub.f32 %v4934, 1.4531521
        %v4943 = vsub.f32 %v4935, 1.4531521
        %v4944 = vsub.f32 %v4936, 1.4531521
        %v4945 = vsub.f32 %v4937, 1.4531521
        %v4946 = vsub.f32 %v4938, 1.4531521
        %v4947 = vmul.f32 %v4939, %v4916
        %v4948 = vmul.f32 %v4940, %v4918
        %v4949 = vmul.f32 %v4941, %v4920
        %v4950 = vmul.f32 %v4942, %v4922
        %v4951 = vmul.f32 %v4943, %v4924
        %v4952 = vmul.f32 %v4944, %v4926
        %v4953 = vmul.f32 %v4945, %v4928
        %v4954 = vmul.f32 %v4946, %v4930
        %v4955 = vadd.f32 %v4947, 1.4214138
        %v4956 = vadd.f32 %v4948, 1.4214138
        %v4957 = vadd.f32 %v4949, 1.4214138
        %v4958 = vadd.f32 %v4950, 1.4214138
        %v4959 = vadd.f32 %v4951, 1.4214138
        %v4960 = vadd.f32 %v4952, 1.4214138
        %v4961 = vadd.f32 %v4953, 1.4214138
        %v4962 = vadd.f32 %v4954, 1.4214138
        %v4963 = vmul.f32 %v4955, %v4916
        %v4964 = vmul.f32 %v4956, %v4918
        %v4965 = vmul.f32 %v4957, %v4920
        %v4966 = vmul.f32 %v4958, %v4922
        %v4967 = vmul.f32 %v4959, %v4924
        %v4968 = vmul.f32 %v4960, %v4926
        %v4969 = vmul.f32 %v4961, %v4928
        %v4970 = vmul.f32 %v4962, %v4930
        %v4971 = vsub.f32 %v4963, 0.28449672
        %v4972 = vsub.f32 %v4964, 0.28449672
        %v4973 = vsub.f32 %v4965, 0.28449672
        %v4974 = vsub.f32 %v4966, 0.28449672
        %v4975 = vsub.f32 %v4967, 0.28449672
        %v4976 = vsub.f32 %v4968, 0.28449672
        %v4977 = vsub.f32 %v4969, 0.28449672
        %v4978 = vsub.f32 %v4970, 0.28449672
        %v4979 = vmul.f32 %v4971, %v4916
        %v4980 = vmul.f32 %v4972, %v4918
        %v4981 = vmul.f32 %v4973, %v4920
        %v4982 = vmul.f32 %v4974, %v4922
        %v4983 = vmul.f32 %v4975, %v4924
        %v4984 = vmul.f32 %v4976, %v4926
        %v4985 = vmul.f32 %v4977, %v4928
        %v4986 = vmul.f32 %v4978, %v4930
        %v4987 = vadd.f32 %v4979, 0.2548296
        %v4988 = vadd.f32 %v4980, 0.2548296
        %v4989 = vadd.f32 %v4981, 0.2548296
        %v4990 = vadd.f32 %v4982, 0.2548296
        %v4991 = vadd.f32 %v4983, 0.2548296
        %v4992 = vadd.f32 %v4984, 0.2548296
        %v4993 = vadd.f32 %v4985, 0.2548296
        %v4994 = vadd.f32 %v4986, 0.2548296
        %v4995 = vmul.f32 %v4987, %v4916
        %v4996 = vmul.f32 %v4988, %v4918
        %v4997 = vmul.f32 %v4989, %v4920
        %v4998 = vmul.f32 %v4990, %v4922
        %v4999 = vmul.f32 %v4991, %v4924
        %v5000 = vmul.f32 %v4992, %v4926
        %v5001 = vmul.f32 %v4993, %v4928
        %v5002 = vmul.f32 %v4994, %v4930
        %v5003 = vsub.f32 0.0, %v4891
        %v5004 = vsub.f32 0.0, %v4892
        %v5005 = vsub.f32 0.0, %v4893
        %v5006 = vsub.f32 0.0, %v4894
        %v5007 = vsub.f32 0.0, %v4895
        %v5008 = vsub.f32 0.0, %v4896
        %v5009 = vsub.f32 0.0, %v4897
        %v5010 = vsub.f32 0.0, %v4898
        %v5011 = vmul.f32 %v5003, %v4891
        %v5012 = vmul.f32 %v5004, %v4892
        %v5013 = vmul.f32 %v5005, %v4893
        %v5014 = vmul.f32 %v5006, %v4894
        %v5015 = vmul.f32 %v5007, %v4895
        %v5016 = vmul.f32 %v5008, %v4896
        %v5017 = vmul.f32 %v5009, %v4897
        %v5018 = vmul.f32 %v5010, %v4898
        %v5019 = vmul.f32 %v5011, 1.442695
        %v5020 = vpow.pop %v5019
        %v5021 = vmul.f32 %v5012, 1.442695
        %v5022 = vpow.pop %v5021
        %v5023 = vmul.f32 %v5013, 1.442695
        %v5024 = vpow.pop %v5023
        %v5025 = vmul.f32 %v5014, 1.442695
        %v5026 = vpow.pop %v5025
        %v5027 = vmul.f32 %v5015, 1.442695
        %v5028 = vpow.pop %v5027
        %v5029 = vmul.f32 %v5016, 1.442695
        %v5030 = vpow.pop %v5029
        %v5031 = vmul.f32 %v5017, 1.442695
        %v5032 = vpow.pop %v5031
        %v5033 = vmul.f32 %v5018, 1.442695
        %v5034 = vpow.pop %v5033
        %v5035 = vmul.f32 %v4995, %v5020
        %v5036 = vmul.f32 %v4996, %v5022
        %v5037 = vmul.f32 %v4997, %v5024
        %v5038 = vmul.f32 %v4998, %v5026
        %v5039 = vmul.f32 %v4999, %v5028
        %v5040 = vmul.f32 %v5000, %v5030
        %v5041 = vmul.f32 %v5001, %v5032
        %v5042 = vmul.f32 %v5002, %v5034
        %v5043 = vsub.f32 1.0, %v5035
        %v5044 = vsub.f32 1.0, %v5036
        %v5045 = vsub.f32 1.0, %v5037
        %v5046 = vsub.f32 1.0, %v5038
        %v5047 = vsub.f32 1.0, %v5039
        %v5048 = vsub.f32 1.0, %v5040
        %v5049 = vsub.f32 1.0, %v5041
        %v5050 = vsub.f32 1.0, %v5042
        %vm5051 = vcmp.ge.f32.partialorder %v4883, 0.0
        %vm5052 = vcmp.ge.f32.partialorder %v4884, 0.0
        %vm5053 = vcmp.ge.f32.partialorder %v4885, 0.0
        %vm5054 = vcmp.ge.f32.partialorder %v4886, 0.0
        %vm5055 = vcmp.ge.f32.partialorder %v4887, 0.0
        %vm5056 = vcmp.ge.f32.partialorder %v4888, 0.0
        %vm5057 = vcmp.ge.f32.partialorder %v4889, 0.0
        %vm5058 = vcmp.ge.f32.partialorder %v4890, 0.0
        %v5059 = vsub.f32 0.0, %v5043
        %v5060 = vsub.f32 0.0, %v5044
        %v5061 = vsub.f32 0.0, %v5045
        %v5062 = vsub.f32 0.0, %v5046
        %v5063 = vsub.f32 0.0, %v5047
        %v5064 = vsub.f32 0.0, %v5048
        %v5065 = vsub.f32 0.0, %v5049
        %v5066 = vsub.f32 0.0, %v5050
        %v5067 = vsel %vm5051, %v5043, %v5059
        %v5068 = vsel %vm5052, %v5044, %v5060
        %v5069 = vsel %vm5053, %v5045, %v5061
        %v5070 = vsel %vm5054, %v5046, %v5062
        %v5071 = vsel %vm5055, %v5047, %v5063
        %v5072 = vsel %vm5056, %v5048, %v5064
        %v5073 = vsel %vm5057, %v5049, %v5065
        %v5074 = vsel %vm5058, %v5050, %v5066
        %v5075 = vadd.f32 %v5067, 1.0
        %v5076 = vadd.f32 %v5068, 1.0
        %v5077 = vadd.f32 %v5069, 1.0
        %v5078 = vadd.f32 %v5070, 1.0
        %v5079 = vadd.f32 %v5071, 1.0
        %v5080 = vadd.f32 %v5072, 1.0
        %v5081 = vadd.f32 %v5073, 1.0
        %v5082 = vadd.f32 %v5074, 1.0
        %v5083 = vmul.f32 %v4875, %v5075
        %v5084 = vmul.f32 %v4876, %v5076
        %v5085 = vmul.f32 %v4877, %v5077
        %v5086 = vmul.f32 %v4878, %v5078
        %v5087 = vmul.f32 %v4879, %v5079
        %v5088 = vmul.f32 %v4880, %v5080
        %v5089 = vmul.f32 %v4881, %v5081
        %v5090 = vmul.f32 %v4882, %v5082
        %v5091 = vld [vmem:[%s10] sm:$0xff]
        %v5092 = vld [vmem:[%s10 + $0x8] sm:$0xff]
        %v5093 = vld [vmem:[%s10 + $0x10] sm:$0xff]
        %v5094 = vld [vmem:[%s10 + $0x18] sm:$0xff]
        %v5095 = vld [vmem:[%s10 + $0x20] sm:$0xff]
        %v5096 = vld [vmem:[%s10 + $0x28] sm:$0xff]
        %v5097 = vld [vmem:[%s10 + $0x30] sm:$0xff]
        %v5098 = vld [vmem:[%s10 + $0x38] sm:$0xff]
        %v5099 = vld [vmem:[%s10 + $0x40] sm:$0xff]
        %v5100 = vld [vmem:[%s10 + $0x48] sm:$0xff]
        %v5101 = vld [vmem:[%s10 + $0x50] sm:$0xff]
        %v5102 = vld [vmem:[%s10 + $0x58] sm:$0xff]
        %v5103 = vld [vmem:[%s10 + $0x60] sm:$0xff]
        %v5104 = vld [vmem:[%s10 + $0x68] sm:$0xff]
        %v5105 = vld [vmem:[%s10 + $0x70] sm:$0xff]
        %v5106 = vld [vmem:[%s10 + $0x78] sm:$0xff]
        %v5107 = vlaneseq
        %v5108 = vshrl.u32 %v5107, 7
        %v5109 = vsub.s32 0, %v5108
        %v5110 = vrot.slane %v621, %v5109
        %5111 = vmatprep.subr.mxu0 0.0
        %5112 = vmatpush1.msra.mxu0 %v5091
        %5113 = vmatprep.subr.mxu0 0.0
        %5114 = vmatpush1.msra.mxu0 %v5092
        %5115 = vmatprep.subr.mxu0 0.0
        %5116 = vmatpush1.msra.mxu0 %v5093
        %5117 = vmatprep.subr.mxu0 0.0
        %5118 = vmatpush1.msra.mxu0 %v5094
        %5119 = vmatprep.subr.mxu0 0.0
        %5120 = vmatpush1.msra.mxu0 %v5095
        %5121 = vmatprep.subr.mxu0 0.0
        %5122 = vmatpush1.msra.mxu0 %v5096
        %5123 = vmatprep.subr.mxu0 0.0
        %5124 = vmatpush1.msra.mxu0 %v5097
        %5125 = vmatprep.subr.mxu0 0.0
        %5126 = vmatpush1.msra.mxu0 %v5098
        %5127 = vmatprep.subr.mxu0 0.0
        %5128 = vmatpush1.msra.mxu0 %v5099
        %5129 = vmatprep.subr.mxu0 0.0
        %5130 = vmatpush1.msra.mxu0 %v5100
        %5131 = vmatprep.subr.mxu0 0.0
        %5132 = vmatpush1.msra.mxu0 %v5101
        %5133 = vmatprep.subr.mxu0 0.0
        %5134 = vmatpush1.msra.mxu0 %v5102
        %5135 = vmatprep.subr.mxu0 0.0
        %5136 = vmatpush1.msra.mxu0 %v5103
        %5137 = vmatprep.subr.mxu0 0.0
        %5138 = vmatpush1.msra.mxu0 %v5104
        %5139 = vmatprep.subr.mxu0 0.0
        %5140 = vmatpush1.msra.mxu0 %v5105
        %5141 = vmatprep.subr.mxu0 0.0
        %5142 = vmatpush1.msra.mxu0 %v5106
        %5143 = vmatprep.subr.mxu0 0.0
        %5144 = vmatpush1.msra.mxu0 0.0
        %5145 = vmatprep.subr.mxu0 0.0
        %5146 = vmatpush1.msra.mxu0 0.0
        %5147 = vmatprep.subr.mxu0 0.0
        %5148 = vmatpush1.msra.mxu0 0.0
        %5149 = vmatprep.subr.mxu0 0.0
        %5150 = vmatpush1.msra.mxu0 0.0
        %5151 = vmatprep.subr.mxu0 0.0
        %5152 = vmatpush1.msra.mxu0 0.0
        %5153 = vmatprep.subr.mxu0 0.0
        %5154 = vmatpush1.msra.mxu0 0.0
        %5155 = vmatprep.subr.mxu0 0.0
        %5156 = vmatpush1.msra.mxu0 0.0
        %5157 = vmatprep.subr.mxu0 0.0
        %5158 = vmatpush1.msra.mxu0 0.0
        %5159 = vmatprep.subr.mxu0 0.0
        %5160 = vmatpush1.msra.mxu0 0.0
        %5161 = vmatprep.subr.mxu0 0.0
        %5162 = vmatpush1.msra.mxu0 0.0
        %5163 = vmatprep.subr.mxu0 0.0
        %5164 = vmatpush1.msra.mxu0 0.0
        %5165 = vmatprep.subr.mxu0 0.0
        %5166 = vmatpush1.msra.mxu0 0.0
        %5167 = vmatprep.subr.mxu0 0.0
        %5168 = vmatpush1.msra.mxu0 0.0
        %5169 = vmatprep.subr.mxu0 0.0
        %5170 = vmatpush1.msra.mxu0 0.0
        %5171 = vmatprep.subr.mxu0 0.0
        %5172 = vmatpush1.msra.mxu0 0.0
        %5173 = vmatprep.subr.mxu0 0.0
        %5174 = vmatpush1.msra.mxu0 0.0
        %5175 = vmatprep.mubr.f32.mxu0 0.0
        %5176 = vmatmul.mubr.f32.gmra.mrb[0].mxu0 %v5083
        %v5177 = vpop.f32.mrb[0].mxu0
        %v5178 = vadd.f32 %v5110, %v5177
        %v5179 = vpop.f32.mrb[0].mxu0
        %5180 = vmatprep.mubr.f32.mxu0 0.0
        %5181 = vmatmul.mubr.f32.gmra.mrb[0].mxu0 %v5084
        %v5182 = vpop.f32.mrb[0].mxu0
        %v5183 = vadd.f32 %v5110, %v5182
        %v5184 = vpop.f32.mrb[0].mxu0
        %5185 = vmatprep.mubr.f32.mxu0 0.0
        %5186 = vmatmul.mubr.f32.gmra.mrb[0].mxu0 %v5085
        %v5187 = vpop.f32.mrb[0].mxu0
        %v5188 = vadd.f32 %v5110, %v5187
        %v5189 = vpop.f32.mrb[0].mxu0
        %5190 = vmatprep.mubr.f32.mxu0 0.0
        %5191 = vmatmul.mubr.f32.gmra.mrb[0].mxu0 %v5086
        %v5192 = vpop.f32.mrb[0].mxu0
        %v5193 = vadd.f32 %v5110, %v5192
        %v5194 = vpop.f32.mrb[0].mxu0
        %5195 = vmatprep.mubr.f32.mxu0 0.0
        %5196 = vmatmul.mubr.f32.gmra.mrb[0].mxu0 %v5087
        %v5197 = vpop.f32.mrb[0].mxu0
        %v5198 = vadd.f32 %v5110, %v5197
        %v5199 = vpop.f32.mrb[0].mxu0
        %5200 = vmatprep.mubr.f32.mxu0 0.0
        %5201 = vmatmul.mubr.f32.gmra.mrb[0].mxu0 %v5088
        %v5202 = vpop.f32.mrb[0].mxu0
        %v5203 = vadd.f32 %v5110, %v5202
        %v5204 = vpop.f32.mrb[0].mxu0
        %5205 = vmatprep.mubr.f32.mxu0 0.0
        %5206 = vmatmul.mubr.f32.gmra.mrb[0].mxu0 %v5089
        %v5207 = vpop.f32.mrb[0].mxu0
        %v5208 = vadd.f32 %v5110, %v5207
        %v5209 = vpop.f32.mrb[0].mxu0
        %5210 = vmatprep.mubr.f32.mxu0 0.0
        %5211 = vmatmul.mubr.f32.gmra.mrb[0].mxu0 %v5090
        %v5212 = vpop.f32.mrb[0].mxu0
        %v5213 = vadd.f32 %v5110, %v5212
        %v5214 = vpop.f32.mrb[0].mxu0
        %5215 = vdwg.mxu0
        %v5216 = vadd.f32 %v4599, %v5178
        %v5217 = vadd.f32 %v4600, %v5183
        %v5218 = vadd.f32 %v4601, %v5188
        %v5219 = vadd.f32 %v4602, %v5193
        %v5220 = vadd.f32 %v4603, %v5198
        %v5221 = vadd.f32 %v4604, %v5203
        %v5222 = vadd.f32 %v4605, %v5208
        %v5223 = vadd.f32 %v4606, %v5213
        %5224 = vst.msk [vmem:[%s604] sm:$0xff] %vm622, %v5216
        %5225 = vst.msk [vmem:[%s604 + $0x8] sm:$0xff] %vm622, %v5217
        %5226 = vst.msk [vmem:[%s604 + $0x10] sm:$0xff] %vm622, %v5218
        %5227 = vst.msk [vmem:[%s604 + $0x18] sm:$0xff] %vm622, %v5219
        %5228 = vst.msk [vmem:[%s604 + $0x20] sm:$0xff] %vm622, %v5220
        %5229 = vst.msk [vmem:[%s604 + $0x28] sm:$0xff] %vm622, %v5221
        %5230 = vst.msk [vmem:[%s604 + $0x30] sm:$0xff] %vm622, %v5222
        %5231 = vst.msk [vmem:[%s604 + $0x38] sm:$0xff] %vm622, %v5223
        %s5232 = smul.u32 8, %s24
        %p5233 = scmp.lt.s32.totalorder %s5232, 15
        %s5234 = scalar_select %p5233, %s5232, 15
        %s5235 = smul.addr %s5234, 8
        %s5236 = scalar_lea.vmem %s11, %s5235
        %s5237 = smul.u32 8, %s24
        %p5238 = scmp.lt.s32.totalorder %s5237, 15
        %s5239 = scalar_select %p5238, %s5237, 15
        %s5240 = smul.addr %s5239, 8
        %s5241 = scalar_lea.vmem %s12, %s5240
        // Predicated region
        $region103: #{swin_transformer_block_three.1} parent=97 // pred_check
          %p5242 = pneg %p283
        $region104: #{swin_transformer_block_three.1} parent=97 // pred_check_branch
          %5244 = sbr.rel (%p5242) target = $region106
        $region105: #{swin_transformer_block_three.1} parent=97 // pred_region
          %s5245 = smul.u32 8, %s24
        $region106: #{swin_transformer_block_three.1} parent=97 // pred_fallthru
          _
        // Predicated region
        $region107: #{swin_transformer_block_three.1} parent=97 // pred_check
          %p5246 = pneg %p309
        $region108: #{swin_transformer_block_three.1} parent=97 // pred_check_branch
          %5248 = sbr.rel (%p5246) target = $region110
        $region109: #{swin_transformer_block_three.1} parent=97 // pred_region
          %s5249 = smul.u32 8, %s24
        $region110: #{swin_transformer_block_three.1} parent=97 // pred_fallthru
          _
      $region98: #{swin_transformer_block_three.1} parent=5 // pred_fallthru
        _
      %p5250 = scmp.le.s32.totalorder 2, %s19
      // Predicated region
      $region111: #{swin_transformer_block_three.1} parent=5 // pred_check
        %p5251 = pneg %p5250
      $region112: #{swin_transformer_block_three.1} parent=5 // pred_check_branch
        %5253 = sbr.rel (%p5251) target = $region114
      $region113: #{swin_transformer_block_three.1} parent=5 // pred_region
        %s5254 = ssub.s32 %s19, 2
        // Predicated region
        $region115: #{swin_transformer_block_three.1} parent=113 // pred_check
          %p5255 = pneg %p289
        $region116: #{swin_transformer_block_three.1} parent=113 // pred_check_branch
          %5257 = sbr.rel (%p5255) target = $region118
        $region117: #{swin_transformer_block_three.1} parent=113 // pred_region
          %s5258 = smul.u32 8, %s25
          %p5259 = scmp.lt.s32.totalorder %s5258, 15
          %s5260 = scalar_select %p5259, %s5258, 15
          %s5261 = smul.addr %s5260, 8
          %s5262 = scalar_lea.vmem %s11, %s5261
        $region118: #{swin_transformer_block_three.1} parent=113 // pred_fallthru
          _
        // Predicated region
        $region119: #{swin_transformer_block_three.1} parent=113 // pred_check
          %p5263 = pneg %p315
        $region120: #{swin_transformer_block_three.1} parent=113 // pred_check_branch
          %5265 = sbr.rel (%p5263) target = $region122
        $region121: #{swin_transformer_block_three.1} parent=113 // pred_region
          %s5266 = smul.u32 8, %s25
          %p5267 = scmp.lt.s32.totalorder %s5266, 15
          %s5268 = scalar_select %p5267, %s5266, 15
          %s5269 = smul.addr %s5268, 8
          %s5270 = scalar_lea.vmem %s12, %s5269
        $region122: #{swin_transformer_block_three.1} parent=113 // pred_fallthru
          _
      $region114: #{swin_transformer_block_three.1} parent=5 // pred_fallthru
        _
    $region6: #{swin_transformer_block_three.1} parent=1 // loop_footer
      %s23 = sadd.s32 1, %s19
    $region7: #{swin_transformer_block_three.1} parent=1 // loop_footer_branch
      %18 = sbr.rel target = $region3
    $region8: #{swin_transformer_block_three.1} parent=1 // loop_exit
      _

</llo_original>
